<compile_context>
chip_gen: v5e
topology: v5e:2x2
jax: 0.10.0
libtpu: 0.0.40
codegen_flags: <defaults>
</compile_context>

<pallas_src>
import functools

import numpy as np
import jax
import jax.numpy as jnp
from jax.experimental import pallas as pl
from jax.experimental.pallas import tpu as pltpu


KSIZE = 5                      # conv kernel size (all three convs)
STRIDE = 2                     # conv stride
CHANNELS = (4, 16, 32, 32)     # input channels, then conv1/2/3 out channels
BN_EPS = 1e-5
N_ACT_PAD = 128                # lane-dense head output width
OUT_ROWS = 8                   # sublane-dense head output rows (>= batch)


def _round_up(x, m):
    return (x + m - 1) // m * m


def _conv_size_out(size):
    return (size - (KSIZE - 1) - 1) // STRIDE + 1


# ---------------------------------------------------------------------------
# Fused Pallas kernel
# ---------------------------------------------------------------------------
def _conv_block(x, s_ref, w_ref, shift_ref, rout):
    """One conv+bn+relu stage on a 2-D activation slab.

    x         : (rin,  kin)  bf16 activation; rows = (batch, h), cols = (w, c)
    s_ref     : (5*rout, rin) bf16 0/1 row selection (stride-2 im2col in H)
    w_ref     : (5, kin, kout) bf16 expanded conv weight (im2col in W +
                channel contraction, BN scale pre-folded)
    shift_ref : (1, kout) f32 folded conv-bias / BN shift
    returns   : (rout, kout) bf16 activation for the next stage
    """
    # All 5 ki-offsets selected with one MXU matmul; selection is 0/1 so the
    # bf16 result is exact (single cast -> half the vreg/VMEM pressure of f32).
    g = jnp.dot(s_ref[...], x, preferred_element_type=jnp.float32)
    g = g.astype(jnp.bfloat16)
    acc = jnp.dot(g[0:rout], w_ref[0], preferred_element_type=jnp.float32)
    for ki in range(1, KSIZE):
        acc = acc + jnp.dot(g[ki * rout:(ki + 1) * rout], w_ref[ki],
                            preferred_element_type=jnp.float32)
    # f32 epilogue (BN shift + ReLU).  Padded rows hold relu(shift): harmless,
    # downstream selection matrices never pick padded rows (documented invariant).
    return jnp.maximum(acc + shift_ref[...], 0.0).astype(jnp.bfloat16)


def _dqn_kernel(x_ref, s1_ref, w1_ref, t1_ref, s2_ref, t2_ref, s3_ref, t3_ref,
                hs_ref, hb_ref, w2_hbm, w3_hbm, wh_hbm,
                out_ref,
                w2_vmem, w3_vmem, wh_vmem, sem,
                *, rows, n_head_sel):
    # Kick off the layer-2 / layer-3 / head weight DMAs immediately so they
    # overlap layer-1 and layer-2 compute instead of being exposed up front.
    cp2 = pltpu.make_async_copy(w2_hbm, w2_vmem, sem.at[0])
    cp3 = pltpu.make_async_copy(w3_hbm, w3_vmem, sem.at[1])
    cph = pltpu.make_async_copy(wh_hbm, wh_vmem, sem.at[2])
    cp2.start()
    cp3.start()
    cph.start()

    x = _conv_block(x_ref[...], s1_ref, w1_ref, t1_ref, rows[0])
    cp2.wait()
    x = _conv_block(x, s2_ref, w2_vmem, t2_ref, rows[1])
    cp3.wait()
    x = _conv_block(x, s3_ref, w3_vmem, t3_ref, rows[2])
    cph.wait()

    # Linear head: contract over (h) via row selection and (w, c) via matmul.
    # TODO(synk): on v7x, explicit MRB accumulation (matmul_acc_lhs/pop) could
    # replace the VPU add chain; left to Mosaic fusion here.
    out = hb_ref[...]                                    # (1, 128), broadcasts
    for oh in range(n_head_sel):
        h = jnp.dot(hs_ref[oh], x, preferred_element_type=jnp.float32)
        out = out + jnp.dot(h.astype(jnp.bfloat16), wh_vmem[oh],
                            preferred_element_type=jnp.float32)
    out_ref[...] = out


# ---------------------------------------------------------------------------
# One-time parameter preprocessing (hoisted out of the hot path)
# ---------------------------------------------------------------------------
def prepare_dqn(params, batch, h_in, eps=BN_EPS):
    """Fold BN into weights, expand each stride-2 conv into dense matmul
    operands, build the 0/1 row-selection matrices and reorder the head weight
    for the NCHW flatten.  Rows padded to multiples of 16 (bf16 sublane
    packing); columns kept at their natural width (no dead K)."""
    assert batch <= OUT_ROWS, "raise OUT_ROWS (or grid the batch) for batch > 8"
    spatial = [h_in]
    for _ in range(3):
        spatial.append(_conv_size_out(spatial[-1]))
    assert spatial[3] >= 1, "input spatial size too small for three k=5,s=2 convs"
    rows = [_round_up(batch * s, 16) for s in spatial]
    cols = [s * c for s, c in zip(spatial, CHANNELS)]

    sels, bigs, shifts = [], [], []
    for layer in range(3):
        w, b, gamma, beta, mean, var = params["c%d" % (layer + 1)]
        hi, ho = spatial[layer], spatial[layer + 1]
        ci, co = CHANNELS[layer], CHANNELS[layer + 1]
        rin, rout = rows[layer], rows[layer + 1]

        scale = gamma / jnp.sqrt(var + eps)                     # (co,)
        shift = (b - mean) * scale + beta                       # (co,)
        wsc = w * scale[:, None, None, None]                    # (co, ci, 5, 5)

        # mask[kj, wi, ow] == 1  iff  wi == STRIDE*ow + kj
        kj = np.arange(KSIZE)[:, None, None]
        wi = np.arange(hi)[None, :, None]
        ow = np.arange(ho)[None, None, :]
        mask = (wi == STRIDE * ow + kj).astype(np.float32)      # (5, hi, ho)

        # big[ki, wi*ci + c, ow*co + a] = scale[a] * w[a, c, ki, wi - 2*ow]
        big = jnp.einsum("jwv,acij->iwcva", jnp.asarray(mask), wsc)
        big = big.reshape(KSIZE, hi * ci, ho * co).astype(jnp.bfloat16)

        # sel[ki, b*ho + oh, b*hi + 2*oh + ki] = 1   (only real rows selected)
        sel = np.zeros((KSIZE, rout, rin), np.float32)
        for ki in range(KSIZE):
            for bb in range(batch):
                for oh in range(ho):
                    sel[ki, bb * ho + oh, bb * hi + STRIDE * oh + ki] = 1.0
        sel = jnp.asarray(sel.reshape(KSIZE * rout, rin), jnp.bfloat16)

        shift_row = jnp.tile(shift, ho).reshape(1, ho * co).astype(jnp.float32)

        sels.append(sel)
        bigs.append(big)
        shifts.append(shift_row)

    # ----- linear head -----
    hf, cf = spatial[3], CHANNELS[3]
    rf = rows[3]
    head_w, head_b = params["head_w"], params["head_b"]
    n_act = head_w.shape[0]
    assert n_act <= N_ACT_PAD

    # Reorder columns from PyTorch's (c, h, w) flatten to the kernel's
    # per-output-row (w, c) layout: one (hf*cf, 128) matrix per final row h.
    wh = head_w.reshape(n_act, cf, hf, hf)
    wh = jnp.transpose(wh, (2, 3, 1, 0)).reshape(hf, hf * cf, n_act)
    wh = jnp.pad(wh, ((0, 0), (0, 0), (0, N_ACT_PAD - n_act)))
    wh = wh.astype(jnp.bfloat16)

    hs = np.zeros((hf, OUT_ROWS, rf), np.float32)
    for oh in range(hf):
        for bb in range(batch):
            hs[oh, bb, bb * hf + oh] = 1.0
    hs = jnp.asarray(hs, jnp.bfloat16)

    hb = jnp.pad(head_b, (0, N_ACT_PAD - n_act)).reshape(1, N_ACT_PAD)
    hb = hb.astype(jnp.float32)

    # VMEM (auto-DMA) operands first, then the HBM (manually DMA'd) weights.
    ops = (sels[0], bigs[0], shifts[0],        # layer 1 (needed immediately)
           sels[1], shifts[1], sels[2], shifts[2], hs, hb,   # tiny operands
           bigs[1], bigs[2], wh)               # large weights -> pl.ANY
    plan = dict(spatial=spatial, rows=rows, cols=cols, batch=batch,
                n_actions=n_act, hf=hf, n_ops=len(ops))
    return ops, plan


def make_dqn_forward(plan):
    spatial, rows, cols = plan["spatial"], plan["rows"], plan["cols"]
    batch, n_actions, hf = plan["batch"], plan["n_actions"], plan["hf"]

    kernel = functools.partial(_dqn_kernel,
                               rows=(rows[1], rows[2], rows[3]),
                               n_head_sel=hf)

    n_vmem_in = 1 + 9          # x + 9 small VMEM operands
    in_specs = ([pl.BlockSpec(memory_space=pltpu.MemorySpace.VMEM)] * n_vmem_in
                + [pl.BlockSpec(memory_space=pl.ANY)] * 3)
    scratch_shapes = [
        pltpu.VMEM((KSIZE, cols[1], cols[2]), jnp.bfloat16),   # big2
        pltpu.VMEM((KSIZE, cols[2], cols[3]), jnp.bfloat16),   # big3
        pltpu.VMEM((hf, cols[3], N_ACT_PAD), jnp.bfloat16),    # head weight
        pltpu.SemaphoreType.DMA((3,)),
    ]
    call = pl.pallas_call(
        kernel,
        out_shape=jax.ShapeDtypeStruct((OUT_ROWS, N_ACT_PAD), jnp.float32),
        in_specs=in_specs,
        out_specs=pl.BlockSpec(memory_space=pltpu.MemorySpace.VMEM),
        scratch_shapes=scratch_shapes,
        cost_estimate=pl.CostEstimate(flops=45_000_000, transcendentals=0,
                                      bytes_accessed=1_500_000),
    )

    @jax.jit
    def forward(x_nchw, *ops):
        # Cast to bf16 BEFORE the relayout so the transpose moves half the bytes.
        x = x_nchw.astype(jnp.bfloat16)
        x = jnp.transpose(x, (0, 2, 3, 1))                        # NCHW -> NHWC
        x = x.reshape(batch * spatial[0], spatial[0] * CHANNELS[0])
        if x.shape[0] != rows[0]:                                 # no-op here
            x = jnp.pad(x, ((0, rows[0] - x.shape[0]), (0, 0)))
        q = call(x, *ops)
        return q[:batch, :n_actions]

    return forward


# ---------------------------------------------------------------------------
# Synthetic parameters and pure-JAX reference (for correctness checking)
# ---------------------------------------------------------------------------
def init_params(key, n_actions, linear_input_size):
    def conv_params(key, cout, cin, k):
        ks = jax.random.split(key, 6)
        w = jax.random.normal(ks[0], (cout, cin, k, k), jnp.float32) * 0.05
        b = jax.random.normal(ks[1], (cout,), jnp.float32) * 0.05
        gamma = 1.0 + jax.random.normal(ks[2], (cout,), jnp.float32) * 0.05
        beta = jax.random.normal(ks[3], (cout,), jnp.float32) * 0.05
        mean = jax.random.normal(ks[4], (cout,), jnp.float32) * 0.05
        var = 1.0 + jax.random.uniform(ks[5], (cout,), jnp.float32) * 0.1
        return (w, b, gamma, beta, mean, var)

    k1, k2, k3, k4, k5 = jax.random.split(key, 5)
    return {
        "c1": conv_params(k1, 16, 4, KSIZE),
        "c2": conv_params(k2, 32, 16, KSIZE),
        "c3": conv_params(k3, 32, 32, KSIZE),
        "head_w": jax.random.normal(k4, (n_actions, linear_input_size),
                                    jnp.float32) * 0.05,
        "head_b": jax.random.normal(k5, (n_actions,), jnp.float32) * 0.05,
    }


def dqn_reference(x, params, eps=BN_EPS):
    def conv_bn_relu(x, w, b, gamma, beta, mean, var):
        y = jax.lax.conv_general_dilated(
            x, w, window_strides=(STRIDE, STRIDE), padding="VALID",
            dimension_numbers=("NCHW", "OIHW", "NCHW"))
        y = y + b[None, :, None, None]
        y = (y - mean[None, :, None, None]) * (
            gamma[None, :, None, None]
            / jnp.sqrt(var[None, :, None, None] + eps))
        y = y + beta[None, :, None, None]
        return jnp.maximum(y, 0.0)

    x = conv_bn_relu(x, *params["c1"])
    x = conv_bn_relu(x, *params["c2"])
    x = conv_bn_relu(x, *params["c3"])
    x = x.reshape(x.shape[0], -1)
    return x @ params["head_w"].T + params["head_b"]


if __name__ == "__main__":
    # 4 input channels, 40x40 spatial -> three (k=5, s=2) convs: 40->18->7->2,
    # linear_input_size = 2*2*32 = 128.  Synthetic action space: 6 actions.
    batch, c_in, height, width = 2, 4, 40, 40
    n_actions = 6
    linear_input_size = 2 * 2 * 32

    key = jax.random.PRNGKey(0)
    kx, kp = jax.random.split(key)
    x = jax.random.normal(kx, (batch, c_in, height, width), jnp.float32)
    params = init_params(kp, n_actions, linear_input_size)

    ops, plan = prepare_dqn(params, batch, height)      # one-time weight prep
    forward = make_dqn_forward(plan)

    out = jax.block_until_ready(forward(x, *ops))
    assert out.shape == (batch, n_actions), out.shape

    # Correctness check vs. a pure-JAX reference (loose tol: bf16 operands).
    ref = jax.block_until_ready(dqn_reference(x, params))
    err = float(jnp.max(jnp.abs(out - ref)))
    assert err < 0.1, f"kernel/reference mismatch: max abs err = {err}"

    print("KERNEL_OK")
</pallas_src>

<mosaic_0001>
module attributes {stable_mosaic.version = 11 : i64} {
  func.func @_dqn_kernel(%arg0: memref<80x160xbf16, #tpu.memory_space<vmem>>, %arg1: memref<240x80xbf16, #tpu.memory_space<vmem>>, %arg2: memref<5x160x288xbf16, #tpu.memory_space<vmem>>, %arg3: memref<1x288xf32, #tpu.memory_space<vmem>>, %arg4: memref<80x48xbf16, #tpu.memory_space<vmem>>, %arg5: memref<1x224xf32, #tpu.memory_space<vmem>>, %arg6: memref<80x16xbf16, #tpu.memory_space<vmem>>, %arg7: memref<1x64xf32, #tpu.memory_space<vmem>>, %arg8: memref<2x8x16xbf16, #tpu.memory_space<vmem>>, %arg9: memref<1x128xf32, #tpu.memory_space<vmem>>, %arg10: memref<5x288x224xbf16, #tpu.memory_space<any>>, %arg11: memref<5x224x64xbf16, #tpu.memory_space<any>>, %arg12: memref<2x64x128xbf16, #tpu.memory_space<any>>, %arg13: memref<8x128xf32, #tpu.memory_space<vmem>>, %arg14: memref<5x288x224xbf16, #tpu.memory_space<vmem>>, %arg15: memref<5x224x64xbf16, #tpu.memory_space<vmem>>, %arg16: memref<2x64x128xbf16, #tpu.memory_space<vmem>>, %arg17: memref<3x!tpu.dma_semaphore, #tpu.memory_space<semaphore_mem>>) attributes {dimension_semantics = [], scalar_prefetch = 0 : i64, scratch_operands = 4 : i64, tpu.core_type = #tpu.core_type<tc>} {
    %c0_i32 = arith.constant 0 : i32
    %0 = tpu.memref_slice %arg17[%c0_i32] : memref<3x!tpu.dma_semaphore, #tpu.memory_space<semaphore_mem>> -> memref<1x!tpu.dma_semaphore, #tpu.memory_space<semaphore_mem>>
    %1 = tpu.memref_squeeze %0 : memref<1x!tpu.dma_semaphore, #tpu.memory_space<semaphore_mem>> -> memref<!tpu.dma_semaphore, #tpu.memory_space<semaphore_mem>>
    tpu.enqueue_dma source(%arg10 : memref<5x288x224xbf16, #tpu.memory_space<any>>) target(%arg14 : memref<5x288x224xbf16, #tpu.memory_space<vmem>>) target_semaphore(%1 : memref<!tpu.dma_semaphore, #tpu.memory_space<semaphore_mem>>)
    %c1_i32 = arith.constant 1 : i32
    %2 = tpu.memref_slice %arg17[%c1_i32] : memref<3x!tpu.dma_semaphore, #tpu.memory_space<semaphore_mem>> -> memref<1x!tpu.dma_semaphore, #tpu.memory_space<semaphore_mem>>
    %3 = tpu.memref_squeeze %2 : memref<1x!tpu.dma_semaphore, #tpu.memory_space<semaphore_mem>> -> memref<!tpu.dma_semaphore, #tpu.memory_space<semaphore_mem>>
    tpu.enqueue_dma source(%arg11 : memref<5x224x64xbf16, #tpu.memory_space<any>>) target(%arg15 : memref<5x224x64xbf16, #tpu.memory_space<vmem>>) target_semaphore(%3 : memref<!tpu.dma_semaphore, #tpu.memory_space<semaphore_mem>>)
    %c2_i32 = arith.constant 2 : i32
    %4 = tpu.memref_slice %arg17[%c2_i32] : memref<3x!tpu.dma_semaphore, #tpu.memory_space<semaphore_mem>> -> memref<1x!tpu.dma_semaphore, #tpu.memory_space<semaphore_mem>>
    %5 = tpu.memref_squeeze %4 : memref<1x!tpu.dma_semaphore, #tpu.memory_space<semaphore_mem>> -> memref<!tpu.dma_semaphore, #tpu.memory_space<semaphore_mem>>
    tpu.enqueue_dma source(%arg12 : memref<2x64x128xbf16, #tpu.memory_space<any>>) target(%arg16 : memref<2x64x128xbf16, #tpu.memory_space<vmem>>) target_semaphore(%5 : memref<!tpu.dma_semaphore, #tpu.memory_space<semaphore_mem>>)
    %c0 = arith.constant 0 : index
    %c0_0 = arith.constant 0 : index
    %6 = vector.load %arg0[%c0, %c0_0] : memref<80x160xbf16, #tpu.memory_space<vmem>>, vector<80x160xbf16>
    %c0_1 = arith.constant 0 : index
    %c0_2 = arith.constant 0 : index
    %7 = vector.load %arg1[%c0_1, %c0_2] : memref<240x80xbf16, #tpu.memory_space<vmem>>, vector<240x80xbf16>
    %cst = arith.constant dense<0.000000e+00> : vector<240x160xf32>
    %8 = tpu.matmul %7, %6, %cst {dimension_numbers = #tpu.dot_dimension_numbers<[1], [0], [0], [1], [0, 0, 1, 1], [], []>} : vector<240x80xbf16>, vector<80x160xbf16>, vector<240x160xf32> -> vector<240x160xf32>
    %9 = arith.truncf %8 : vector<240x160xf32> to vector<240x160xbf16>
    %10 = vector.extract_strided_slice %9 {offsets = [0, 0], sizes = [48, 160], strides = [1, 1]} : vector<240x160xbf16> to vector<48x160xbf16>
    %c0_3 = arith.constant 0 : index
    %c0_4 = arith.constant 0 : index
    %c0_5 = arith.constant 0 : index
    %11 = vector.load %arg2[%c0_3, %c0_4, %c0_5] : memref<5x160x288xbf16, #tpu.memory_space<vmem>>, vector<1x160x288xbf16>
    %12 = vector.shape_cast %11 : vector<1x160x288xbf16> to vector<160x288xbf16>
    %cst_6 = arith.constant dense<0.000000e+00> : vector<48x288xf32>
    %13 = tpu.matmul %10, %12, %cst_6 {dimension_numbers = #tpu.dot_dimension_numbers<[1], [0], [0], [1], [0, 0, 1, 1], [], []>} : vector<48x160xbf16>, vector<160x288xbf16>, vector<48x288xf32> -> vector<48x288xf32>
    %14 = vector.extract_strided_slice %9 {offsets = [48, 0], sizes = [48, 160], strides = [1, 1]} : vector<240x160xbf16> to vector<48x160xbf16>
    %c1 = arith.constant 1 : index
    %c0_7 = arith.constant 0 : index
    %c0_8 = arith.constant 0 : index
    %15 = vector.load %arg2[%c1, %c0_7, %c0_8] : memref<5x160x288xbf16, #tpu.memory_space<vmem>>, vector<1x160x288xbf16>
    %16 = vector.shape_cast %15 : vector<1x160x288xbf16> to vector<160x288xbf16>
    %cst_9 = arith.constant dense<0.000000e+00> : vector<48x288xf32>
    %17 = tpu.matmul %14, %16, %cst_9 {dimension_numbers = #tpu.dot_dimension_numbers<[1], [0], [0], [1], [0, 0, 1, 1], [], []>} : vector<48x160xbf16>, vector<160x288xbf16>, vector<48x288xf32> -> vector<48x288xf32>
    %18 = arith.addf %13, %17 : vector<48x288xf32>
    %19 = vector.extract_strided_slice %9 {offsets = [96, 0], sizes = [48, 160], strides = [1, 1]} : vector<240x160xbf16> to vector<48x160xbf16>
    %c2 = arith.constant 2 : index
    %c0_10 = arith.constant 0 : index
    %c0_11 = arith.constant 0 : index
    %20 = vector.load %arg2[%c2, %c0_10, %c0_11] : memref<5x160x288xbf16, #tpu.memory_space<vmem>>, vector<1x160x288xbf16>
    %21 = vector.shape_cast %20 : vector<1x160x288xbf16> to vector<160x288xbf16>
    %cst_12 = arith.constant dense<0.000000e+00> : vector<48x288xf32>
    %22 = tpu.matmul %19, %21, %cst_12 {dimension_numbers = #tpu.dot_dimension_numbers<[1], [0], [0], [1], [0, 0, 1, 1], [], []>} : vector<48x160xbf16>, vector<160x288xbf16>, vector<48x288xf32> -> vector<48x288xf32>
    %23 = arith.addf %18, %22 : vector<48x288xf32>
    %24 = vector.extract_strided_slice %9 {offsets = [144, 0], sizes = [48, 160], strides = [1, 1]} : vector<240x160xbf16> to vector<48x160xbf16>
    %c3 = arith.constant 3 : index
    %c0_13 = arith.constant 0 : index
    %c0_14 = arith.constant 0 : index
    %25 = vector.load %arg2[%c3, %c0_13, %c0_14] : memref<5x160x288xbf16, #tpu.memory_space<vmem>>, vector<1x160x288xbf16>
    %26 = vector.shape_cast %25 : vector<1x160x288xbf16> to vector<160x288xbf16>
    %cst_15 = arith.constant dense<0.000000e+00> : vector<48x288xf32>
    %27 = tpu.matmul %24, %26, %cst_15 {dimension_numbers = #tpu.dot_dimension_numbers<[1], [0], [0], [1], [0, 0, 1, 1], [], []>} : vector<48x160xbf16>, vector<160x288xbf16>, vector<48x288xf32> -> vector<48x288xf32>
    %28 = arith.addf %23, %27 : vector<48x288xf32>
    %29 = vector.extract_strided_slice %9 {offsets = [192, 0], sizes = [48, 160], strides = [1, 1]} : vector<240x160xbf16> to vector<48x160xbf16>
    %c4 = arith.constant 4 : index
    %c0_16 = arith.constant 0 : index
    %c0_17 = arith.constant 0 : index
    %30 = vector.load %arg2[%c4, %c0_16, %c0_17] : memref<5x160x288xbf16, #tpu.memory_space<vmem>>, vector<1x160x288xbf16>
    %31 = vector.shape_cast %30 : vector<1x160x288xbf16> to vector<160x288xbf16>
    %cst_18 = arith.constant dense<0.000000e+00> : vector<48x288xf32>
    %32 = tpu.matmul %29, %31, %cst_18 {dimension_numbers = #tpu.dot_dimension_numbers<[1], [0], [0], [1], [0, 0, 1, 1], [], []>} : vector<48x160xbf16>, vector<160x288xbf16>, vector<48x288xf32> -> vector<48x288xf32>
    %33 = arith.addf %28, %32 : vector<48x288xf32>
    %c0_19 = arith.constant 0 : index
    %c0_20 = arith.constant 0 : index
    %34 = vector.load %arg3[%c0_19, %c0_20] : memref<1x288xf32, #tpu.memory_space<vmem>>, vector<1x288xf32>
    %35 = vector.broadcast %34 : vector<1x288xf32> to vector<48x288xf32>
    %36 = arith.addf %33, %35 : vector<48x288xf32>
    %cst_21 = arith.constant 0.000000e+00 : f32
    %37 = vector.broadcast %cst_21 : f32 to vector<48x288xf32>
    %38 = arith.maximumf %36, %37 : vector<48x288xf32>
    %39 = arith.truncf %38 : vector<48x288xf32> to vector<48x288xbf16>
    %c0_i32_22 = arith.constant 0 : i32
    %40 = tpu.memref_slice %arg17[%c0_i32_22] : memref<3x!tpu.dma_semaphore, #tpu.memory_space<semaphore_mem>> -> memref<1x!tpu.dma_semaphore, #tpu.memory_space<semaphore_mem>>
    %41 = tpu.memref_squeeze %40 : memref<1x!tpu.dma_semaphore, #tpu.memory_space<semaphore_mem>> -> memref<!tpu.dma_semaphore, #tpu.memory_space<semaphore_mem>>
    tpu.wait_dma2 semaphore(%41 : memref<!tpu.dma_semaphore, #tpu.memory_space<semaphore_mem>>) src(%arg10 : memref<5x288x224xbf16, #tpu.memory_space<any>>) dst(%arg14 : memref<5x288x224xbf16, #tpu.memory_space<vmem>>)
    %c0_23 = arith.constant 0 : index
    %c0_24 = arith.constant 0 : index
    %42 = vector.load %arg4[%c0_23, %c0_24] : memref<80x48xbf16, #tpu.memory_space<vmem>>, vector<80x48xbf16>
    %cst_25 = arith.constant dense<0.000000e+00> : vector<80x288xf32>
    %43 = tpu.matmul %42, %39, %cst_25 {dimension_numbers = #tpu.dot_dimension_numbers<[1], [0], [0], [1], [0, 0, 1, 1], [], []>} : vector<80x48xbf16>, vector<48x288xbf16>, vector<80x288xf32> -> vector<80x288xf32>
    %44 = arith.truncf %43 : vector<80x288xf32> to vector<80x288xbf16>
    %45 = vector.extract_strided_slice %44 {offsets = [0, 0], sizes = [16, 288], strides = [1, 1]} : vector<80x288xbf16> to vector<16x288xbf16>
    %c0_26 = arith.constant 0 : index
    %c0_27 = arith.constant 0 : index
    %c0_28 = arith.constant 0 : index
    %46 = vector.load %arg14[%c0_26, %c0_27, %c0_28] : memref<5x288x224xbf16, #tpu.memory_space<vmem>>, vector<1x288x224xbf16>
    %47 = vector.shape_cast %46 : vector<1x288x224xbf16> to vector<288x224xbf16>
    %cst_29 = arith.constant dense<0.000000e+00> : vector<16x224xf32>
    %48 = tpu.matmul %45, %47, %cst_29 {dimension_numbers = #tpu.dot_dimension_numbers<[1], [0], [0], [1], [0, 0, 1, 1], [], []>} : vector<16x288xbf16>, vector<288x224xbf16>, vector<16x224xf32> -> vector<16x224xf32>
    %49 = vector.extract_strided_slice %44 {offsets = [16, 0], sizes = [16, 288], strides = [1, 1]} : vector<80x288xbf16> to vector<16x288xbf16>
    %c1_30 = arith.constant 1 : index
    %c0_31 = arith.constant 0 : index
    %c0_32 = arith.constant 0 : index
    %50 = vector.load %arg14[%c1_30, %c0_31, %c0_32] : memref<5x288x224xbf16, #tpu.memory_space<vmem>>, vector<1x288x224xbf16>
    %51 = vector.shape_cast %50 : vector<1x288x224xbf16> to vector<288x224xbf16>
    %cst_33 = arith.constant dense<0.000000e+00> : vector<16x224xf32>
    %52 = tpu.matmul %49, %51, %cst_33 {dimension_numbers = #tpu.dot_dimension_numbers<[1], [0], [0], [1], [0, 0, 1, 1], [], []>} : vector<16x288xbf16>, vector<288x224xbf16>, vector<16x224xf32> -> vector<16x224xf32>
    %53 = arith.addf %48, %52 : vector<16x224xf32>
    %54 = vector.extract_strided_slice %44 {offsets = [32, 0], sizes = [16, 288], strides = [1, 1]} : vector<80x288xbf16> to vector<16x288xbf16>
    %c2_34 = arith.constant 2 : index
    %c0_35 = arith.constant 0 : index
    %c0_36 = arith.constant 0 : index
    %55 = vector.load %arg14[%c2_34, %c0_35, %c0_36] : memref<5x288x224xbf16, #tpu.memory_space<vmem>>, vector<1x288x224xbf16>
    %56 = vector.shape_cast %55 : vector<1x288x224xbf16> to vector<288x224xbf16>
    %cst_37 = arith.constant dense<0.000000e+00> : vector<16x224xf32>
    %57 = tpu.matmul %54, %56, %cst_37 {dimension_numbers = #tpu.dot_dimension_numbers<[1], [0], [0], [1], [0, 0, 1, 1], [], []>} : vector<16x288xbf16>, vector<288x224xbf16>, vector<16x224xf32> -> vector<16x224xf32>
    %58 = arith.addf %53, %57 : vector<16x224xf32>
    %59 = vector.extract_strided_slice %44 {offsets = [48, 0], sizes = [16, 288], strides = [1, 1]} : vector<80x288xbf16> to vector<16x288xbf16>
    %c3_38 = arith.constant 3 : index
    %c0_39 = arith.constant 0 : index
    %c0_40 = arith.constant 0 : index
    %60 = vector.load %arg14[%c3_38, %c0_39, %c0_40] : memref<5x288x224xbf16, #tpu.memory_space<vmem>>, vector<1x288x224xbf16>
    %61 = vector.shape_cast %60 : vector<1x288x224xbf16> to vector<288x224xbf16>
    %cst_41 = arith.constant dense<0.000000e+00> : vector<16x224xf32>
    %62 = tpu.matmul %59, %61, %cst_41 {dimension_numbers = #tpu.dot_dimension_numbers<[1], [0], [0], [1], [0, 0, 1, 1], [], []>} : vector<16x288xbf16>, vector<288x224xbf16>, vector<16x224xf32> -> vector<16x224xf32>
    %63 = arith.addf %58, %62 : vector<16x224xf32>
    %64 = vector.extract_strided_slice %44 {offsets = [64, 0], sizes = [16, 288], strides = [1, 1]} : vector<80x288xbf16> to vector<16x288xbf16>
    %c4_42 = arith.constant 4 : index
    %c0_43 = arith.constant 0 : index
    %c0_44 = arith.constant 0 : index
    %65 = vector.load %arg14[%c4_42, %c0_43, %c0_44] : memref<5x288x224xbf16, #tpu.memory_space<vmem>>, vector<1x288x224xbf16>
    %66 = vector.shape_cast %65 : vector<1x288x224xbf16> to vector<288x224xbf16>
    %cst_45 = arith.constant dense<0.000000e+00> : vector<16x224xf32>
    %67 = tpu.matmul %64, %66, %cst_45 {dimension_numbers = #tpu.dot_dimension_numbers<[1], [0], [0], [1], [0, 0, 1, 1], [], []>} : vector<16x288xbf16>, vector<288x224xbf16>, vector<16x224xf32> -> vector<16x224xf32>
    %68 = arith.addf %63, %67 : vector<16x224xf32>
    %c0_46 = arith.constant 0 : index
    %c0_47 = arith.constant 0 : index
    %69 = vector.load %arg5[%c0_46, %c0_47] : memref<1x224xf32, #tpu.memory_space<vmem>>, vector<1x224xf32>
    %70 = vector.broadcast %69 : vector<1x224xf32> to vector<16x224xf32>
    %71 = arith.addf %68, %70 : vector<16x224xf32>
    %cst_48 = arith.constant 0.000000e+00 : f32
    %72 = vector.broadcast %cst_48 : f32 to vector<16x224xf32>
    %73 = arith.maximumf %71, %72 : vector<16x224xf32>
    %74 = arith.truncf %73 : vector<16x224xf32> to vector<16x224xbf16>
    %c1_i32_49 = arith.constant 1 : i32
    %75 = tpu.memref_slice %arg17[%c1_i32_49] : memref<3x!tpu.dma_semaphore, #tpu.memory_space<semaphore_mem>> -> memref<1x!tpu.dma_semaphore, #tpu.memory_space<semaphore_mem>>
    %76 = tpu.memref_squeeze %75 : memref<1x!tpu.dma_semaphore, #tpu.memory_space<semaphore_mem>> -> memref<!tpu.dma_semaphore, #tpu.memory_space<semaphore_mem>>
    tpu.wait_dma2 semaphore(%76 : memref<!tpu.dma_semaphore, #tpu.memory_space<semaphore_mem>>) src(%arg11 : memref<5x224x64xbf16, #tpu.memory_space<any>>) dst(%arg15 : memref<5x224x64xbf16, #tpu.memory_space<vmem>>)
    %c0_50 = arith.constant 0 : index
    %c0_51 = arith.constant 0 : index
    %77 = vector.load %arg6[%c0_50, %c0_51] : memref<80x16xbf16, #tpu.memory_space<vmem>>, vector<80x16xbf16>
    %cst_52 = arith.constant dense<0.000000e+00> : vector<80x224xf32>
    %78 = tpu.matmul %77, %74, %cst_52 {dimension_numbers = #tpu.dot_dimension_numbers<[1], [0], [0], [1], [0, 0, 1, 1], [], []>} : vector<80x16xbf16>, vector<16x224xbf16>, vector<80x224xf32> -> vector<80x224xf32>
    %79 = arith.truncf %78 : vector<80x224xf32> to vector<80x224xbf16>
    %80 = vector.extract_strided_slice %79 {offsets = [0, 0], sizes = [16, 224], strides = [1, 1]} : vector<80x224xbf16> to vector<16x224xbf16>
    %c0_53 = arith.constant 0 : index
    %c0_54 = arith.constant 0 : index
    %c0_55 = arith.constant 0 : index
    %81 = vector.load %arg15[%c0_53, %c0_54, %c0_55] : memref<5x224x64xbf16, #tpu.memory_space<vmem>>, vector<1x224x64xbf16>
    %82 = vector.shape_cast %81 : vector<1x224x64xbf16> to vector<224x64xbf16>
    %cst_56 = arith.constant dense<0.000000e+00> : vector<16x64xf32>
    %83 = tpu.matmul %80, %82, %cst_56 {dimension_numbers = #tpu.dot_dimension_numbers<[1], [0], [0], [1], [0, 0, 1, 1], [], []>} : vector<16x224xbf16>, vector<224x64xbf16>, vector<16x64xf32> -> vector<16x64xf32>
    %84 = vector.extract_strided_slice %79 {offsets = [16, 0], sizes = [16, 224], strides = [1, 1]} : vector<80x224xbf16> to vector<16x224xbf16>
    %c1_57 = arith.constant 1 : index
    %c0_58 = arith.constant 0 : index
    %c0_59 = arith.constant 0 : index
    %85 = vector.load %arg15[%c1_57, %c0_58, %c0_59] : memref<5x224x64xbf16, #tpu.memory_space<vmem>>, vector<1x224x64xbf16>
    %86 = vector.shape_cast %85 : vector<1x224x64xbf16> to vector<224x64xbf16>
    %cst_60 = arith.constant dense<0.000000e+00> : vector<16x64xf32>
    %87 = tpu.matmul %84, %86, %cst_60 {dimension_numbers = #tpu.dot_dimension_numbers<[1], [0], [0], [1], [0, 0, 1, 1], [], []>} : vector<16x224xbf16>, vector<224x64xbf16>, vector<16x64xf32> -> vector<16x64xf32>
    %88 = arith.addf %83, %87 : vector<16x64xf32>
    %89 = vector.extract_strided_slice %79 {offsets = [32, 0], sizes = [16, 224], strides = [1, 1]} : vector<80x224xbf16> to vector<16x224xbf16>
    %c2_61 = arith.constant 2 : index
    %c0_62 = arith.constant 0 : index
    %c0_63 = arith.constant 0 : index
    %90 = vector.load %arg15[%c2_61, %c0_62, %c0_63] : memref<5x224x64xbf16, #tpu.memory_space<vmem>>, vector<1x224x64xbf16>
    %91 = vector.shape_cast %90 : vector<1x224x64xbf16> to vector<224x64xbf16>
    %cst_64 = arith.constant dense<0.000000e+00> : vector<16x64xf32>
    %92 = tpu.matmul %89, %91, %cst_64 {dimension_numbers = #tpu.dot_dimension_numbers<[1], [0], [0], [1], [0, 0, 1, 1], [], []>} : vector<16x224xbf16>, vector<224x64xbf16>, vector<16x64xf32> -> vector<16x64xf32>
    %93 = arith.addf %88, %92 : vector<16x64xf32>
    %94 = vector.extract_strided_slice %79 {offsets = [48, 0], sizes = [16, 224], strides = [1, 1]} : vector<80x224xbf16> to vector<16x224xbf16>
    %c3_65 = arith.constant 3 : index
    %c0_66 = arith.constant 0 : index
    %c0_67 = arith.constant 0 : index
    %95 = vector.load %arg15[%c3_65, %c0_66, %c0_67] : memref<5x224x64xbf16, #tpu.memory_space<vmem>>, vector<1x224x64xbf16>
    %96 = vector.shape_cast %95 : vector<1x224x64xbf16> to vector<224x64xbf16>
    %cst_68 = arith.constant dense<0.000000e+00> : vector<16x64xf32>
    %97 = tpu.matmul %94, %96, %cst_68 {dimension_numbers = #tpu.dot_dimension_numbers<[1], [0], [0], [1], [0, 0, 1, 1], [], []>} : vector<16x224xbf16>, vector<224x64xbf16>, vector<16x64xf32> -> vector<16x64xf32>
    %98 = arith.addf %93, %97 : vector<16x64xf32>
    %99 = vector.extract_strided_slice %79 {offsets = [64, 0], sizes = [16, 224], strides = [1, 1]} : vector<80x224xbf16> to vector<16x224xbf16>
    %c4_69 = arith.constant 4 : index
    %c0_70 = arith.constant 0 : index
    %c0_71 = arith.constant 0 : index
    %100 = vector.load %arg15[%c4_69, %c0_70, %c0_71] : memref<5x224x64xbf16, #tpu.memory_space<vmem>>, vector<1x224x64xbf16>
    %101 = vector.shape_cast %100 : vector<1x224x64xbf16> to vector<224x64xbf16>
    %cst_72 = arith.constant dense<0.000000e+00> : vector<16x64xf32>
    %102 = tpu.matmul %99, %101, %cst_72 {dimension_numbers = #tpu.dot_dimension_numbers<[1], [0], [0], [1], [0, 0, 1, 1], [], []>} : vector<16x224xbf16>, vector<224x64xbf16>, vector<16x64xf32> -> vector<16x64xf32>
    %103 = arith.addf %98, %102 : vector<16x64xf32>
    %c0_73 = arith.constant 0 : index
    %c0_74 = arith.constant 0 : index
    %104 = vector.load %arg7[%c0_73, %c0_74] : memref<1x64xf32, #tpu.memory_space<vmem>>, vector<1x64xf32>
    %105 = vector.broadcast %104 : vector<1x64xf32> to vector<16x64xf32>
    %106 = arith.addf %103, %105 : vector<16x64xf32>
    %cst_75 = arith.constant 0.000000e+00 : f32
    %107 = vector.broadcast %cst_75 : f32 to vector<16x64xf32>
    %108 = arith.maximumf %106, %107 : vector<16x64xf32>
    %109 = arith.truncf %108 : vector<16x64xf32> to vector<16x64xbf16>
    %c2_i32_76 = arith.constant 2 : i32
    %110 = tpu.memref_slice %arg17[%c2_i32_76] : memref<3x!tpu.dma_semaphore, #tpu.memory_space<semaphore_mem>> -> memref<1x!tpu.dma_semaphore, #tpu.memory_space<semaphore_mem>>
    %111 = tpu.memref_squeeze %110 : memref<1x!tpu.dma_semaphore, #tpu.memory_space<semaphore_mem>> -> memref<!tpu.dma_semaphore, #tpu.memory_space<semaphore_mem>>
    tpu.wait_dma2 semaphore(%111 : memref<!tpu.dma_semaphore, #tpu.memory_space<semaphore_mem>>) src(%arg12 : memref<2x64x128xbf16, #tpu.memory_space<any>>) dst(%arg16 : memref<2x64x128xbf16, #tpu.memory_space<vmem>>)
    %c0_77 = arith.constant 0 : index
    %c0_78 = arith.constant 0 : index
    %112 = vector.load %arg9[%c0_77, %c0_78] : memref<1x128xf32, #tpu.memory_space<vmem>>, vector<1x128xf32>
    %c0_79 = arith.constant 0 : index
    %c0_80 = arith.constant 0 : index
    %c0_81 = arith.constant 0 : index
    %113 = vector.load %arg8[%c0_79, %c0_80, %c0_81] : memref<2x8x16xbf16, #tpu.memory_space<vmem>>, vector<1x8x16xbf16>
    %114 = vector.shape_cast %113 : vector<1x8x16xbf16> to vector<8x16xbf16>
    %cst_82 = arith.constant dense<0.000000e+00> : vector<8x64xf32>
    %115 = tpu.matmul %114, %109, %cst_82 {dimension_numbers = #tpu.dot_dimension_numbers<[1], [0], [0], [1], [0, 0, 1, 1], [], []>} : vector<8x16xbf16>, vector<16x64xbf16>, vector<8x64xf32> -> vector<8x64xf32>
    %116 = arith.truncf %115 : vector<8x64xf32> to vector<8x64xbf16>
    %c0_83 = arith.constant 0 : index
    %c0_84 = arith.constant 0 : index
    %c0_85 = arith.constant 0 : index
    %117 = vector.load %arg16[%c0_83, %c0_84, %c0_85] : memref<2x64x128xbf16, #tpu.memory_space<vmem>>, vector<1x64x128xbf16>
    %118 = vector.shape_cast %117 : vector<1x64x128xbf16> to vector<64x128xbf16>
    %cst_86 = arith.constant dense<0.000000e+00> : vector<8x128xf32>
    %119 = tpu.matmul %116, %118, %cst_86 {dimension_numbers = #tpu.dot_dimension_numbers<[1], [0], [0], [1], [0, 0, 1, 1], [], []>} : vector<8x64xbf16>, vector<64x128xbf16>, vector<8x128xf32> -> vector<8x128xf32>
    %120 = vector.broadcast %112 : vector<1x128xf32> to vector<8x128xf32>
    %121 = arith.addf %120, %119 : vector<8x128xf32>
    %c1_87 = arith.constant 1 : index
    %c0_88 = arith.constant 0 : index
    %c0_89 = arith.constant 0 : index
    %122 = vector.load %arg8[%c1_87, %c0_88, %c0_89] : memref<2x8x16xbf16, #tpu.memory_space<vmem>>, vector<1x8x16xbf16>
    %123 = vector.shape_cast %122 : vector<1x8x16xbf16> to vector<8x16xbf16>
    %cst_90 = arith.constant dense<0.000000e+00> : vector<8x64xf32>
    %124 = tpu.matmul %123, %109, %cst_90 {dimension_numbers = #tpu.dot_dimension_numbers<[1], [0], [0], [1], [0, 0, 1, 1], [], []>} : vector<8x16xbf16>, vector<16x64xbf16>, vector<8x64xf32> -> vector<8x64xf32>
    %125 = arith.truncf %124 : vector<8x64xf32> to vector<8x64xbf16>
    %c1_91 = arith.constant 1 : index
    %c0_92 = arith.constant 0 : index
    %c0_93 = arith.constant 0 : index
    %126 = vector.load %arg16[%c1_91, %c0_92, %c0_93] : memref<2x64x128xbf16, #tpu.memory_space<vmem>>, vector<1x64x128xbf16>
    %127 = vector.shape_cast %126 : vector<1x64x128xbf16> to vector<64x128xbf16>
    %cst_94 = arith.constant dense<0.000000e+00> : vector<8x128xf32>
    %128 = tpu.matmul %125, %127, %cst_94 {dimension_numbers = #tpu.dot_dimension_numbers<[1], [0], [0], [1], [0, 0, 1, 1], [], []>} : vector<8x64xbf16>, vector<64x128xbf16>, vector<8x128xf32> -> vector<8x128xf32>
    %129 = arith.addf %121, %128 : vector<8x128xf32>
    %c0_95 = arith.constant 0 : index
    %c0_96 = arith.constant 0 : index
    %130 = vector.load %arg13[%c0_95, %c0_96] : memref<8x128xf32, #tpu.memory_space<vmem>>, vector<8x128xf32>
    tpu.vector_store %arg13[%c0_95, %c0_96], %129 {strides = array<i32>} : memref<8x128xf32, #tpu.memory_space<vmem>>, vector<8x128xf32>,
    return
  }
}

</mosaic_0001>

<llo_original>
// kernel: forward.1
$region0: #{forward.1}
  #allocation0 [shape = 'u32[]', space=smem, size = 0x4, offset = 0x4, fixed_abs, tag = 'smem constant byte address 0x4 - core index']
  #allocation1 [shape = 'u32[72,128]{1,0:T(1,128)}', space=vmem, size = 0x9000, scoped, tag = 'internal scratch']
  #allocation2 [shape = 'bf16[5,288,224]{2,1,0:T(8,128)(2,1)}', space=vmem, size = 0xb4000, scoped, tag = 'scratch operand']
  #allocation3 [shape = 'bf16[5,224,64]{2,1,0:T(8,128)(2,1)}', space=vmem, size = 0x46000, scoped, tag = 'scratch operand']
  #allocation4 [shape = 'bf16[2,64,128]{2,1,0:T(8,128)(2,1)}', space=vmem, size = 0x8000, scoped, tag = 'scratch operand']
  #allocation5 [shape = 's32[3]{0}', space=sflag, size = 0xc, scoped, tag = 'scratch operand']
  #allocation8 [shape = 's32[]', space=sflag, size = 0x4, offset = 0, fixed_abs, tag = 'sflag constant byte address 0x0 - dummy sync flag']
  #allocation9 [shape = 's32[]', space=sflag, size = 0x4, offset = 0, fixed_abs, tag = 'sflag constant byte address 0x0 - dummy sync flag']
  #allocation10 [shape = 's32[]', space=sflag, size = 0x4, offset = 0, fixed_abs, tag = 'sflag constant byte address 0x0 - dummy sync flag']
  %s0 = inlined_call_operand.vmem [shape: bf16[80,160], index: 0, kind: input, shape index: {}]
  %s1 = inlined_call_operand.vmem [shape: bf16[240,80], index: 1, kind: input, shape index: {}]
  %s2 = inlined_call_operand.hbm [shape: bf16[5,160,288], index: 2, kind: input, shape index: {}]
  %s3 = inlined_call_operand.vmem [shape: f32[1,288], index: 3, kind: input, shape index: {}]
  %s4 = inlined_call_operand.vmem [shape: bf16[80,48], index: 4, kind: input, shape index: {}]
  %s5 = inlined_call_operand.vmem [shape: f32[1,224], index: 5, kind: input, shape index: {}]
  %s6 = inlined_call_operand.vmem [shape: bf16[80,16], index: 6, kind: input, shape index: {}]
  %s7 = inlined_call_operand.vmem [shape: f32[1,64], index: 7, kind: input, shape index: {}]
  %s8 = inlined_call_operand.vmem [shape: bf16[2,8,16], index: 8, kind: input, shape index: {}]
  %s9 = inlined_call_operand.vmem [shape: f32[1,128], index: 9, kind: input, shape index: {}]
  %s10 = inlined_call_operand.vmem [shape: bf16[5,288,224], index: 10, kind: input, shape index: {}]
  %s11 = inlined_call_operand.vmem [shape: bf16[5,224,64], index: 11, kind: input, shape index: {}]
  %s12 = inlined_call_operand.vmem [shape: bf16[2,64,128], index: 12, kind: input, shape index: {}]
  %s13 = inlined_call_operand.vmem [shape: f32[8,128], index: 13, kind: output, shape index: {}]
  %s14 = sld [smem:[#allocation0]]
  $region111: #{forward.1} parent=0
    _
  %s16 = ssub.s32 1, %s14
  %s17 = scalar_select 0, %s16, %s14
  $region1: #{forward.1} parent=0
    #allocation6 [shape = 'u8[614400]{0}', space=vmem, size = 0x96000, scoped, tag = 'input window, operand 2, single buffered']
    #allocation7 [shape = 's32[1]{0}', space=sflag, size = 0x4, scoped, tag = 'scoped memory for forward.1']
    %18 = vsyncpa [#allocation7], 0
    // Predicated region
    $region2: #{forward.1} parent=1 // pred_check
      _
    $region3: #{forward.1} parent=1 // pred_check_branch
      %20 = sbr.rel (0) target = $region5
    $region4: #{forward.1} parent=1 // pred_region
      _
    $region5: #{forward.1} parent=1 // pred_fallthru
      _
    // Predicated region
    $region6: #{forward.1} parent=1 // pred_check
      _
    $region7: #{forward.1} parent=1 // pred_check_branch
      %22 = sbr.rel (0) target = $region9
    $region8: #{forward.1} parent=1 // pred_region
      _
    $region9: #{forward.1} parent=1 // pred_fallthru
      _
    // Predicated region
    $region10: #{forward.1} parent=1 // pred_check
      _
    $region11: #{forward.1} parent=1 // pred_check_branch
      %24 = sbr.rel (0) target = $region13
    $region12: #{forward.1} parent=1 // pred_region
      %26 = vsyncadd [#allocation7], 0
      %s27 = sshll.u32 %s2, 4
      %s28 = int_to_ptr.hbm [resolvable:$true] %s27
      %s29 = sshll.u32 [#allocation6], 4
      %s30 = int_to_ptr.vmem [resolvable:$true] %s29
      %35 = dma.hbm_to_vmem [thread:$0]  %s28, 19200, %s30, [#allocation7], 192, 192, 12
    $region13: #{forward.1} parent=1 // pred_fallthru
      _
    // Predicated region
    $region14: #{forward.1} parent=1 // pred_check
      _
    $region15: #{forward.1} parent=1 // pred_check_branch
      %37 = sbr.rel (0) target = $region17
    $region16: #{forward.1} parent=1 // pred_region
      _
    $region17: #{forward.1} parent=1 // pred_fallthru
      _
    // Predicated region
    $region18: #{forward.1} parent=1 // pred_check
      _
    $region19: #{forward.1} parent=1 // pred_check_branch
      %39 = sbr.rel (0) target = $region21
    $region20: #{forward.1} parent=1 // pred_region
      _
    $region21: #{forward.1} parent=1 // pred_fallthru
      _
    // Predicated region
    $region22: #{forward.1} parent=1 // pred_check
      _
    $region23: #{forward.1} parent=1 // pred_check_branch
      %41 = sbr.rel (0) target = $region25
    $region24: #{forward.1} parent=1 // pred_region
      _
    $region25: #{forward.1} parent=1 // pred_fallthru
      _
    // Predicated region
    $region26: #{forward.1} parent=1 // pred_check
      _
    $region27: #{forward.1} parent=1 // pred_check_branch
      %43 = sbr.rel (0) target = $region29
    $region28: #{forward.1} parent=1 // pred_region
      _
    $region29: #{forward.1} parent=1 // pred_fallthru
      _
    // Predicated region
    $region30: #{forward.1} parent=1 // pred_check
      _
    $region31: #{forward.1} parent=1 // pred_check_branch
      %45 = sbr.rel (0) target = $region33
    $region32: #{forward.1} parent=1 // pred_region
      _
    $region33: #{forward.1} parent=1 // pred_fallthru
      _
    // Predicated region
    $region34: #{forward.1} parent=1 // pred_check
      _
    $region35: #{forward.1} parent=1 // pred_check_branch
      %47 = sbr.rel (0) target = $region37
    $region36: #{forward.1} parent=1 // pred_region
      _
    $region37: #{forward.1} parent=1 // pred_fallthru
      _
    // Predicated region
    $region38: #{forward.1} parent=1 // pred_check
      _
    $region39: #{forward.1} parent=1 // pred_check_branch
      %49 = sbr.rel (0) target = $region41
    $region40: #{forward.1} parent=1 // pred_region
      _
    $region41: #{forward.1} parent=1 // pred_fallthru
      _
    // Predicated region
    $region42: #{forward.1} parent=1 // pred_check
      _
    $region43: #{forward.1} parent=1 // pred_check_branch
      %51 = sbr.rel (0) target = $region45
    $region44: #{forward.1} parent=1 // pred_region
      %53 = dma.done [#allocation7], 19200
    $region45: #{forward.1} parent=1 // pred_fallthru
      _
    // Predicated region
    $region46: #{forward.1} parent=1 // pred_check
      _
    $region47: #{forward.1} parent=1 // pred_check_branch
      %56 = sbr.rel (0) target = $region49
    $region48: #{forward.1} parent=1 // pred_region
      loop: start=0, step=1, limit=1
      $region50: #{forward.1} parent=48 // loop_pre_header
        _
      $region51: #{forward.1} parent=48 // loop_header
        %s58 = sphi 0, %s62
        %p59 = scmp.ge.s32.totalorder %s58, 1
        %s63 = sphi %s10, %s10
        %s64 = sphi [#allocation2], [#allocation2]
      $region52: #{forward.1} parent=48 // loop_header_branch
        %61 = sbr.rel (%p59) target = $region56
      $region53: #{forward.1} parent=48 // loop_body
        %v65 = vld [vmem:[%s63] sm:$0xff]
        %66 = vst [vmem:[%s64] sm:$0xff] %v65
        %v67 = vld [vmem:[%s63 + $0x8] sm:$0xff]
        %68 = vst [vmem:[%s64 + $0x8] sm:$0xff] %v67
        %v69 = vld [vmem:[%s63 + $0x10] sm:$0xff]
        %70 = vst [vmem:[%s64 + $0x10] sm:$0xff] %v69
        %v71 = vld [vmem:[%s63 + $0x18] sm:$0xff]
        %72 = vst [vmem:[%s64 + $0x18] sm:$0xff] %v71
        %v73 = vld [vmem:[%s63 + $0x20] sm:$0xff]
        %74 = vst [vmem:[%s64 + $0x20] sm:$0xff] %v73
        %v75 = vld [vmem:[%s63 + $0x28] sm:$0xff]
        %76 = vst [vmem:[%s64 + $0x28] sm:$0xff] %v75
        %v77 = vld [vmem:[%s63 + $0x30] sm:$0xff]
        %78 = vst [vmem:[%s64 + $0x30] sm:$0xff] %v77
        %v79 = vld [vmem:[%s63 + $0x38] sm:$0xff]
        %80 = vst [vmem:[%s64 + $0x38] sm:$0xff] %v79
        %v81 = vld [vmem:[%s63 + $0x40] sm:$0xff]
        %82 = vst [vmem:[%s64 + $0x40] sm:$0xff] %v81
        %v83 = vld [vmem:[%s63 + $0x48] sm:$0xff]
        %84 = vst [vmem:[%s64 + $0x48] sm:$0xff] %v83
        %v85 = vld [vmem:[%s63 + $0x50] sm:$0xff]
        %86 = vst [vmem:[%s64 + $0x50] sm:$0xff] %v85
        %v87 = vld [vmem:[%s63 + $0x58] sm:$0xff]
        %88 = vst [vmem:[%s64 + $0x58] sm:$0xff] %v87
        %v89 = vld [vmem:[%s63 + $0x60] sm:$0xff]
        %90 = vst [vmem:[%s64 + $0x60] sm:$0xff] %v89
        %v91 = vld [vmem:[%s63 + $0x68] sm:$0xff]
        %92 = vst [vmem:[%s64 + $0x68] sm:$0xff] %v91
        %v93 = vld [vmem:[%s63 + $0x70] sm:$0xff]
        %94 = vst [vmem:[%s64 + $0x70] sm:$0xff] %v93
        %v95 = vld [vmem:[%s63 + $0x78] sm:$0xff]
        %96 = vst [vmem:[%s64 + $0x78] sm:$0xff] %v95
        %v97 = vld [vmem:[%s63 + $0x80] sm:$0xff]
        %98 = vst [vmem:[%s64 + $0x80] sm:$0xff] %v97
        %v99 = vld [vmem:[%s63 + $0x88] sm:$0xff]
        %100 = vst [vmem:[%s64 + $0x88] sm:$0xff] %v99
        %v101 = vld [vmem:[%s63 + $0x90] sm:$0xff]
        %102 = vst [vmem:[%s64 + $0x90] sm:$0xff] %v101
        %v103 = vld [vmem:[%s63 + $0x98] sm:$0xff]
        %104 = vst [vmem:[%s64 + $0x98] sm:$0xff] %v103
        %v105 = vld [vmem:[%s63 + $0xa0] sm:$0xff]
        %106 = vst [vmem:[%s64 + $0xa0] sm:$0xff] %v105
        %v107 = vld [vmem:[%s63 + $0xa8] sm:$0xff]
        %108 = vst [vmem:[%s64 + $0xa8] sm:$0xff] %v107
        %v109 = vld [vmem:[%s63 + $0xb0] sm:$0xff]
        %110 = vst [vmem:[%s64 + $0xb0] sm:$0xff] %v109
        %v111 = vld [vmem:[%s63 + $0xb8] sm:$0xff]
        %112 = vst [vmem:[%s64 + $0xb8] sm:$0xff] %v111
        %v113 = vld [vmem:[%s63 + $0xc0] sm:$0xff]
        %114 = vst [vmem:[%s64 + $0xc0] sm:$0xff] %v113
        %v115 = vld [vmem:[%s63 + $0xc8] sm:$0xff]
        %116 = vst [vmem:[%s64 + $0xc8] sm:$0xff] %v115
        %v117 = vld [vmem:[%s63 + $0xd0] sm:$0xff]
        %118 = vst [vmem:[%s64 + $0xd0] sm:$0xff] %v117
        %v119 = vld [vmem:[%s63 + $0xd8] sm:$0xff]
        %120 = vst [vmem:[%s64 + $0xd8] sm:$0xff] %v119
        %v121 = vld [vmem:[%s63 + $0xe0] sm:$0xff]
        %122 = vst [vmem:[%s64 + $0xe0] sm:$0xff] %v121
        %v123 = vld [vmem:[%s63 + $0xe8] sm:$0xff]
        %124 = vst [vmem:[%s64 + $0xe8] sm:$0xff] %v123
        %v125 = vld [vmem:[%s63 + $0xf0] sm:$0xff]
        %126 = vst [vmem:[%s64 + $0xf0] sm:$0xff] %v125
        %v127 = vld [vmem:[%s63 + $0xf8] sm:$0xff]
        %128 = vst [vmem:[%s64 + $0xf8] sm:$0xff] %v127
        %v129 = vld [vmem:[%s63 + $0x100] sm:$0xff]
        %130 = vst [vmem:[%s64 + $0x100] sm:$0xff] %v129
        %v131 = vld [vmem:[%s63 + $0x108] sm:$0xff]
        %132 = vst [vmem:[%s64 + $0x108] sm:$0xff] %v131
        %v133 = vld [vmem:[%s63 + $0x110] sm:$0xff]
        %134 = vst [vmem:[%s64 + $0x110] sm:$0xff] %v133
        %v135 = vld [vmem:[%s63 + $0x118] sm:$0xff]
        %136 = vst [vmem:[%s64 + $0x118] sm:$0xff] %v135
        %v137 = vld [vmem:[%s63 + $0x120] sm:$0xff]
        %138 = vst [vmem:[%s64 + $0x120] sm:$0xff] %v137
        %v139 = vld [vmem:[%s63 + $0x128] sm:$0xff]
        %140 = vst [vmem:[%s64 + $0x128] sm:$0xff] %v139
        %v141 = vld [vmem:[%s63 + $0x130] sm:$0xff]
        %142 = vst [vmem:[%s64 + $0x130] sm:$0xff] %v141
        %v143 = vld [vmem:[%s63 + $0x138] sm:$0xff]
        %144 = vst [vmem:[%s64 + $0x138] sm:$0xff] %v143
        %v145 = vld [vmem:[%s63 + $0x140] sm:$0xff]
        %146 = vst [vmem:[%s64 + $0x140] sm:$0xff] %v145
        %v147 = vld [vmem:[%s63 + $0x148] sm:$0xff]
        %148 = vst [vmem:[%s64 + $0x148] sm:$0xff] %v147
        %v149 = vld [vmem:[%s63 + $0x150] sm:$0xff]
        %150 = vst [vmem:[%s64 + $0x150] sm:$0xff] %v149
        %v151 = vld [vmem:[%s63 + $0x158] sm:$0xff]
        %152 = vst [vmem:[%s64 + $0x158] sm:$0xff] %v151
        %v153 = vld [vmem:[%s63 + $0x160] sm:$0xff]
        %154 = vst [vmem:[%s64 + $0x160] sm:$0xff] %v153
        %v155 = vld [vmem:[%s63 + $0x168] sm:$0xff]
        %156 = vst [vmem:[%s64 + $0x168] sm:$0xff] %v155
        %v157 = vld [vmem:[%s63 + $0x170] sm:$0xff]
        %158 = vst [vmem:[%s64 + $0x170] sm:$0xff] %v157
        %v159 = vld [vmem:[%s63 + $0x178] sm:$0xff]
        %160 = vst [vmem:[%s64 + $0x178] sm:$0xff] %v159
        %v161 = vld [vmem:[%s63 + $0x180] sm:$0xff]
        %162 = vst [vmem:[%s64 + $0x180] sm:$0xff] %v161
        %v163 = vld [vmem:[%s63 + $0x188] sm:$0xff]
        %164 = vst [vmem:[%s64 + $0x188] sm:$0xff] %v163
        %v165 = vld [vmem:[%s63 + $0x190] sm:$0xff]
        %166 = vst [vmem:[%s64 + $0x190] sm:$0xff] %v165
        %v167 = vld [vmem:[%s63 + $0x198] sm:$0xff]
        %168 = vst [vmem:[%s64 + $0x198] sm:$0xff] %v167
        %v169 = vld [vmem:[%s63 + $0x1a0] sm:$0xff]
        %170 = vst [vmem:[%s64 + $0x1a0] sm:$0xff] %v169
        %v171 = vld [vmem:[%s63 + $0x1a8] sm:$0xff]
        %172 = vst [vmem:[%s64 + $0x1a8] sm:$0xff] %v171
        %v173 = vld [vmem:[%s63 + $0x1b0] sm:$0xff]
        %174 = vst [vmem:[%s64 + $0x1b0] sm:$0xff] %v173
        %v175 = vld [vmem:[%s63 + $0x1b8] sm:$0xff]
        %176 = vst [vmem:[%s64 + $0x1b8] sm:$0xff] %v175
        %v177 = vld [vmem:[%s63 + $0x1c0] sm:$0xff]
        %178 = vst [vmem:[%s64 + $0x1c0] sm:$0xff] %v177
        %v179 = vld [vmem:[%s63 + $0x1c8] sm:$0xff]
        %180 = vst [vmem:[%s64 + $0x1c8] sm:$0xff] %v179
        %v181 = vld [vmem:[%s63 + $0x1d0] sm:$0xff]
        %182 = vst [vmem:[%s64 + $0x1d0] sm:$0xff] %v181
        %v183 = vld [vmem:[%s63 + $0x1d8] sm:$0xff]
        %184 = vst [vmem:[%s64 + $0x1d8] sm:$0xff] %v183
        %v185 = vld [vmem:[%s63 + $0x1e0] sm:$0xff]
        %186 = vst [vmem:[%s64 + $0x1e0] sm:$0xff] %v185
        %v187 = vld [vmem:[%s63 + $0x1e8] sm:$0xff]
        %188 = vst [vmem:[%s64 + $0x1e8] sm:$0xff] %v187
        %v189 = vld [vmem:[%s63 + $0x1f0] sm:$0xff]
        %190 = vst [vmem:[%s64 + $0x1f0] sm:$0xff] %v189
        %v191 = vld [vmem:[%s63 + $0x1f8] sm:$0xff]
        %192 = vst [vmem:[%s64 + $0x1f8] sm:$0xff] %v191
        %v193 = vld [vmem:[%s63 + $0x200] sm:$0xff]
        %194 = vst [vmem:[%s64 + $0x200] sm:$0xff] %v193
        %v195 = vld [vmem:[%s63 + $0x208] sm:$0xff]
        %196 = vst [vmem:[%s64 + $0x208] sm:$0xff] %v195
        %v197 = vld [vmem:[%s63 + $0x210] sm:$0xff]
        %198 = vst [vmem:[%s64 + $0x210] sm:$0xff] %v197
        %v199 = vld [vmem:[%s63 + $0x218] sm:$0xff]
        %200 = vst [vmem:[%s64 + $0x218] sm:$0xff] %v199
        %v201 = vld [vmem:[%s63 + $0x220] sm:$0xff]
        %202 = vst [vmem:[%s64 + $0x220] sm:$0xff] %v201
        %v203 = vld [vmem:[%s63 + $0x228] sm:$0xff]
        %204 = vst [vmem:[%s64 + $0x228] sm:$0xff] %v203
        %v205 = vld [vmem:[%s63 + $0x230] sm:$0xff]
        %206 = vst [vmem:[%s64 + $0x230] sm:$0xff] %v205
        %v207 = vld [vmem:[%s63 + $0x238] sm:$0xff]
        %208 = vst [vmem:[%s64 + $0x238] sm:$0xff] %v207
        %v209 = vld [vmem:[%s63 + $0x240] sm:$0xff]
        %210 = vst [vmem:[%s64 + $0x240] sm:$0xff] %v209
        %v211 = vld [vmem:[%s63 + $0x248] sm:$0xff]
        %212 = vst [vmem:[%s64 + $0x248] sm:$0xff] %v211
        %v213 = vld [vmem:[%s63 + $0x250] sm:$0xff]
        %214 = vst [vmem:[%s64 + $0x250] sm:$0xff] %v213
        %v215 = vld [vmem:[%s63 + $0x258] sm:$0xff]
        %216 = vst [vmem:[%s64 + $0x258] sm:$0xff] %v215
        %v217 = vld [vmem:[%s63 + $0x260] sm:$0xff]
        %218 = vst [vmem:[%s64 + $0x260] sm:$0xff] %v217
        %v219 = vld [vmem:[%s63 + $0x268] sm:$0xff]
        %220 = vst [vmem:[%s64 + $0x268] sm:$0xff] %v219
        %v221 = vld [vmem:[%s63 + $0x270] sm:$0xff]
        %222 = vst [vmem:[%s64 + $0x270] sm:$0xff] %v221
        %v223 = vld [vmem:[%s63 + $0x278] sm:$0xff]
        %224 = vst [vmem:[%s64 + $0x278] sm:$0xff] %v223
        %v225 = vld [vmem:[%s63 + $0x280] sm:$0xff]
        %226 = vst [vmem:[%s64 + $0x280] sm:$0xff] %v225
        %v227 = vld [vmem:[%s63 + $0x288] sm:$0xff]
        %228 = vst [vmem:[%s64 + $0x288] sm:$0xff] %v227
        %v229 = vld [vmem:[%s63 + $0x290] sm:$0xff]
        %230 = vst [vmem:[%s64 + $0x290] sm:$0xff] %v229
        %v231 = vld [vmem:[%s63 + $0x298] sm:$0xff]
        %232 = vst [vmem:[%s64 + $0x298] sm:$0xff] %v231
        %v233 = vld [vmem:[%s63 + $0x2a0] sm:$0xff]
        %234 = vst [vmem:[%s64 + $0x2a0] sm:$0xff] %v233
        %v235 = vld [vmem:[%s63 + $0x2a8] sm:$0xff]
        %236 = vst [vmem:[%s64 + $0x2a8] sm:$0xff] %v235
        %v237 = vld [vmem:[%s63 + $0x2b0] sm:$0xff]
        %238 = vst [vmem:[%s64 + $0x2b0] sm:$0xff] %v237
        %v239 = vld [vmem:[%s63 + $0x2b8] sm:$0xff]
        %240 = vst [vmem:[%s64 + $0x2b8] sm:$0xff] %v239
        %v241 = vld [vmem:[%s63 + $0x2c0] sm:$0xff]
        %242 = vst [vmem:[%s64 + $0x2c0] sm:$0xff] %v241
        %v243 = vld [vmem:[%s63 + $0x2c8] sm:$0xff]
        %244 = vst [vmem:[%s64 + $0x2c8] sm:$0xff] %v243
        %v245 = vld [vmem:[%s63 + $0x2d0] sm:$0xff]
        %246 = vst [vmem:[%s64 + $0x2d0] sm:$0xff] %v245
        %v247 = vld [vmem:[%s63 + $0x2d8] sm:$0xff]
        %248 = vst [vmem:[%s64 + $0x2d8] sm:$0xff] %v247
        %v249 = vld [vmem:[%s63 + $0x2e0] sm:$0xff]
        %250 = vst [vmem:[%s64 + $0x2e0] sm:$0xff] %v249
        %v251 = vld [vmem:[%s63 + $0x2e8] sm:$0xff]
        %252 = vst [vmem:[%s64 + $0x2e8] sm:$0xff] %v251
        %v253 = vld [vmem:[%s63 + $0x2f0] sm:$0xff]
        %254 = vst [vmem:[%s64 + $0x2f0] sm:$0xff] %v253
        %v255 = vld [vmem:[%s63 + $0x2f8] sm:$0xff]
        %256 = vst [vmem:[%s64 + $0x2f8] sm:$0xff] %v255
        %v257 = vld [vmem:[%s63 + $0x300] sm:$0xff]
        %258 = vst [vmem:[%s64 + $0x300] sm:$0xff] %v257
        %v259 = vld [vmem:[%s63 + $0x308] sm:$0xff]
        %260 = vst [vmem:[%s64 + $0x308] sm:$0xff] %v259
        %v261 = vld [vmem:[%s63 + $0x310] sm:$0xff]
        %262 = vst [vmem:[%s64 + $0x310] sm:$0xff] %v261
        %v263 = vld [vmem:[%s63 + $0x318] sm:$0xff]
        %264 = vst [vmem:[%s64 + $0x318] sm:$0xff] %v263
        %v265 = vld [vmem:[%s63 + $0x320] sm:$0xff]
        %266 = vst [vmem:[%s64 + $0x320] sm:$0xff] %v265
        %v267 = vld [vmem:[%s63 + $0x328] sm:$0xff]
        %268 = vst [vmem:[%s64 + $0x328] sm:$0xff] %v267
        %v269 = vld [vmem:[%s63 + $0x330] sm:$0xff]
        %270 = vst [vmem:[%s64 + $0x330] sm:$0xff] %v269
        %v271 = vld [vmem:[%s63 + $0x338] sm:$0xff]
        %272 = vst [vmem:[%s64 + $0x338] sm:$0xff] %v271
        %v273 = vld [vmem:[%s63 + $0x340] sm:$0xff]
        %274 = vst [vmem:[%s64 + $0x340] sm:$0xff] %v273
        %v275 = vld [vmem:[%s63 + $0x348] sm:$0xff]
        %276 = vst [vmem:[%s64 + $0x348] sm:$0xff] %v275
        %v277 = vld [vmem:[%s63 + $0x350] sm:$0xff]
        %278 = vst [vmem:[%s64 + $0x350] sm:$0xff] %v277
        %v279 = vld [vmem:[%s63 + $0x358] sm:$0xff]
        %280 = vst [vmem:[%s64 + $0x358] sm:$0xff] %v279
        %v281 = vld [vmem:[%s63 + $0x360] sm:$0xff]
        %282 = vst [vmem:[%s64 + $0x360] sm:$0xff] %v281
        %v283 = vld [vmem:[%s63 + $0x368] sm:$0xff]
        %284 = vst [vmem:[%s64 + $0x368] sm:$0xff] %v283
        %v285 = vld [vmem:[%s63 + $0x370] sm:$0xff]
        %286 = vst [vmem:[%s64 + $0x370] sm:$0xff] %v285
        %v287 = vld [vmem:[%s63 + $0x378] sm:$0xff]
        %288 = vst [vmem:[%s64 + $0x378] sm:$0xff] %v287
        %v289 = vld [vmem:[%s63 + $0x380] sm:$0xff]
        %290 = vst [vmem:[%s64 + $0x380] sm:$0xff] %v289
        %v291 = vld [vmem:[%s63 + $0x388] sm:$0xff]
        %292 = vst [vmem:[%s64 + $0x388] sm:$0xff] %v291
        %v293 = vld [vmem:[%s63 + $0x390] sm:$0xff]
        %294 = vst [vmem:[%s64 + $0x390] sm:$0xff] %v293
        %v295 = vld [vmem:[%s63 + $0x398] sm:$0xff]
        %296 = vst [vmem:[%s64 + $0x398] sm:$0xff] %v295
        %v297 = vld [vmem:[%s63 + $0x3a0] sm:$0xff]
        %298 = vst [vmem:[%s64 + $0x3a0] sm:$0xff] %v297
        %v299 = vld [vmem:[%s63 + $0x3a8] sm:$0xff]
        %300 = vst [vmem:[%s64 + $0x3a8] sm:$0xff] %v299
        %v301 = vld [vmem:[%s63 + $0x3b0] sm:$0xff]
        %302 = vst [vmem:[%s64 + $0x3b0] sm:$0xff] %v301
        %v303 = vld [vmem:[%s63 + $0x3b8] sm:$0xff]
        %304 = vst [vmem:[%s64 + $0x3b8] sm:$0xff] %v303
        %v305 = vld [vmem:[%s63 + $0x3c0] sm:$0xff]
        %306 = vst [vmem:[%s64 + $0x3c0] sm:$0xff] %v305
        %v307 = vld [vmem:[%s63 + $0x3c8] sm:$0xff]
        %308 = vst [vmem:[%s64 + $0x3c8] sm:$0xff] %v307
        %v309 = vld [vmem:[%s63 + $0x3d0] sm:$0xff]
        %310 = vst [vmem:[%s64 + $0x3d0] sm:$0xff] %v309
        %v311 = vld [vmem:[%s63 + $0x3d8] sm:$0xff]
        %312 = vst [vmem:[%s64 + $0x3d8] sm:$0xff] %v311
        %v313 = vld [vmem:[%s63 + $0x3e0] sm:$0xff]
        %314 = vst [vmem:[%s64 + $0x3e0] sm:$0xff] %v313
        %v315 = vld [vmem:[%s63 + $0x3e8] sm:$0xff]
        %316 = vst [vmem:[%s64 + $0x3e8] sm:$0xff] %v315
        %v317 = vld [vmem:[%s63 + $0x3f0] sm:$0xff]
        %318 = vst [vmem:[%s64 + $0x3f0] sm:$0xff] %v317
        %v319 = vld [vmem:[%s63 + $0x3f8] sm:$0xff]
        %320 = vst [vmem:[%s64 + $0x3f8] sm:$0xff] %v319
        %v321 = vld [vmem:[%s63 + $0x400] sm:$0xff]
        %322 = vst [vmem:[%s64 + $0x400] sm:$0xff] %v321
        %v323 = vld [vmem:[%s63 + $0x408] sm:$0xff]
        %324 = vst [vmem:[%s64 + $0x408] sm:$0xff] %v323
        %v325 = vld [vmem:[%s63 + $0x410] sm:$0xff]
        %326 = vst [vmem:[%s64 + $0x410] sm:$0xff] %v325
        %v327 = vld [vmem:[%s63 + $0x418] sm:$0xff]
        %328 = vst [vmem:[%s64 + $0x418] sm:$0xff] %v327
        %v329 = vld [vmem:[%s63 + $0x420] sm:$0xff]
        %330 = vst [vmem:[%s64 + $0x420] sm:$0xff] %v329
        %v331 = vld [vmem:[%s63 + $0x428] sm:$0xff]
        %332 = vst [vmem:[%s64 + $0x428] sm:$0xff] %v331
        %v333 = vld [vmem:[%s63 + $0x430] sm:$0xff]
        %334 = vst [vmem:[%s64 + $0x430] sm:$0xff] %v333
        %v335 = vld [vmem:[%s63 + $0x438] sm:$0xff]
        %336 = vst [vmem:[%s64 + $0x438] sm:$0xff] %v335
        %v337 = vld [vmem:[%s63 + $0x440] sm:$0xff]
        %338 = vst [vmem:[%s64 + $0x440] sm:$0xff] %v337
        %v339 = vld [vmem:[%s63 + $0x448] sm:$0xff]
        %340 = vst [vmem:[%s64 + $0x448] sm:$0xff] %v339
        %v341 = vld [vmem:[%s63 + $0x450] sm:$0xff]
        %342 = vst [vmem:[%s64 + $0x450] sm:$0xff] %v341
        %v343 = vld [vmem:[%s63 + $0x458] sm:$0xff]
        %344 = vst [vmem:[%s64 + $0x458] sm:$0xff] %v343
        %v345 = vld [vmem:[%s63 + $0x460] sm:$0xff]
        %346 = vst [vmem:[%s64 + $0x460] sm:$0xff] %v345
        %v347 = vld [vmem:[%s63 + $0x468] sm:$0xff]
        %348 = vst [vmem:[%s64 + $0x468] sm:$0xff] %v347
        %v349 = vld [vmem:[%s63 + $0x470] sm:$0xff]
        %350 = vst [vmem:[%s64 + $0x470] sm:$0xff] %v349
        %v351 = vld [vmem:[%s63 + $0x478] sm:$0xff]
        %352 = vst [vmem:[%s64 + $0x478] sm:$0xff] %v351
        %v353 = vld [vmem:[%s63 + $0x480] sm:$0xff]
        %354 = vst [vmem:[%s64 + $0x480] sm:$0xff] %v353
        %v355 = vld [vmem:[%s63 + $0x488] sm:$0xff]
        %356 = vst [vmem:[%s64 + $0x488] sm:$0xff] %v355
        %v357 = vld [vmem:[%s63 + $0x490] sm:$0xff]
        %358 = vst [vmem:[%s64 + $0x490] sm:$0xff] %v357
        %v359 = vld [vmem:[%s63 + $0x498] sm:$0xff]
        %360 = vst [vmem:[%s64 + $0x498] sm:$0xff] %v359
        %v361 = vld [vmem:[%s63 + $0x4a0] sm:$0xff]
        %362 = vst [vmem:[%s64 + $0x4a0] sm:$0xff] %v361
        %v363 = vld [vmem:[%s63 + $0x4a8] sm:$0xff]
        %364 = vst [vmem:[%s64 + $0x4a8] sm:$0xff] %v363
        %v365 = vld [vmem:[%s63 + $0x4b0] sm:$0xff]
        %366 = vst [vmem:[%s64 + $0x4b0] sm:$0xff] %v365
        %v367 = vld [vmem:[%s63 + $0x4b8] sm:$0xff]
        %368 = vst [vmem:[%s64 + $0x4b8] sm:$0xff] %v367
        %v369 = vld [vmem:[%s63 + $0x4c0] sm:$0xff]
        %370 = vst [vmem:[%s64 + $0x4c0] sm:$0xff] %v369
        %v371 = vld [vmem:[%s63 + $0x4c8] sm:$0xff]
        %372 = vst [vmem:[%s64 + $0x4c8] sm:$0xff] %v371
        %v373 = vld [vmem:[%s63 + $0x4d0] sm:$0xff]
        %374 = vst [vmem:[%s64 + $0x4d0] sm:$0xff] %v373
        %v375 = vld [vmem:[%s63 + $0x4d8] sm:$0xff]
        %376 = vst [vmem:[%s64 + $0x4d8] sm:$0xff] %v375
        %v377 = vld [vmem:[%s63 + $0x4e0] sm:$0xff]
        %378 = vst [vmem:[%s64 + $0x4e0] sm:$0xff] %v377
        %v379 = vld [vmem:[%s63 + $0x4e8] sm:$0xff]
        %380 = vst [vmem:[%s64 + $0x4e8] sm:$0xff] %v379
        %v381 = vld [vmem:[%s63 + $0x4f0] sm:$0xff]
        %382 = vst [vmem:[%s64 + $0x4f0] sm:$0xff] %v381
        %v383 = vld [vmem:[%s63 + $0x4f8] sm:$0xff]
        %384 = vst [vmem:[%s64 + $0x4f8] sm:$0xff] %v383
        %v385 = vld [vmem:[%s63 + $0x500] sm:$0xff]
        %386 = vst [vmem:[%s64 + $0x500] sm:$0xff] %v385
        %v387 = vld [vmem:[%s63 + $0x508] sm:$0xff]
        %388 = vst [vmem:[%s64 + $0x508] sm:$0xff] %v387
        %v389 = vld [vmem:[%s63 + $0x510] sm:$0xff]
        %390 = vst [vmem:[%s64 + $0x510] sm:$0xff] %v389
        %v391 = vld [vmem:[%s63 + $0x518] sm:$0xff]
        %392 = vst [vmem:[%s64 + $0x518] sm:$0xff] %v391
        %v393 = vld [vmem:[%s63 + $0x520] sm:$0xff]
        %394 = vst [vmem:[%s64 + $0x520] sm:$0xff] %v393
        %v395 = vld [vmem:[%s63 + $0x528] sm:$0xff]
        %396 = vst [vmem:[%s64 + $0x528] sm:$0xff] %v395
        %v397 = vld [vmem:[%s63 + $0x530] sm:$0xff]
        %398 = vst [vmem:[%s64 + $0x530] sm:$0xff] %v397
        %v399 = vld [vmem:[%s63 + $0x538] sm:$0xff]
        %400 = vst [vmem:[%s64 + $0x538] sm:$0xff] %v399
        %v401 = vld [vmem:[%s63 + $0x540] sm:$0xff]
        %402 = vst [vmem:[%s64 + $0x540] sm:$0xff] %v401
        %v403 = vld [vmem:[%s63 + $0x548] sm:$0xff]
        %404 = vst [vmem:[%s64 + $0x548] sm:$0xff] %v403
        %v405 = vld [vmem:[%s63 + $0x550] sm:$0xff]
        %406 = vst [vmem:[%s64 + $0x550] sm:$0xff] %v405
        %v407 = vld [vmem:[%s63 + $0x558] sm:$0xff]
        %408 = vst [vmem:[%s64 + $0x558] sm:$0xff] %v407
        %v409 = vld [vmem:[%s63 + $0x560] sm:$0xff]
        %410 = vst [vmem:[%s64 + $0x560] sm:$0xff] %v409
        %v411 = vld [vmem:[%s63 + $0x568] sm:$0xff]
        %412 = vst [vmem:[%s64 + $0x568] sm:$0xff] %v411
        %v413 = vld [vmem:[%s63 + $0x570] sm:$0xff]
        %414 = vst [vmem:[%s64 + $0x570] sm:$0xff] %v413
        %v415 = vld [vmem:[%s63 + $0x578] sm:$0xff]
        %416 = vst [vmem:[%s64 + $0x578] sm:$0xff] %v415
        %v417 = vld [vmem:[%s63 + $0x580] sm:$0xff]
        %418 = vst [vmem:[%s64 + $0x580] sm:$0xff] %v417
        %v419 = vld [vmem:[%s63 + $0x588] sm:$0xff]
        %420 = vst [vmem:[%s64 + $0x588] sm:$0xff] %v419
        %v421 = vld [vmem:[%s63 + $0x590] sm:$0xff]
        %422 = vst [vmem:[%s64 + $0x590] sm:$0xff] %v421
        %v423 = vld [vmem:[%s63 + $0x598] sm:$0xff]
        %424 = vst [vmem:[%s64 + $0x598] sm:$0xff] %v423
      $region54: #{forward.1} parent=48 // loop_footer
        %s62 = sadd.s32 1, %s58
      $region55: #{forward.1} parent=48 // loop_footer_branch
        %57 = sbr.rel target = $region51
      $region56: #{forward.1} parent=48 // loop_exit
        _
    $region49: #{forward.1} parent=1 // pred_fallthru
      _
    // Predicated region
    $region57: #{forward.1} parent=1 // pred_check
      _
    $region58: #{forward.1} parent=1 // pred_check_branch
      %426 = sbr.rel target = $region60
    $region59: #{forward.1} parent=1 // pred_region
      _
    $region60: #{forward.1} parent=1 // pred_fallthru
      _
    // Predicated region
    $region61: #{forward.1} parent=1 // pred_check
      _
    $region62: #{forward.1} parent=1 // pred_check_branch
      %429 = sbr.rel (0) target = $region64
    $region63: #{forward.1} parent=1 // pred_region
      %430 = vsyncadd [#allocation5], 23040
    $region64: #{forward.1} parent=1 // pred_fallthru
      _
    %s431 = scalar_lea.sflag [#allocation5], 1
    // Predicated region
    $region65: #{forward.1} parent=1 // pred_check
      _
    $region66: #{forward.1} parent=1 // pred_check_branch
      %433 = sbr.rel (0) target = $region68
    $region67: #{forward.1} parent=1 // pred_region
      loop: start=0, step=1, limit=1
      $region69: #{forward.1} parent=67 // loop_pre_header
        _
      $region70: #{forward.1} parent=67 // loop_header
        %s435 = sphi 0, %s439
        %p436 = scmp.ge.s32.totalorder %s435, 1
        %s440 = sphi %s11, %s11
        %s441 = sphi [#allocation3], [#allocation3]
      $region71: #{forward.1} parent=67 // loop_header_branch
        %438 = sbr.rel (%p436) target = $region75
      $region72: #{forward.1} parent=67 // loop_body
        %v442 = vld [vmem:[%s440] sm:$0xff]
        %443 = vst [vmem:[%s441] sm:$0xff] %v442
        %v444 = vld [vmem:[%s440 + $0x8] sm:$0xff]
        %445 = vst [vmem:[%s441 + $0x8] sm:$0xff] %v444
        %v446 = vld [vmem:[%s440 + $0x10] sm:$0xff]
        %447 = vst [vmem:[%s441 + $0x10] sm:$0xff] %v446
        %v448 = vld [vmem:[%s440 + $0x18] sm:$0xff]
        %449 = vst [vmem:[%s441 + $0x18] sm:$0xff] %v448
        %v450 = vld [vmem:[%s440 + $0x20] sm:$0xff]
        %451 = vst [vmem:[%s441 + $0x20] sm:$0xff] %v450
        %v452 = vld [vmem:[%s440 + $0x28] sm:$0xff]
        %453 = vst [vmem:[%s441 + $0x28] sm:$0xff] %v452
        %v454 = vld [vmem:[%s440 + $0x30] sm:$0xff]
        %455 = vst [vmem:[%s441 + $0x30] sm:$0xff] %v454
        %v456 = vld [vmem:[%s440 + $0x38] sm:$0xff]
        %457 = vst [vmem:[%s441 + $0x38] sm:$0xff] %v456
        %v458 = vld [vmem:[%s440 + $0x40] sm:$0xff]
        %459 = vst [vmem:[%s441 + $0x40] sm:$0xff] %v458
        %v460 = vld [vmem:[%s440 + $0x48] sm:$0xff]
        %461 = vst [vmem:[%s441 + $0x48] sm:$0xff] %v460
        %v462 = vld [vmem:[%s440 + $0x50] sm:$0xff]
        %463 = vst [vmem:[%s441 + $0x50] sm:$0xff] %v462
        %v464 = vld [vmem:[%s440 + $0x58] sm:$0xff]
        %465 = vst [vmem:[%s441 + $0x58] sm:$0xff] %v464
        %v466 = vld [vmem:[%s440 + $0x60] sm:$0xff]
        %467 = vst [vmem:[%s441 + $0x60] sm:$0xff] %v466
        %v468 = vld [vmem:[%s440 + $0x68] sm:$0xff]
        %469 = vst [vmem:[%s441 + $0x68] sm:$0xff] %v468
        %v470 = vld [vmem:[%s440 + $0x70] sm:$0xff]
        %471 = vst [vmem:[%s441 + $0x70] sm:$0xff] %v470
        %v472 = vld [vmem:[%s440 + $0x78] sm:$0xff]
        %473 = vst [vmem:[%s441 + $0x78] sm:$0xff] %v472
        %v474 = vld [vmem:[%s440 + $0x80] sm:$0xff]
        %475 = vst [vmem:[%s441 + $0x80] sm:$0xff] %v474
        %v476 = vld [vmem:[%s440 + $0x88] sm:$0xff]
        %477 = vst [vmem:[%s441 + $0x88] sm:$0xff] %v476
        %v478 = vld [vmem:[%s440 + $0x90] sm:$0xff]
        %479 = vst [vmem:[%s441 + $0x90] sm:$0xff] %v478
        %v480 = vld [vmem:[%s440 + $0x98] sm:$0xff]
        %481 = vst [vmem:[%s441 + $0x98] sm:$0xff] %v480
        %v482 = vld [vmem:[%s440 + $0xa0] sm:$0xff]
        %483 = vst [vmem:[%s441 + $0xa0] sm:$0xff] %v482
        %v484 = vld [vmem:[%s440 + $0xa8] sm:$0xff]
        %485 = vst [vmem:[%s441 + $0xa8] sm:$0xff] %v484
        %v486 = vld [vmem:[%s440 + $0xb0] sm:$0xff]
        %487 = vst [vmem:[%s441 + $0xb0] sm:$0xff] %v486
        %v488 = vld [vmem:[%s440 + $0xb8] sm:$0xff]
        %489 = vst [vmem:[%s441 + $0xb8] sm:$0xff] %v488
        %v490 = vld [vmem:[%s440 + $0xc0] sm:$0xff]
        %491 = vst [vmem:[%s441 + $0xc0] sm:$0xff] %v490
        %v492 = vld [vmem:[%s440 + $0xc8] sm:$0xff]
        %493 = vst [vmem:[%s441 + $0xc8] sm:$0xff] %v492
        %v494 = vld [vmem:[%s440 + $0xd0] sm:$0xff]
        %495 = vst [vmem:[%s441 + $0xd0] sm:$0xff] %v494
        %v496 = vld [vmem:[%s440 + $0xd8] sm:$0xff]
        %497 = vst [vmem:[%s441 + $0xd8] sm:$0xff] %v496
        %v498 = vld [vmem:[%s440 + $0xe0] sm:$0xff]
        %499 = vst [vmem:[%s441 + $0xe0] sm:$0xff] %v498
        %v500 = vld [vmem:[%s440 + $0xe8] sm:$0xff]
        %501 = vst [vmem:[%s441 + $0xe8] sm:$0xff] %v500
        %v502 = vld [vmem:[%s440 + $0xf0] sm:$0xff]
        %503 = vst [vmem:[%s441 + $0xf0] sm:$0xff] %v502
        %v504 = vld [vmem:[%s440 + $0xf8] sm:$0xff]
        %505 = vst [vmem:[%s441 + $0xf8] sm:$0xff] %v504
        %v506 = vld [vmem:[%s440 + $0x100] sm:$0xff]
        %507 = vst [vmem:[%s441 + $0x100] sm:$0xff] %v506
        %v508 = vld [vmem:[%s440 + $0x108] sm:$0xff]
        %509 = vst [vmem:[%s441 + $0x108] sm:$0xff] %v508
        %v510 = vld [vmem:[%s440 + $0x110] sm:$0xff]
        %511 = vst [vmem:[%s441 + $0x110] sm:$0xff] %v510
        %v512 = vld [vmem:[%s440 + $0x118] sm:$0xff]
        %513 = vst [vmem:[%s441 + $0x118] sm:$0xff] %v512
        %v514 = vld [vmem:[%s440 + $0x120] sm:$0xff]
        %515 = vst [vmem:[%s441 + $0x120] sm:$0xff] %v514
        %v516 = vld [vmem:[%s440 + $0x128] sm:$0xff]
        %517 = vst [vmem:[%s441 + $0x128] sm:$0xff] %v516
        %v518 = vld [vmem:[%s440 + $0x130] sm:$0xff]
        %519 = vst [vmem:[%s441 + $0x130] sm:$0xff] %v518
        %v520 = vld [vmem:[%s440 + $0x138] sm:$0xff]
        %521 = vst [vmem:[%s441 + $0x138] sm:$0xff] %v520
        %v522 = vld [vmem:[%s440 + $0x140] sm:$0xff]
        %523 = vst [vmem:[%s441 + $0x140] sm:$0xff] %v522
        %v524 = vld [vmem:[%s440 + $0x148] sm:$0xff]
        %525 = vst [vmem:[%s441 + $0x148] sm:$0xff] %v524
        %v526 = vld [vmem:[%s440 + $0x150] sm:$0xff]
        %527 = vst [vmem:[%s441 + $0x150] sm:$0xff] %v526
        %v528 = vld [vmem:[%s440 + $0x158] sm:$0xff]
        %529 = vst [vmem:[%s441 + $0x158] sm:$0xff] %v528
        %v530 = vld [vmem:[%s440 + $0x160] sm:$0xff]
        %531 = vst [vmem:[%s441 + $0x160] sm:$0xff] %v530
        %v532 = vld [vmem:[%s440 + $0x168] sm:$0xff]
        %533 = vst [vmem:[%s441 + $0x168] sm:$0xff] %v532
        %v534 = vld [vmem:[%s440 + $0x170] sm:$0xff]
        %535 = vst [vmem:[%s441 + $0x170] sm:$0xff] %v534
        %v536 = vld [vmem:[%s440 + $0x178] sm:$0xff]
        %537 = vst [vmem:[%s441 + $0x178] sm:$0xff] %v536
        %v538 = vld [vmem:[%s440 + $0x180] sm:$0xff]
        %539 = vst [vmem:[%s441 + $0x180] sm:$0xff] %v538
        %v540 = vld [vmem:[%s440 + $0x188] sm:$0xff]
        %541 = vst [vmem:[%s441 + $0x188] sm:$0xff] %v540
        %v542 = vld [vmem:[%s440 + $0x190] sm:$0xff]
        %543 = vst [vmem:[%s441 + $0x190] sm:$0xff] %v542
        %v544 = vld [vmem:[%s440 + $0x198] sm:$0xff]
        %545 = vst [vmem:[%s441 + $0x198] sm:$0xff] %v544
        %v546 = vld [vmem:[%s440 + $0x1a0] sm:$0xff]
        %547 = vst [vmem:[%s441 + $0x1a0] sm:$0xff] %v546
        %v548 = vld [vmem:[%s440 + $0x1a8] sm:$0xff]
        %549 = vst [vmem:[%s441 + $0x1a8] sm:$0xff] %v548
        %v550 = vld [vmem:[%s440 + $0x1b0] sm:$0xff]
        %551 = vst [vmem:[%s441 + $0x1b0] sm:$0xff] %v550
        %v552 = vld [vmem:[%s440 + $0x1b8] sm:$0xff]
        %553 = vst [vmem:[%s441 + $0x1b8] sm:$0xff] %v552
        %v554 = vld [vmem:[%s440 + $0x1c0] sm:$0xff]
        %555 = vst [vmem:[%s441 + $0x1c0] sm:$0xff] %v554
        %v556 = vld [vmem:[%s440 + $0x1c8] sm:$0xff]
        %557 = vst [vmem:[%s441 + $0x1c8] sm:$0xff] %v556
        %v558 = vld [vmem:[%s440 + $0x1d0] sm:$0xff]
        %559 = vst [vmem:[%s441 + $0x1d0] sm:$0xff] %v558
        %v560 = vld [vmem:[%s440 + $0x1d8] sm:$0xff]
        %561 = vst [vmem:[%s441 + $0x1d8] sm:$0xff] %v560
        %v562 = vld [vmem:[%s440 + $0x1e0] sm:$0xff]
        %563 = vst [vmem:[%s441 + $0x1e0] sm:$0xff] %v562
        %v564 = vld [vmem:[%s440 + $0x1e8] sm:$0xff]
        %565 = vst [vmem:[%s441 + $0x1e8] sm:$0xff] %v564
        %v566 = vld [vmem:[%s440 + $0x1f0] sm:$0xff]
        %567 = vst [vmem:[%s441 + $0x1f0] sm:$0xff] %v566
        %v568 = vld [vmem:[%s440 + $0x1f8] sm:$0xff]
        %569 = vst [vmem:[%s441 + $0x1f8] sm:$0xff] %v568
        %v570 = vld [vmem:[%s440 + $0x200] sm:$0xff]
        %571 = vst [vmem:[%s441 + $0x200] sm:$0xff] %v570
        %v572 = vld [vmem:[%s440 + $0x208] sm:$0xff]
        %573 = vst [vmem:[%s441 + $0x208] sm:$0xff] %v572
        %v574 = vld [vmem:[%s440 + $0x210] sm:$0xff]
        %575 = vst [vmem:[%s441 + $0x210] sm:$0xff] %v574
        %v576 = vld [vmem:[%s440 + $0x218] sm:$0xff]
        %577 = vst [vmem:[%s441 + $0x218] sm:$0xff] %v576
        %v578 = vld [vmem:[%s440 + $0x220] sm:$0xff]
        %579 = vst [vmem:[%s441 + $0x220] sm:$0xff] %v578
        %v580 = vld [vmem:[%s440 + $0x228] sm:$0xff]
        %581 = vst [vmem:[%s441 + $0x228] sm:$0xff] %v580
      $region73: #{forward.1} parent=67 // loop_footer
        %s439 = sadd.s32 1, %s435
      $region74: #{forward.1} parent=67 // loop_footer_branch
        %434 = sbr.rel target = $region70
      $region75: #{forward.1} parent=67 // loop_exit
        _
    $region68: #{forward.1} parent=1 // pred_fallthru
      _
    // Predicated region
    $region76: #{forward.1} parent=1 // pred_check
      _
    $region77: #{forward.1} parent=1 // pred_check_branch
      %583 = sbr.rel target = $region79
    $region78: #{forward.1} parent=1 // pred_region
      _
    $region79: #{forward.1} parent=1 // pred_fallthru
      _
    // Predicated region
    $region80: #{forward.1} parent=1 // pred_check
      _
    $region81: #{forward.1} parent=1 // pred_check_branch
      %586 = sbr.rel (0) target = $region83
    $region82: #{forward.1} parent=1 // pred_region
      %587 = vsyncadd %s431, 8960
    $region83: #{forward.1} parent=1 // pred_fallthru
      _
    %s588 = scalar_lea.sflag [#allocation5], 2
    // Predicated region
    $region84: #{forward.1} parent=1 // pred_check
      _
    $region85: #{forward.1} parent=1 // pred_check_branch
      %590 = sbr.rel (0) target = $region87
    $region86: #{forward.1} parent=1 // pred_region
      loop: start=0, step=1, limit=1
      $region88: #{forward.1} parent=86 // loop_pre_header
        _
      $region89: #{forward.1} parent=86 // loop_header
        %s592 = sphi 0, %s596
        %p593 = scmp.ge.s32.totalorder %s592, 1
        %s597 = sphi %s12, %s12
        %s598 = sphi [#allocation4], [#allocation4]
      $region90: #{forward.1} parent=86 // loop_header_branch
        %595 = sbr.rel (%p593) target = $region94
      $region91: #{forward.1} parent=86 // loop_body
        %v599 = vld [vmem:[%s597] sm:$0xff]
        %600 = vst [vmem:[%s598] sm:$0xff] %v599
        %v601 = vld [vmem:[%s597 + $0x8] sm:$0xff]
        %602 = vst [vmem:[%s598 + $0x8] sm:$0xff] %v601
        %v603 = vld [vmem:[%s597 + $0x10] sm:$0xff]
        %604 = vst [vmem:[%s598 + $0x10] sm:$0xff] %v603
        %v605 = vld [vmem:[%s597 + $0x18] sm:$0xff]
        %606 = vst [vmem:[%s598 + $0x18] sm:$0xff] %v605
        %v607 = vld [vmem:[%s597 + $0x20] sm:$0xff]
        %608 = vst [vmem:[%s598 + $0x20] sm:$0xff] %v607
        %v609 = vld [vmem:[%s597 + $0x28] sm:$0xff]
        %610 = vst [vmem:[%s598 + $0x28] sm:$0xff] %v609
        %v611 = vld [vmem:[%s597 + $0x30] sm:$0xff]
        %612 = vst [vmem:[%s598 + $0x30] sm:$0xff] %v611
        %v613 = vld [vmem:[%s597 + $0x38] sm:$0xff]
        %614 = vst [vmem:[%s598 + $0x38] sm:$0xff] %v613
      $region92: #{forward.1} parent=86 // loop_footer
        %s596 = sadd.s32 1, %s592
      $region93: #{forward.1} parent=86 // loop_footer_branch
        %591 = sbr.rel target = $region89
      $region94: #{forward.1} parent=86 // loop_exit
        _
    $region87: #{forward.1} parent=1 // pred_fallthru
      _
    // Predicated region
    $region95: #{forward.1} parent=1 // pred_check
      _
    $region96: #{forward.1} parent=1 // pred_check_branch
      %616 = sbr.rel target = $region98
    $region97: #{forward.1} parent=1 // pred_region
      _
    $region98: #{forward.1} parent=1 // pred_fallthru
      _
    // Predicated region
    $region99: #{forward.1} parent=1 // pred_check
      _
    $region100: #{forward.1} parent=1 // pred_check_branch
      %619 = sbr.rel (0) target = $region102
    $region101: #{forward.1} parent=1 // pred_region
      %620 = vsyncadd %s588, 1024
    $region102: #{forward.1} parent=1 // pred_fallthru
      _
    %v621 = vld [vmem:[%s0] sm:$0xff]
    %v622 = vld [vmem:[%s0 + $0x8] sm:$0xff]
    %v623 = vld [vmem:[%s0 + $0x10] sm:$0xff]
    %v624 = vld [vmem:[%s0 + $0x18] sm:$0xff]
    %v625 = vld [vmem:[%s0 + $0x20] sm:$0xff]
    %v626 = vld [vmem:[%s0 + $0x28] sm:$0xff]
    %v627 = vld [vmem:[%s0 + $0x30] sm:$0xff]
    %v628 = vld [vmem:[%s0 + $0x38] sm:$0xff]
    %v629 = vld [vmem:[%s0 + $0x40] sm:$0xff]
    %v630 = vld [vmem:[%s0 + $0x48] sm:$0xff]
    %v631 = vld [vmem:[%s1] sm:$0xf]
    %v632 = vld [vmem:[%s1 + $0x4] sm:$0xf]
    %v633 = vld [vmem:[%s1 + $0x8] sm:$0xf]
    %v634 = vld [vmem:[%s1 + $0xc] sm:$0xf]
    %v635 = vld [vmem:[%s1 + $0x10] sm:$0xf]
    %v636 = vld [vmem:[%s1 + $0x14] sm:$0xf]
    %v637 = vld [vmem:[%s1 + $0x18] sm:$0xf]
    %v638 = vld [vmem:[%s1 + $0x1c] sm:$0xf]
    %v639 = vld [vmem:[%s1 + $0x20] sm:$0xf]
    %v640 = vld [vmem:[%s1 + $0x24] sm:$0xf]
    %v641 = vld [vmem:[%s1 + $0x28] sm:$0xf]
    %v642 = vld [vmem:[%s1 + $0x2c] sm:$0xf]
    %v643 = vld [vmem:[%s1 + $0x30] sm:$0xf]
    %v644 = vld [vmem:[%s1 + $0x34] sm:$0xf]
    %v645 = vld [vmem:[%s1 + $0x38] sm:$0xf]
    %v646 = vld [vmem:[%s1 + $0x3c] sm:$0xf]
    %v647 = vld [vmem:[%s1 + $0x40] sm:$0xf]
    %v648 = vld [vmem:[%s1 + $0x44] sm:$0xf]
    %v649 = vld [vmem:[%s1 + $0x48] sm:$0xf]
    %v650 = vld [vmem:[%s1 + $0x4c] sm:$0xf]
    %v651 = vld [vmem:[%s1 + $0x50] sm:$0xf]
    %v652 = vld [vmem:[%s1 + $0x54] sm:$0xf]
    %v653 = vld [vmem:[%s1 + $0x58] sm:$0xf]
    %v654 = vld [vmem:[%s1 + $0x5c] sm:$0xf]
    %v655 = vld [vmem:[%s1 + $0x60] sm:$0xf]
    %v656 = vld [vmem:[%s1 + $0x64] sm:$0xf]
    %v657 = vld [vmem:[%s1 + $0x68] sm:$0xf]
    %v658 = vld [vmem:[%s1 + $0x6c] sm:$0xf]
    %v659 = vld [vmem:[%s1 + $0x70] sm:$0xf]
    %v660 = vld [vmem:[%s1 + $0x74] sm:$0xf]
    %v691 = vunpack.c.l.b16 %v631
    %v692 = vunpack.c.l.b16 %v632
    %v693 = vunpack.c.l.b16 %v633
    %v694 = vunpack.c.l.b16 %v634
    %v695 = vunpack.c.l.b16 %v635
    %v696 = vunpack.c.l.b16 %v636
    %v697 = vunpack.c.l.b16 %v637
    %v698 = vunpack.c.l.b16 %v638
    %v699 = vunpack.c.l.b16 %v639
    %v700 = vunpack.c.l.b16 %v640
    %v701 = vunpack.c.l.b16 %v641
    %v702 = vunpack.c.l.b16 %v642
    %v703 = vunpack.c.l.b16 %v643
    %v704 = vunpack.c.l.b16 %v644
    %v705 = vunpack.c.l.b16 %v645
    %v706 = vunpack.c.l.b16 %v646
    %v707 = vunpack.c.l.b16 %v647
    %v708 = vunpack.c.l.b16 %v648
    %v709 = vunpack.c.l.b16 %v649
    %v710 = vunpack.c.l.b16 %v650
    %v711 = vunpack.c.l.b16 %v651
    %v712 = vunpack.c.l.b16 %v652
    %v713 = vunpack.c.l.b16 %v653
    %v714 = vunpack.c.l.b16 %v654
    %v715 = vunpack.c.l.b16 %v655
    %v716 = vunpack.c.l.b16 %v656
    %v717 = vunpack.c.l.b16 %v657
    %v718 = vunpack.c.l.b16 %v658
    %v719 = vunpack.c.l.b16 %v659
    %v720 = vunpack.c.l.b16 %v660
    %v721 = vpack.c.b16 %v692, %v691
    %v722 = vpack.c.b16 %v694, %v693
    %v723 = vpack.c.b16 %v696, %v695
    %v724 = vpack.c.b16 %v698, %v697
    %v725 = vpack.c.b16 %v700, %v699
    %v726 = vpack.c.b16 %v702, %v701
    %v727 = vpack.c.b16 %v704, %v703
    %v728 = vpack.c.b16 %v706, %v705
    %v729 = vpack.c.b16 %v708, %v707
    %v730 = vpack.c.b16 %v710, %v709
    %v731 = vpack.c.b16 %v712, %v711
    %v732 = vpack.c.b16 %v714, %v713
    %v733 = vpack.c.b16 %v716, %v715
    %v734 = vpack.c.b16 %v718, %v717
    %v735 = vpack.c.b16 %v720, %v719
    %v746 = vunpack.c.l.b16 %v621
    %v747 = vunpack.c.h.b16 %v621
    %v748 = vunpack.c.l.b16 %v622
    %v749 = vunpack.c.h.b16 %v622
    %v750 = vunpack.c.l.b16 %v623
    %v751 = vunpack.c.h.b16 %v623
    %v752 = vunpack.c.l.b16 %v624
    %v753 = vunpack.c.h.b16 %v624
    %v754 = vunpack.c.l.b16 %v625
    %v755 = vunpack.c.h.b16 %v625
    %v756 = vunpack.c.l.b16 %v626
    %v757 = vunpack.c.h.b16 %v626
    %v758 = vunpack.c.l.b16 %v627
    %v759 = vunpack.c.h.b16 %v627
    %v760 = vunpack.c.l.b16 %v628
    %v761 = vunpack.c.h.b16 %v628
    %v762 = vunpack.c.l.b16 %v629
    %v763 = vunpack.c.h.b16 %v629
    %v764 = vunpack.c.l.b16 %v630
    %v765 = vunpack.c.h.b16 %v630
    %v766 = vpack.c.b16 %v748, %v746
    %v767 = vpack.c.b16 %v749, %v747
    %v768 = vpack.c.b16 %v752, %v750
    %v769 = vpack.c.b16 %v753, %v751
    %v770 = vpack.c.b16 %v756, %v754
    %v771 = vpack.c.b16 %v757, %v755
    %v772 = vpack.c.b16 %v760, %v758
    %v773 = vpack.c.b16 %v761, %v759
    %v774 = vpack.c.b16 %v764, %v762
    %v775 = vpack.c.b16 %v765, %v763
    %vm786 = vcmask 654336
    %v788 = vsel %vm786, %v721, 0
    %v791 = vsel %vm786, %v722, 0
    %v794 = vsel %vm786, %v723, 0
    %v797 = vsel %vm786, %v724, 0
    %v800 = vsel %vm786, %v725, 0
    %v803 = vsel %vm786, %v726, 0
    %v806 = vsel %vm786, %v727, 0
    %v809 = vsel %vm786, %v728, 0
    %v812 = vsel %vm786, %v729, 0
    %v815 = vsel %vm786, %v730, 0
    %v818 = vsel %vm786, %v731, 0
    %v821 = vsel %vm786, %v732, 0
    %v824 = vsel %vm786, %v733, 0
    %v827 = vsel %vm786, %v734, 0
    %v830 = vsel %vm786, %v735, 0
    %832 = vmatpush.bf16.msra.mxu0 0
    %833 = vmatpush.bf16.msra.mxu0 0
    %834 = vmatpush.bf16.msra.mxu0 0
    %835 = vmatpush.bf16.msra.mxu0 %v774
    %836 = vmatpush.bf16.msra.mxu0 %v772
    %837 = vmatpush.bf16.msra.mxu0 %v770
    %838 = vmatpush.bf16.msra.mxu0 %v768
    %839 = vmatpush.bf16.msra.mxu0 %v766
    %840 = vmatmul.bf16.gmra.mxu0 %v788
    %v841 = vpop.f32.mrf.mxu0
    %v842 = vadd.f32 0.0, %v841
    %v843 = vpop.f32.mrf.mxu0
    %v844 = vadd.f32 0.0, %v843
    %845 = vmatmul.bf16.gmra.mxu0 %v791
    %v846 = vpop.f32.mrf.mxu0
    %v847 = vadd.f32 0.0, %v846
    %v848 = vpop.f32.mrf.mxu0
    %v849 = vadd.f32 0.0, %v848
    %850 = vmatmul.bf16.gmra.mxu0 %v794
    %v851 = vpop.f32.mrf.mxu0
    %v852 = vadd.f32 0.0, %v851
    %v853 = vpop.f32.mrf.mxu0
    %v854 = vadd.f32 0.0, %v853
    %855 = vmatmul.bf16.gmra.mxu0 %v797
    %v856 = vpop.f32.mrf.mxu0
    %v857 = vadd.f32 0.0, %v856
    %v858 = vpop.f32.mrf.mxu0
    %v859 = vadd.f32 0.0, %v858
    %860 = vmatmul.bf16.gmra.mxu0 %v800
    %v861 = vpop.f32.mrf.mxu0
    %v862 = vadd.f32 0.0, %v861
    %v863 = vpop.f32.mrf.mxu0
    %v864 = vadd.f32 0.0, %v863
    %865 = vmatmul.bf16.gmra.mxu0 %v803
    %v866 = vpop.f32.mrf.mxu0
    %v867 = vadd.f32 0.0, %v866
    %v868 = vpop.f32.mrf.mxu0
    %v869 = vadd.f32 0.0, %v868
    %870 = vmatmul.bf16.gmra.mxu0 %v806
    %v871 = vpop.f32.mrf.mxu0
    %v872 = vadd.f32 0.0, %v871
    %v873 = vpop.f32.mrf.mxu0
    %v874 = vadd.f32 0.0, %v873
    %875 = vmatmul.bf16.gmra.mxu0 %v809
    %v876 = vpop.f32.mrf.mxu0
    %v877 = vadd.f32 0.0, %v876
    %v878 = vpop.f32.mrf.mxu0
    %v879 = vadd.f32 0.0, %v878
    %880 = vmatmul.bf16.gmra.mxu0 %v812
    %v881 = vpop.f32.mrf.mxu0
    %v882 = vadd.f32 0.0, %v881
    %v883 = vpop.f32.mrf.mxu0
    %v884 = vadd.f32 0.0, %v883
    %885 = vmatmul.bf16.gmra.mxu0 %v815
    %v886 = vpop.f32.mrf.mxu0
    %v887 = vadd.f32 0.0, %v886
    %v888 = vpop.f32.mrf.mxu0
    %v889 = vadd.f32 0.0, %v888
    %890 = vmatmul.bf16.gmra.mxu0 %v818
    %v891 = vpop.f32.mrf.mxu0
    %v892 = vadd.f32 0.0, %v891
    %v893 = vpop.f32.mrf.mxu0
    %v894 = vadd.f32 0.0, %v893
    %895 = vmatmul.bf16.gmra.mxu0 %v821
    %v896 = vpop.f32.mrf.mxu0
    %v897 = vadd.f32 0.0, %v896
    %v898 = vpop.f32.mrf.mxu0
    %v899 = vadd.f32 0.0, %v898
    %900 = vmatmul.bf16.gmra.mxu0 %v824
    %v901 = vpop.f32.mrf.mxu0
    %v902 = vadd.f32 0.0, %v901
    %v903 = vpop.f32.mrf.mxu0
    %v904 = vadd.f32 0.0, %v903
    %905 = vmatmul.bf16.gmra.mxu0 %v827
    %v906 = vpop.f32.mrf.mxu0
    %v907 = vadd.f32 0.0, %v906
    %v908 = vpop.f32.mrf.mxu0
    %v909 = vadd.f32 0.0, %v908
    %910 = vmatmul.bf16.gmra.mxu0 %v830
    %v911 = vpop.f32.mrf.mxu0
    %v912 = vadd.f32 0.0, %v911
    %v913 = vpop.f32.mrf.mxu0
    %v914 = vadd.f32 0.0, %v913
    %915 = vdwg.mxu0
    %916 = vmatpush.bf16.msra.mxu0 0
    %917 = vmatpush.bf16.msra.mxu0 0
    %918 = vmatpush.bf16.msra.mxu0 0
    %919 = vmatpush.bf16.msra.mxu0 %v775
    %920 = vmatpush.bf16.msra.mxu0 %v773
    %921 = vmatpush.bf16.msra.mxu0 %v771
    %922 = vmatpush.bf16.msra.mxu0 %v769
    %923 = vmatpush.bf16.msra.mxu0 %v767
    %924 = vmatmul.bf16.gmra.mxu0 %v788
    %v925 = vpop.f32.mrf.mxu0
    %v926 = vadd.f32 0.0, %v925
    %v927 = vpop.f32.mrf.mxu0
    %v928 = vadd.f32 0.0, %v927
    %929 = vmatmul.bf16.gmra.mxu0 %v791
    %v930 = vpop.f32.mrf.mxu0
    %v931 = vadd.f32 0.0, %v930
    %v932 = vpop.f32.mrf.mxu0
    %v933 = vadd.f32 0.0, %v932
    %934 = vmatmul.bf16.gmra.mxu0 %v794
    %v935 = vpop.f32.mrf.mxu0
    %v936 = vadd.f32 0.0, %v935
    %v937 = vpop.f32.mrf.mxu0
    %v938 = vadd.f32 0.0, %v937
    %939 = vmatmul.bf16.gmra.mxu0 %v797
    %v940 = vpop.f32.mrf.mxu0
    %v941 = vadd.f32 0.0, %v940
    %v942 = vpop.f32.mrf.mxu0
    %v943 = vadd.f32 0.0, %v942
    %944 = vmatmul.bf16.gmra.mxu0 %v800
    %v945 = vpop.f32.mrf.mxu0
    %v946 = vadd.f32 0.0, %v945
    %v947 = vpop.f32.mrf.mxu0
    %v948 = vadd.f32 0.0, %v947
    %949 = vmatmul.bf16.gmra.mxu0 %v803
    %v950 = vpop.f32.mrf.mxu0
    %v951 = vadd.f32 0.0, %v950
    %v952 = vpop.f32.mrf.mxu0
    %v953 = vadd.f32 0.0, %v952
    %954 = vmatmul.bf16.gmra.mxu0 %v806
    %v955 = vpop.f32.mrf.mxu0
    %v956 = vadd.f32 0.0, %v955
    %v957 = vpop.f32.mrf.mxu0
    %v958 = vadd.f32 0.0, %v957
    %959 = vmatmul.bf16.gmra.mxu0 %v809
    %v960 = vpop.f32.mrf.mxu0
    %v961 = vadd.f32 0.0, %v960
    %v962 = vpop.f32.mrf.mxu0
    %v963 = vadd.f32 0.0, %v962
    %964 = vmatmul.bf16.gmra.mxu0 %v812
    %v965 = vpop.f32.mrf.mxu0
    %v966 = vadd.f32 0.0, %v965
    %v967 = vpop.f32.mrf.mxu0
    %v968 = vadd.f32 0.0, %v967
    %969 = vmatmul.bf16.gmra.mxu0 %v815
    %v970 = vpop.f32.mrf.mxu0
    %v971 = vadd.f32 0.0, %v970
    %v972 = vpop.f32.mrf.mxu0
    %v973 = vadd.f32 0.0, %v972
    %974 = vmatmul.bf16.gmra.mxu0 %v818
    %v975 = vpop.f32.mrf.mxu0
    %v976 = vadd.f32 0.0, %v975
    %v977 = vpop.f32.mrf.mxu0
    %v978 = vadd.f32 0.0, %v977
    %979 = vmatmul.bf16.gmra.mxu0 %v821
    %v980 = vpop.f32.mrf.mxu0
    %v981 = vadd.f32 0.0, %v980
    %v982 = vpop.f32.mrf.mxu0
    %v983 = vadd.f32 0.0, %v982
    %984 = vmatmul.bf16.gmra.mxu0 %v824
    %v985 = vpop.f32.mrf.mxu0
    %v986 = vadd.f32 0.0, %v985
    %v987 = vpop.f32.mrf.mxu0
    %v988 = vadd.f32 0.0, %v987
    %989 = vmatmul.bf16.gmra.mxu0 %v827
    %v990 = vpop.f32.mrf.mxu0
    %v991 = vadd.f32 0.0, %v990
    %v992 = vpop.f32.mrf.mxu0
    %v993 = vadd.f32 0.0, %v992
    %994 = vmatmul.bf16.gmra.mxu0 %v830
    %v995 = vpop.f32.mrf.mxu0
    %v996 = vadd.f32 0.0, %v995
    %v997 = vpop.f32.mrf.mxu0
    %v998 = vadd.f32 0.0, %v997
    %999 = vdwg.mxu0
    %v1000 = vpack.c.bf16 %v926, %v842
    %v1001 = vpack.c.bf16 %v928, %v844
    %v1002 = vpack.c.bf16 %v931, %v847
    %v1003 = vpack.c.bf16 %v933, %v849
    %v1004 = vpack.c.bf16 %v936, %v852
    %v1005 = vpack.c.bf16 %v938, %v854
    %v1006 = vpack.c.bf16 %v941, %v857
    %v1007 = vpack.c.bf16 %v943, %v859
    %v1008 = vpack.c.bf16 %v946, %v862
    %v1009 = vpack.c.bf16 %v948, %v864
    %v1010 = vpack.c.bf16 %v951, %v867
    %v1011 = vpack.c.bf16 %v953, %v869
    %v1012 = vpack.c.bf16 %v956, %v872
    %v1013 = vpack.c.bf16 %v958, %v874
    %v1014 = vpack.c.bf16 %v961, %v877
    %v1015 = vpack.c.bf16 %v963, %v879
    %v1016 = vpack.c.bf16 %v966, %v882
    %v1017 = vpack.c.bf16 %v968, %v884
    %v1018 = vpack.c.bf16 %v971, %v887
    %v1019 = vpack.c.bf16 %v973, %v889
    %v1020 = vpack.c.bf16 %v976, %v892
    %v1021 = vpack.c.bf16 %v978, %v894
    %v1022 = vpack.c.bf16 %v981, %v897
    %v1023 = vpack.c.bf16 %v983, %v899
    %v1024 = vpack.c.bf16 %v986, %v902
    %v1025 = vpack.c.bf16 %v988, %v904
    %v1026 = vpack.c.bf16 %v991, %v907
    %v1027 = vpack.c.bf16 %v993, %v909
    %v1028 = vpack.c.bf16 %v996, %v912
    %v1029 = vpack.c.bf16 %v998, %v914
    %v1030 = vld [vmem:[#allocation6] sm:$0xff]
    %v1031 = vld [vmem:[#allocation6 + $0x8] sm:$0xf]
    %v1032 = vld [vmem:[#allocation6 + $0xc] sm:$0xff]
    %v1033 = vld [vmem:[#allocation6 + $0x14] sm:$0xf]
    %v1034 = vld [vmem:[#allocation6 + $0x18] sm:$0xff]
    %v1035 = vld [vmem:[#allocation6 + $0x20] sm:$0xf]
    %v1036 = vld [vmem:[#allocation6 + $0x24] sm:$0xff]
    %v1037 = vld [vmem:[#allocation6 + $0x2c] sm:$0xf]
    %v1038 = vld [vmem:[#allocation6 + $0x30] sm:$0xff]
    %v1039 = vld [vmem:[#allocation6 + $0x38] sm:$0xf]
    %v1040 = vld [vmem:[#allocation6 + $0x3c] sm:$0xff]
    %v1041 = vld [vmem:[#allocation6 + $0x44] sm:$0xf]
    %v1042 = vld [vmem:[#allocation6 + $0x48] sm:$0xff]
    %v1043 = vld [vmem:[#allocation6 + $0x50] sm:$0xf]
    %v1044 = vld [vmem:[#allocation6 + $0x54] sm:$0xff]
    %v1045 = vld [vmem:[#allocation6 + $0x5c] sm:$0xf]
    %v1046 = vld [vmem:[#allocation6 + $0x60] sm:$0xff]
    %v1047 = vld [vmem:[#allocation6 + $0x68] sm:$0xf]
    %v1048 = vld [vmem:[#allocation6 + $0x6c] sm:$0xff]
    %v1049 = vld [vmem:[#allocation6 + $0x74] sm:$0xf]
    %v1050 = vld [vmem:[#allocation6 + $0x78] sm:$0xff]
    %v1051 = vld [vmem:[#allocation6 + $0x80] sm:$0xf]
    %v1052 = vld [vmem:[#allocation6 + $0x84] sm:$0xff]
    %v1053 = vld [vmem:[#allocation6 + $0x8c] sm:$0xf]
    %v1054 = vld [vmem:[#allocation6 + $0x90] sm:$0xff]
    %v1055 = vld [vmem:[#allocation6 + $0x98] sm:$0xf]
    %v1056 = vld [vmem:[#allocation6 + $0x9c] sm:$0xff]
    %v1057 = vld [vmem:[#allocation6 + $0xa4] sm:$0xf]
    %v1058 = vld [vmem:[#allocation6 + $0xa8] sm:$0xff]
    %v1059 = vld [vmem:[#allocation6 + $0xb0] sm:$0xf]
    %v1060 = vld [vmem:[#allocation6 + $0xb4] sm:$0xff]
    %v1061 = vld [vmem:[#allocation6 + $0xbc] sm:$0xf]
    %v1062 = vld [vmem:[#allocation6 + $0xc0] sm:$0xff]
    %v1063 = vld [vmem:[#allocation6 + $0xc8] sm:$0xf]
    %v1064 = vld [vmem:[#allocation6 + $0xcc] sm:$0xff]
    %v1065 = vld [vmem:[#allocation6 + $0xd4] sm:$0xf]
    %v1066 = vld [vmem:[#allocation6 + $0xd8] sm:$0xff]
    %v1067 = vld [vmem:[#allocation6 + $0xe0] sm:$0xf]
    %v1068 = vld [vmem:[#allocation6 + $0xe4] sm:$0xff]
    %v1069 = vld [vmem:[#allocation6 + $0xec] sm:$0xf]
    %s1070 = scalar_lea.vmem [#allocation6], 240
    %v1071 = vld [vmem:[%s1070] sm:$0xff]
    %v1072 = vld [vmem:[%s1070 + $0x8] sm:$0xf]
    %v1073 = vld [vmem:[%s1070 + $0xc] sm:$0xff]
    %v1074 = vld [vmem:[%s1070 + $0x14] sm:$0xf]
    %v1075 = vld [vmem:[%s1070 + $0x18] sm:$0xff]
    %v1076 = vld [vmem:[%s1070 + $0x20] sm:$0xf]
    %v1077 = vld [vmem:[%s1070 + $0x24] sm:$0xff]
    %v1078 = vld [vmem:[%s1070 + $0x2c] sm:$0xf]
    %v1079 = vld [vmem:[%s1070 + $0x30] sm:$0xff]
    %v1080 = vld [vmem:[%s1070 + $0x38] sm:$0xf]
    %v1081 = vld [vmem:[%s1070 + $0x3c] sm:$0xff]
    %v1082 = vld [vmem:[%s1070 + $0x44] sm:$0xf]
    %v1083 = vld [vmem:[%s1070 + $0x48] sm:$0xff]
    %v1084 = vld [vmem:[%s1070 + $0x50] sm:$0xf]
    %v1085 = vld [vmem:[%s1070 + $0x54] sm:$0xff]
    %v1086 = vld [vmem:[%s1070 + $0x5c] sm:$0xf]
    %v1087 = vld [vmem:[%s1070 + $0x60] sm:$0xff]
    %v1088 = vld [vmem:[%s1070 + $0x68] sm:$0xf]
    %v1089 = vld [vmem:[%s1070 + $0x6c] sm:$0xff]
    %v1090 = vld [vmem:[%s1070 + $0x74] sm:$0xf]
    %v1091 = vld [vmem:[%s1070 + $0x78] sm:$0xff]
    %v1092 = vld [vmem:[%s1070 + $0x80] sm:$0xf]
    %v1093 = vld [vmem:[%s1070 + $0x84] sm:$0xff]
    %v1094 = vld [vmem:[%s1070 + $0x8c] sm:$0xf]
    %v1095 = vld [vmem:[%s1070 + $0x90] sm:$0xff]
    %v1096 = vld [vmem:[%s1070 + $0x98] sm:$0xf]
    %v1097 = vld [vmem:[%s1070 + $0x9c] sm:$0xff]
    %v1098 = vld [vmem:[%s1070 + $0xa4] sm:$0xf]
    %v1099 = vld [vmem:[%s1070 + $0xa8] sm:$0xff]
    %v1100 = vld [vmem:[%s1070 + $0xb0] sm:$0xf]
    %v1101 = vld [vmem:[%s1070 + $0xb4] sm:$0xff]
    %v1102 = vld [vmem:[%s1070 + $0xbc] sm:$0xf]
    %v1103 = vld [vmem:[%s1070 + $0xc0] sm:$0xff]
    %v1104 = vld [vmem:[%s1070 + $0xc8] sm:$0xf]
    %v1105 = vld [vmem:[%s1070 + $0xcc] sm:$0xff]
    %v1106 = vld [vmem:[%s1070 + $0xd4] sm:$0xf]
    %v1107 = vld [vmem:[%s1070 + $0xd8] sm:$0xff]
    %v1108 = vld [vmem:[%s1070 + $0xe0] sm:$0xf]
    %v1109 = vld [vmem:[%s1070 + $0xe4] sm:$0xff]
    %v1110 = vld [vmem:[%s1070 + $0xec] sm:$0xf]
    %v1117 = vunpack.c.l.b16 %v1006
    %v1118 = vunpack.c.h.b16 %v1006
    %v1119 = vunpack.c.l.b16 %v1007
    %v1120 = vunpack.c.h.b16 %v1007
    %v1121 = vunpack.c.l.b16 %v1008
    %v1122 = vunpack.c.h.b16 %v1008
    %v1123 = vunpack.c.l.b16 %v1009
    %v1124 = vunpack.c.h.b16 %v1009
    %v1125 = vunpack.c.l.b16 %v1010
    %v1126 = vunpack.c.h.b16 %v1010
    %v1127 = vunpack.c.l.b16 %v1011
    %v1128 = vunpack.c.h.b16 %v1011
    %v1129 = vpack.c.b16 %v1119, %v1117
    %v1130 = vpack.c.b16 %v1120, %v1118
    %v1131 = vpack.c.b16 %v1123, %v1121
    %v1132 = vpack.c.b16 %v1124, %v1122
    %v1133 = vpack.c.b16 %v1127, %v1125
    %v1134 = vpack.c.b16 %v1128, %v1126
    %v1178 = vunpack.c.l.b16 %v1071
    %v1179 = vunpack.c.h.b16 %v1071
    %v1180 = vunpack.c.l.b16 %v1072
    %v1181 = vunpack.c.l.b16 %v1073
    %v1182 = vunpack.c.h.b16 %v1073
    %v1183 = vunpack.c.l.b16 %v1074
    %v1184 = vunpack.c.l.b16 %v1075
    %v1185 = vunpack.c.h.b16 %v1075
    %v1186 = vunpack.c.l.b16 %v1076
    %v1187 = vunpack.c.l.b16 %v1077
    %v1188 = vunpack.c.h.b16 %v1077
    %v1189 = vunpack.c.l.b16 %v1078
    %v1190 = vunpack.c.l.b16 %v1079
    %v1191 = vunpack.c.h.b16 %v1079
    %v1192 = vunpack.c.l.b16 %v1080
    %v1193 = vunpack.c.l.b16 %v1081
    %v1194 = vunpack.c.h.b16 %v1081
    %v1195 = vunpack.c.l.b16 %v1082
    %v1196 = vunpack.c.l.b16 %v1083
    %v1197 = vunpack.c.h.b16 %v1083
    %v1198 = vunpack.c.l.b16 %v1084
    %v1199 = vunpack.c.l.b16 %v1085
    %v1200 = vunpack.c.h.b16 %v1085
    %v1201 = vunpack.c.l.b16 %v1086
    %v1202 = vunpack.c.l.b16 %v1087
    %v1203 = vunpack.c.h.b16 %v1087
    %v1204 = vunpack.c.l.b16 %v1088
    %v1205 = vunpack.c.l.b16 %v1089
    %v1206 = vunpack.c.h.b16 %v1089
    %v1207 = vunpack.c.l.b16 %v1090
    %v1208 = vunpack.c.l.b16 %v1091
    %v1209 = vunpack.c.h.b16 %v1091
    %v1210 = vunpack.c.l.b16 %v1092
    %v1211 = vunpack.c.l.b16 %v1093
    %v1212 = vunpack.c.h.b16 %v1093
    %v1213 = vunpack.c.l.b16 %v1094
    %v1214 = vunpack.c.l.b16 %v1095
    %v1215 = vunpack.c.h.b16 %v1095
    %v1216 = vunpack.c.l.b16 %v1096
    %v1217 = vunpack.c.l.b16 %v1097
    %v1218 = vunpack.c.h.b16 %v1097
    %v1219 = vunpack.c.l.b16 %v1098
    %v1220 = vunpack.c.l.b16 %v1099
    %v1221 = vunpack.c.h.b16 %v1099
    %v1222 = vunpack.c.l.b16 %v1100
    %v1223 = vunpack.c.l.b16 %v1101
    %v1224 = vunpack.c.h.b16 %v1101
    %v1225 = vunpack.c.l.b16 %v1102
    %v1226 = vunpack.c.l.b16 %v1103
    %v1227 = vunpack.c.h.b16 %v1103
    %v1228 = vunpack.c.l.b16 %v1104
    %v1229 = vunpack.c.l.b16 %v1105
    %v1230 = vunpack.c.h.b16 %v1105
    %v1231 = vunpack.c.l.b16 %v1106
    %v1232 = vunpack.c.l.b16 %v1107
    %v1233 = vunpack.c.h.b16 %v1107
    %v1234 = vunpack.c.l.b16 %v1108
    %v1235 = vunpack.c.l.b16 %v1109
    %v1236 = vunpack.c.h.b16 %v1109
    %v1237 = vunpack.c.l.b16 %v1110
    %v1238 = vpack.c.b16 %v1181, %v1178
    %v1239 = vpack.c.b16 %v1182, %v1179
    %v1240 = vpack.c.b16 %v1183, %v1180
    %v1241 = vpack.c.b16 %v1187, %v1184
    %v1242 = vpack.c.b16 %v1188, %v1185
    %v1243 = vpack.c.b16 %v1189, %v1186
    %v1244 = vpack.c.b16 %v1193, %v1190
    %v1245 = vpack.c.b16 %v1194, %v1191
    %v1246 = vpack.c.b16 %v1195, %v1192
    %v1247 = vpack.c.b16 %v1199, %v1196
    %v1248 = vpack.c.b16 %v1200, %v1197
    %v1249 = vpack.c.b16 %v1201, %v1198
    %v1250 = vpack.c.b16 %v1205, %v1202
    %v1251 = vpack.c.b16 %v1206, %v1203
    %v1252 = vpack.c.b16 %v1207, %v1204
    %v1253 = vpack.c.b16 %v1211, %v1208
    %v1254 = vpack.c.b16 %v1212, %v1209
    %v1255 = vpack.c.b16 %v1213, %v1210
    %v1256 = vpack.c.b16 %v1217, %v1214
    %v1257 = vpack.c.b16 %v1218, %v1215
    %v1258 = vpack.c.b16 %v1219, %v1216
    %v1259 = vpack.c.b16 %v1223, %v1220
    %v1260 = vpack.c.b16 %v1224, %v1221
    %v1261 = vpack.c.b16 %v1225, %v1222
    %v1262 = vpack.c.b16 %v1229, %v1226
    %v1263 = vpack.c.b16 %v1230, %v1227
    %v1264 = vpack.c.b16 %v1231, %v1228
    %v1265 = vpack.c.b16 %v1235, %v1232
    %v1266 = vpack.c.b16 %v1236, %v1233
    %v1267 = vpack.c.b16 %v1237, %v1234
    %vm1298 = vcmask 261120
    %v1300 = vsel %vm1298, %v1130, 0
    %v1303 = vsel %vm1298, %v1132, 0
    %v1306 = vsel %vm1298, %v1134, 0
    %1308 = vmatpush.bf16.msra.mxu0 %v1259
    %1309 = vmatpush.bf16.msra.mxu0 %v1256
    %1310 = vmatpush.bf16.msra.mxu0 %v1253
    %1311 = vmatpush.bf16.msra.mxu0 %v1250
    %1312 = vmatpush.bf16.msra.mxu0 %v1247
    %1313 = vmatpush.bf16.msra.mxu0 %v1244
    %1314 = vmatpush.bf16.msra.mxu0 %v1241
    %1315 = vmatpush.bf16.msra.mxu0 %v1238
    %1316 = vmatmul.bf16.gmra.mxu0 %v1129
    %v1317 = vpop.f32.mrf.mxu0
    %v1318 = vadd.f32 0.0, %v1317
    %v1319 = vpop.f32.mrf.mxu0
    %v1320 = vadd.f32 0.0, %v1319
    %1321 = vmatmul.bf16.gmra.mxu0 %v1131
    %v1322 = vpop.f32.mrf.mxu0
    %v1323 = vadd.f32 0.0, %v1322
    %v1324 = vpop.f32.mrf.mxu0
    %v1325 = vadd.f32 0.0, %v1324
    %1326 = vmatmul.bf16.gmra.mxu0 %v1133
    %v1327 = vpop.f32.mrf.mxu0
    %v1328 = vadd.f32 0.0, %v1327
    %v1329 = vpop.f32.mrf.mxu0
    %v1330 = vadd.f32 0.0, %v1329
    %1331 = vdwg.mxu0
    %1332 = vmatpush.bf16.msra.mxu0 0
    %1333 = vmatpush.bf16.msra.mxu0 0
    %1334 = vmatpush.bf16.msra.mxu0 0
    %1335 = vmatpush.bf16.msra.mxu0 0
    %1336 = vmatpush.bf16.msra.mxu0 0
    %1337 = vmatpush.bf16.msra.mxu0 0
    %1338 = vmatpush.bf16.msra.mxu0 %v1265
    %1339 = vmatpush.bf16.msra.mxu0 %v1262
    %1340 = vmatmul.bf16.gmra.mxu0 %v1300
    %v1341 = vpop.f32.mrf.mxu0
    %v1342 = vadd.f32 %v1318, %v1341
    %v1343 = vpop.f32.mrf.mxu0
    %v1344 = vadd.f32 %v1320, %v1343
    %1345 = vmatmul.bf16.gmra.mxu0 %v1303
    %v1346 = vpop.f32.mrf.mxu0
    %v1347 = vadd.f32 %v1323, %v1346
    %v1348 = vpop.f32.mrf.mxu0
    %v1349 = vadd.f32 %v1325, %v1348
    %1350 = vmatmul.bf16.gmra.mxu0 %v1306
    %v1351 = vpop.f32.mrf.mxu0
    %v1352 = vadd.f32 %v1328, %v1351
    %v1353 = vpop.f32.mrf.mxu0
    %v1354 = vadd.f32 %v1330, %v1353
    %1355 = vdwg.mxu0
    %1356 = vmatpush.bf16.msra.mxu0 %v1260
    %1357 = vmatpush.bf16.msra.mxu0 %v1257
    %1358 = vmatpush.bf16.msra.mxu0 %v1254
    %1359 = vmatpush.bf16.msra.mxu0 %v1251
    %1360 = vmatpush.bf16.msra.mxu0 %v1248
    %1361 = vmatpush.bf16.msra.mxu0 %v1245
    %1362 = vmatpush.bf16.msra.mxu0 %v1242
    %1363 = vmatpush.bf16.msra.mxu0 %v1239
    %1364 = vmatmul.bf16.gmra.mxu0 %v1129
    %v1365 = vpop.f32.mrf.mxu0
    %v1366 = vadd.f32 0.0, %v1365
    %v1367 = vpop.f32.mrf.mxu0
    %v1368 = vadd.f32 0.0, %v1367
    %1369 = vmatmul.bf16.gmra.mxu0 %v1131
    %v1370 = vpop.f32.mrf.mxu0
    %v1371 = vadd.f32 0.0, %v1370
    %v1372 = vpop.f32.mrf.mxu0
    %v1373 = vadd.f32 0.0, %v1372
    %1374 = vmatmul.bf16.gmra.mxu0 %v1133
    %v1375 = vpop.f32.mrf.mxu0
    %v1376 = vadd.f32 0.0, %v1375
    %v1377 = vpop.f32.mrf.mxu0
    %v1378 = vadd.f32 0.0, %v1377
    %1379 = vdwg.mxu0
    %1380 = vmatpush.bf16.msra.mxu0 0
    %1381 = vmatpush.bf16.msra.mxu0 0
    %1382 = vmatpush.bf16.msra.mxu0 0
    %1383 = vmatpush.bf16.msra.mxu0 0
    %1384 = vmatpush.bf16.msra.mxu0 0
    %1385 = vmatpush.bf16.msra.mxu0 0
    %1386 = vmatpush.bf16.msra.mxu0 %v1266
    %1387 = vmatpush.bf16.msra.mxu0 %v1263
    %1388 = vmatmul.bf16.gmra.mxu0 %v1300
    %v1389 = vpop.f32.mrf.mxu0
    %v1390 = vadd.f32 %v1366, %v1389
    %v1391 = vpop.f32.mrf.mxu0
    %v1392 = vadd.f32 %v1368, %v1391
    %1393 = vmatmul.bf16.gmra.mxu0 %v1303
    %v1394 = vpop.f32.mrf.mxu0
    %v1395 = vadd.f32 %v1371, %v1394
    %v1396 = vpop.f32.mrf.mxu0
    %v1397 = vadd.f32 %v1373, %v1396
    %1398 = vmatmul.bf16.gmra.mxu0 %v1306
    %v1399 = vpop.f32.mrf.mxu0
    %v1400 = vadd.f32 %v1376, %v1399
    %v1401 = vpop.f32.mrf.mxu0
    %v1402 = vadd.f32 %v1378, %v1401
    %1403 = vdwg.mxu0
    %1404 = vmatpush.bf16.msra.mxu0 %v1261
    %1405 = vmatpush.bf16.msra.mxu0 %v1258
    %1406 = vmatpush.bf16.msra.mxu0 %v1255
    %1407 = vmatpush.bf16.msra.mxu0 %v1252
    %1408 = vmatpush.bf16.msra.mxu0 %v1249
    %1409 = vmatpush.bf16.msra.mxu0 %v1246
    %1410 = vmatpush.bf16.msra.mxu0 %v1243
    %1411 = vmatpush.bf16.msra.mxu0 %v1240
    %1412 = vmatmul.bf16.gmra.mxu0 %v1129
    %v1413 = vpop.f32.mrf.mxu0
    %v1414 = vadd.f32 0.0, %v1413
    %v1415 = vpop.f32.mrf.mxu0
    %v1416 = vadd.f32 0.0, %v1415
    %1417 = vmatmul.bf16.gmra.mxu0 %v1131
    %v1418 = vpop.f32.mrf.mxu0
    %v1419 = vadd.f32 0.0, %v1418
    %v1420 = vpop.f32.mrf.mxu0
    %v1421 = vadd.f32 0.0, %v1420
    %1422 = vmatmul.bf16.gmra.mxu0 %v1133
    %v1423 = vpop.f32.mrf.mxu0
    %v1424 = vadd.f32 0.0, %v1423
    %v1425 = vpop.f32.mrf.mxu0
    %v1426 = vadd.f32 0.0, %v1425
    %1427 = vdwg.mxu0
    %1428 = vmatpush.bf16.msra.mxu0 0
    %1429 = vmatpush.bf16.msra.mxu0 0
    %1430 = vmatpush.bf16.msra.mxu0 0
    %1431 = vmatpush.bf16.msra.mxu0 0
    %1432 = vmatpush.bf16.msra.mxu0 0
    %1433 = vmatpush.bf16.msra.mxu0 0
    %1434 = vmatpush.bf16.msra.mxu0 %v1267
    %1435 = vmatpush.bf16.msra.mxu0 %v1264
    %1436 = vmatmul.bf16.gmra.mxu0 %v1300
    %v1437 = vpop.f32.mrf.mxu0
    %v1438 = vadd.f32 %v1414, %v1437
    %v1439 = vpop.f32.mrf.mxu0
    %v1440 = vadd.f32 %v1416, %v1439
    %1441 = vmatmul.bf16.gmra.mxu0 %v1303
    %v1442 = vpop.f32.mrf.mxu0
    %v1443 = vadd.f32 %v1419, %v1442
    %v1444 = vpop.f32.mrf.mxu0
    %v1445 = vadd.f32 %v1421, %v1444
    %1446 = vmatmul.bf16.gmra.mxu0 %v1306
    %v1447 = vpop.f32.mrf.mxu0
    %v1448 = vadd.f32 %v1424, %v1447
    %v1449 = vpop.f32.mrf.mxu0
    %v1450 = vadd.f32 %v1426, %v1449
    %1451 = vdwg.mxu0
    %v1458 = vunpack.c.l.b16 %v1000
    %v1459 = vunpack.c.h.b16 %v1000
    %v1460 = vunpack.c.l.b16 %v1001
    %v1461 = vunpack.c.h.b16 %v1001
    %v1462 = vunpack.c.l.b16 %v1002
    %v1463 = vunpack.c.h.b16 %v1002
    %v1464 = vunpack.c.l.b16 %v1003
    %v1465 = vunpack.c.h.b16 %v1003
    %v1466 = vunpack.c.l.b16 %v1004
    %v1467 = vunpack.c.h.b16 %v1004
    %v1468 = vunpack.c.l.b16 %v1005
    %v1469 = vunpack.c.h.b16 %v1005
    %v1470 = vpack.c.b16 %v1460, %v1458
    %v1471 = vpack.c.b16 %v1461, %v1459
    %v1472 = vpack.c.b16 %v1464, %v1462
    %v1473 = vpack.c.b16 %v1465, %v1463
    %v1474 = vpack.c.b16 %v1468, %v1466
    %v1475 = vpack.c.b16 %v1469, %v1467
    %v1519 = vunpack.c.l.b16 %v1030
    %v1520 = vunpack.c.h.b16 %v1030
    %v1521 = vunpack.c.l.b16 %v1031
    %v1522 = vunpack.c.l.b16 %v1032
    %v1523 = vunpack.c.h.b16 %v1032
    %v1524 = vunpack.c.l.b16 %v1033
    %v1525 = vunpack.c.l.b16 %v1034
    %v1526 = vunpack.c.h.b16 %v1034
    %v1527 = vunpack.c.l.b16 %v1035
    %v1528 = vunpack.c.l.b16 %v1036
    %v1529 = vunpack.c.h.b16 %v1036
    %v1530 = vunpack.c.l.b16 %v1037
    %v1531 = vunpack.c.l.b16 %v1038
    %v1532 = vunpack.c.h.b16 %v1038
    %v1533 = vunpack.c.l.b16 %v1039
    %v1534 = vunpack.c.l.b16 %v1040
    %v1535 = vunpack.c.h.b16 %v1040
    %v1536 = vunpack.c.l.b16 %v1041
    %v1537 = vunpack.c.l.b16 %v1042
    %v1538 = vunpack.c.h.b16 %v1042
    %v1539 = vunpack.c.l.b16 %v1043
    %v1540 = vunpack.c.l.b16 %v1044
    %v1541 = vunpack.c.h.b16 %v1044
    %v1542 = vunpack.c.l.b16 %v1045
    %v1543 = vunpack.c.l.b16 %v1046
    %v1544 = vunpack.c.h.b16 %v1046
    %v1545 = vunpack.c.l.b16 %v1047
    %v1546 = vunpack.c.l.b16 %v1048
    %v1547 = vunpack.c.h.b16 %v1048
    %v1548 = vunpack.c.l.b16 %v1049
    %v1549 = vunpack.c.l.b16 %v1050
    %v1550 = vunpack.c.h.b16 %v1050
    %v1551 = vunpack.c.l.b16 %v1051
    %v1552 = vunpack.c.l.b16 %v1052
    %v1553 = vunpack.c.h.b16 %v1052
    %v1554 = vunpack.c.l.b16 %v1053
    %v1555 = vunpack.c.l.b16 %v1054
    %v1556 = vunpack.c.h.b16 %v1054
    %v1557 = vunpack.c.l.b16 %v1055
    %v1558 = vunpack.c.l.b16 %v1056
    %v1559 = vunpack.c.h.b16 %v1056
    %v1560 = vunpack.c.l.b16 %v1057
    %v1561 = vunpack.c.l.b16 %v1058
    %v1562 = vunpack.c.h.b16 %v1058
    %v1563 = vunpack.c.l.b16 %v1059
    %v1564 = vunpack.c.l.b16 %v1060
    %v1565 = vunpack.c.h.b16 %v1060
    %v1566 = vunpack.c.l.b16 %v1061
    %v1567 = vunpack.c.l.b16 %v1062
    %v1568 = vunpack.c.h.b16 %v1062
    %v1569 = vunpack.c.l.b16 %v1063
    %v1570 = vunpack.c.l.b16 %v1064
    %v1571 = vunpack.c.h.b16 %v1064
    %v1572 = vunpack.c.l.b16 %v1065
    %v1573 = vunpack.c.l.b16 %v1066
    %v1574 = vunpack.c.h.b16 %v1066
    %v1575 = vunpack.c.l.b16 %v1067
    %v1576 = vunpack.c.l.b16 %v1068
    %v1577 = vunpack.c.h.b16 %v1068
    %v1578 = vunpack.c.l.b16 %v1069
    %v1579 = vpack.c.b16 %v1522, %v1519
    %v1580 = vpack.c.b16 %v1523, %v1520
    %v1581 = vpack.c.b16 %v1524, %v1521
    %v1582 = vpack.c.b16 %v1528, %v1525
    %v1583 = vpack.c.b16 %v1529, %v1526
    %v1584 = vpack.c.b16 %v1530, %v1527
    %v1585 = vpack.c.b16 %v1534, %v1531
    %v1586 = vpack.c.b16 %v1535, %v1532
    %v1587 = vpack.c.b16 %v1536, %v1533
    %v1588 = vpack.c.b16 %v1540, %v1537
    %v1589 = vpack.c.b16 %v1541, %v1538
    %v1590 = vpack.c.b16 %v1542, %v1539
    %v1591 = vpack.c.b16 %v1546, %v1543
    %v1592 = vpack.c.b16 %v1547, %v1544
    %v1593 = vpack.c.b16 %v1548, %v1545
    %v1594 = vpack.c.b16 %v1552, %v1549
    %v1595 = vpack.c.b16 %v1553, %v1550
    %v1596 = vpack.c.b16 %v1554, %v1551
    %v1597 = vpack.c.b16 %v1558, %v1555
    %v1598 = vpack.c.b16 %v1559, %v1556
    %v1599 = vpack.c.b16 %v1560, %v1557
    %v1600 = vpack.c.b16 %v1564, %v1561
    %v1601 = vpack.c.b16 %v1565, %v1562
    %v1602 = vpack.c.b16 %v1566, %v1563
    %v1603 = vpack.c.b16 %v1570, %v1567
    %v1604 = vpack.c.b16 %v1571, %v1568
    %v1605 = vpack.c.b16 %v1572, %v1569
    %v1606 = vpack.c.b16 %v1576, %v1573
    %v1607 = vpack.c.b16 %v1577, %v1574
    %v1608 = vpack.c.b16 %v1578, %v1575
    %v1640 = vsel %vm1298, %v1471, 0
    %v1643 = vsel %vm1298, %v1473, 0
    %v1646 = vsel %vm1298, %v1475, 0
    %1648 = vmatpush.bf16.msra.mxu0 %v1600
    %1649 = vmatpush.bf16.msra.mxu0 %v1597
    %1650 = vmatpush.bf16.msra.mxu0 %v1594
    %1651 = vmatpush.bf16.msra.mxu0 %v1591
    %1652 = vmatpush.bf16.msra.mxu0 %v1588
    %1653 = vmatpush.bf16.msra.mxu0 %v1585
    %1654 = vmatpush.bf16.msra.mxu0 %v1582
    %1655 = vmatpush.bf16.msra.mxu0 %v1579
    %1656 = vmatmul.bf16.gmra.mxu0 %v1470
    %v1657 = vpop.f32.mrf.mxu0
    %v1658 = vadd.f32 %v1342, %v1657
    %v1659 = vpop.f32.mrf.mxu0
    %v1660 = vadd.f32 %v1344, %v1659
    %1661 = vmatmul.bf16.gmra.mxu0 %v1472
    %v1662 = vpop.f32.mrf.mxu0
    %v1663 = vadd.f32 %v1347, %v1662
    %v1664 = vpop.f32.mrf.mxu0
    %v1665 = vadd.f32 %v1349, %v1664
    %1666 = vmatmul.bf16.gmra.mxu0 %v1474
    %v1667 = vpop.f32.mrf.mxu0
    %v1668 = vadd.f32 %v1352, %v1667
    %v1669 = vpop.f32.mrf.mxu0
    %v1670 = vadd.f32 %v1354, %v1669
    %1671 = vdwg.mxu0
    %1672 = vmatpush.bf16.msra.mxu0 0
    %1673 = vmatpush.bf16.msra.mxu0 0
    %1674 = vmatpush.bf16.msra.mxu0 0
    %1675 = vmatpush.bf16.msra.mxu0 0
    %1676 = vmatpush.bf16.msra.mxu0 0
    %1677 = vmatpush.bf16.msra.mxu0 0
    %1678 = vmatpush.bf16.msra.mxu0 %v1606
    %1679 = vmatpush.bf16.msra.mxu0 %v1603
    %1680 = vmatmul.bf16.gmra.mxu0 %v1640
    %v1681 = vpop.f32.mrf.mxu0
    %v1682 = vadd.f32 %v1658, %v1681
    %v1683 = vpop.f32.mrf.mxu0
    %v1684 = vadd.f32 %v1660, %v1683
    %1685 = vmatmul.bf16.gmra.mxu0 %v1643
    %v1686 = vpop.f32.mrf.mxu0
    %v1687 = vadd.f32 %v1663, %v1686
    %v1688 = vpop.f32.mrf.mxu0
    %v1689 = vadd.f32 %v1665, %v1688
    %1690 = vmatmul.bf16.gmra.mxu0 %v1646
    %v1691 = vpop.f32.mrf.mxu0
    %v1692 = vadd.f32 %v1668, %v1691
    %v1693 = vpop.f32.mrf.mxu0
    %v1694 = vadd.f32 %v1670, %v1693
    %1695 = vdwg.mxu0
    %1696 = vmatpush.bf16.msra.mxu0 %v1601
    %1697 = vmatpush.bf16.msra.mxu0 %v1598
    %1698 = vmatpush.bf16.msra.mxu0 %v1595
    %1699 = vmatpush.bf16.msra.mxu0 %v1592
    %1700 = vmatpush.bf16.msra.mxu0 %v1589
    %1701 = vmatpush.bf16.msra.mxu0 %v1586
    %1702 = vmatpush.bf16.msra.mxu0 %v1583
    %1703 = vmatpush.bf16.msra.mxu0 %v1580
    %1704 = vmatmul.bf16.gmra.mxu0 %v1470
    %v1705 = vpop.f32.mrf.mxu0
    %v1706 = vadd.f32 %v1390, %v1705
    %v1707 = vpop.f32.mrf.mxu0
    %v1708 = vadd.f32 %v1392, %v1707
    %1709 = vmatmul.bf16.gmra.mxu0 %v1472
    %v1710 = vpop.f32.mrf.mxu0
    %v1711 = vadd.f32 %v1395, %v1710
    %v1712 = vpop.f32.mrf.mxu0
    %v1713 = vadd.f32 %v1397, %v1712
    %1714 = vmatmul.bf16.gmra.mxu0 %v1474
    %v1715 = vpop.f32.mrf.mxu0
    %v1716 = vadd.f32 %v1400, %v1715
    %v1717 = vpop.f32.mrf.mxu0
    %v1718 = vadd.f32 %v1402, %v1717
    %1719 = vdwg.mxu0
    %1720 = vmatpush.bf16.msra.mxu0 0
    %1721 = vmatpush.bf16.msra.mxu0 0
    %1722 = vmatpush.bf16.msra.mxu0 0
    %1723 = vmatpush.bf16.msra.mxu0 0
    %1724 = vmatpush.bf16.msra.mxu0 0
    %1725 = vmatpush.bf16.msra.mxu0 0
    %1726 = vmatpush.bf16.msra.mxu0 %v1607
    %1727 = vmatpush.bf16.msra.mxu0 %v1604
    %1728 = vmatmul.bf16.gmra.mxu0 %v1640
    %v1729 = vpop.f32.mrf.mxu0
    %v1730 = vadd.f32 %v1706, %v1729
    %v1731 = vpop.f32.mrf.mxu0
    %v1732 = vadd.f32 %v1708, %v1731
    %1733 = vmatmul.bf16.gmra.mxu0 %v1643
    %v1734 = vpop.f32.mrf.mxu0
    %v1735 = vadd.f32 %v1711, %v1734
    %v1736 = vpop.f32.mrf.mxu0
    %v1737 = vadd.f32 %v1713, %v1736
    %1738 = vmatmul.bf16.gmra.mxu0 %v1646
    %v1739 = vpop.f32.mrf.mxu0
    %v1740 = vadd.f32 %v1716, %v1739
    %v1741 = vpop.f32.mrf.mxu0
    %v1742 = vadd.f32 %v1718, %v1741
    %1743 = vdwg.mxu0
    %1744 = vmatpush.bf16.msra.mxu0 %v1602
    %1745 = vmatpush.bf16.msra.mxu0 %v1599
    %1746 = vmatpush.bf16.msra.mxu0 %v1596
    %1747 = vmatpush.bf16.msra.mxu0 %v1593
    %1748 = vmatpush.bf16.msra.mxu0 %v1590
    %1749 = vmatpush.bf16.msra.mxu0 %v1587
    %1750 = vmatpush.bf16.msra.mxu0 %v1584
    %1751 = vmatpush.bf16.msra.mxu0 %v1581
    %1752 = vmatmul.bf16.gmra.mxu0 %v1470
    %v1753 = vpop.f32.mrf.mxu0
    %v1754 = vadd.f32 %v1438, %v1753
    %v1755 = vpop.f32.mrf.mxu0
    %v1756 = vadd.f32 %v1440, %v1755
    %1757 = vmatmul.bf16.gmra.mxu0 %v1472
    %v1758 = vpop.f32.mrf.mxu0
    %v1759 = vadd.f32 %v1443, %v1758
    %v1760 = vpop.f32.mrf.mxu0
    %v1761 = vadd.f32 %v1445, %v1760
    %1762 = vmatmul.bf16.gmra.mxu0 %v1474
    %v1763 = vpop.f32.mrf.mxu0
    %v1764 = vadd.f32 %v1448, %v1763
    %v1765 = vpop.f32.mrf.mxu0
    %v1766 = vadd.f32 %v1450, %v1765
    %1767 = vdwg.mxu0
    %1768 = vmatpush.bf16.msra.mxu0 0
    %1769 = vmatpush.bf16.msra.mxu0 0
    %1770 = vmatpush.bf16.msra.mxu0 0
    %1771 = vmatpush.bf16.msra.mxu0 0
    %1772 = vmatpush.bf16.msra.mxu0 0
    %1773 = vmatpush.bf16.msra.mxu0 0
    %1774 = vmatpush.bf16.msra.mxu0 %v1608
    %1775 = vmatpush.bf16.msra.mxu0 %v1605
    %1776 = vmatmul.bf16.gmra.mxu0 %v1640
    %v1777 = vpop.f32.mrf.mxu0
    %v1778 = vadd.f32 %v1754, %v1777
    %v1779 = vpop.f32.mrf.mxu0
    %v1780 = vadd.f32 %v1756, %v1779
    %1781 = vmatmul.bf16.gmra.mxu0 %v1643
    %v1782 = vpop.f32.mrf.mxu0
    %v1783 = vadd.f32 %v1759, %v1782
    %v1784 = vpop.f32.mrf.mxu0
    %v1785 = vadd.f32 %v1761, %v1784
    %1786 = vmatmul.bf16.gmra.mxu0 %v1646
    %v1787 = vpop.f32.mrf.mxu0
    %v1788 = vadd.f32 %v1764, %v1787
    %v1789 = vpop.f32.mrf.mxu0
    %v1790 = vadd.f32 %v1766, %v1789
    %1791 = vdwg.mxu0
    %s1792 = scalar_lea.vmem [#allocation6], 480
    %v1793 = vld [vmem:[%s1792] sm:$0xff]
    %v1794 = vld [vmem:[%s1792 + $0x8] sm:$0xf]
    %v1795 = vld [vmem:[%s1792 + $0xc] sm:$0xff]
    %v1796 = vld [vmem:[%s1792 + $0x14] sm:$0xf]
    %v1797 = vld [vmem:[%s1792 + $0x18] sm:$0xff]
    %v1798 = vld [vmem:[%s1792 + $0x20] sm:$0xf]
    %v1799 = vld [vmem:[%s1792 + $0x24] sm:$0xff]
    %v1800 = vld [vmem:[%s1792 + $0x2c] sm:$0xf]
    %v1801 = vld [vmem:[%s1792 + $0x30] sm:$0xff]
    %v1802 = vld [vmem:[%s1792 + $0x38] sm:$0xf]
    %v1803 = vld [vmem:[%s1792 + $0x3c] sm:$0xff]
    %v1804 = vld [vmem:[%s1792 + $0x44] sm:$0xf]
    %v1805 = vld [vmem:[%s1792 + $0x48] sm:$0xff]
    %v1806 = vld [vmem:[%s1792 + $0x50] sm:$0xf]
    %v1807 = vld [vmem:[%s1792 + $0x54] sm:$0xff]
    %v1808 = vld [vmem:[%s1792 + $0x5c] sm:$0xf]
    %v1809 = vld [vmem:[%s1792 + $0x60] sm:$0xff]
    %v1810 = vld [vmem:[%s1792 + $0x68] sm:$0xf]
    %v1811 = vld [vmem:[%s1792 + $0x6c] sm:$0xff]
    %v1812 = vld [vmem:[%s1792 + $0x74] sm:$0xf]
    %v1813 = vld [vmem:[%s1792 + $0x78] sm:$0xff]
    %v1814 = vld [vmem:[%s1792 + $0x80] sm:$0xf]
    %v1815 = vld [vmem:[%s1792 + $0x84] sm:$0xff]
    %v1816 = vld [vmem:[%s1792 + $0x8c] sm:$0xf]
    %v1817 = vld [vmem:[%s1792 + $0x90] sm:$0xff]
    %v1818 = vld [vmem:[%s1792 + $0x98] sm:$0xf]
    %v1819 = vld [vmem:[%s1792 + $0x9c] sm:$0xff]
    %v1820 = vld [vmem:[%s1792 + $0xa4] sm:$0xf]
    %v1821 = vld [vmem:[%s1792 + $0xa8] sm:$0xff]
    %v1822 = vld [vmem:[%s1792 + $0xb0] sm:$0xf]
    %v1823 = vld [vmem:[%s1792 + $0xb4] sm:$0xff]
    %v1824 = vld [vmem:[%s1792 + $0xbc] sm:$0xf]
    %v1825 = vld [vmem:[%s1792 + $0xc0] sm:$0xff]
    %v1826 = vld [vmem:[%s1792 + $0xc8] sm:$0xf]
    %v1827 = vld [vmem:[%s1792 + $0xcc] sm:$0xff]
    %v1828 = vld [vmem:[%s1792 + $0xd4] sm:$0xf]
    %v1829 = vld [vmem:[%s1792 + $0xd8] sm:$0xff]
    %v1830 = vld [vmem:[%s1792 + $0xe0] sm:$0xf]
    %v1831 = vld [vmem:[%s1792 + $0xe4] sm:$0xff]
    %v1832 = vld [vmem:[%s1792 + $0xec] sm:$0xf]
    %v1839 = vunpack.c.l.b16 %v1012
    %v1840 = vunpack.c.h.b16 %v1012
    %v1841 = vunpack.c.l.b16 %v1013
    %v1842 = vunpack.c.h.b16 %v1013
    %v1843 = vunpack.c.l.b16 %v1014
    %v1844 = vunpack.c.h.b16 %v1014
    %v1845 = vunpack.c.l.b16 %v1015
    %v1846 = vunpack.c.h.b16 %v1015
    %v1847 = vunpack.c.l.b16 %v1016
    %v1848 = vunpack.c.h.b16 %v1016
    %v1849 = vunpack.c.l.b16 %v1017
    %v1850 = vunpack.c.h.b16 %v1017
    %v1851 = vpack.c.b16 %v1841, %v1839
    %v1852 = vpack.c.b16 %v1842, %v1840
    %v1853 = vpack.c.b16 %v1845, %v1843
    %v1854 = vpack.c.b16 %v1846, %v1844
    %v1855 = vpack.c.b16 %v1849, %v1847
    %v1856 = vpack.c.b16 %v1850, %v1848
    %v1900 = vunpack.c.l.b16 %v1793
    %v1901 = vunpack.c.h.b16 %v1793
    %v1902 = vunpack.c.l.b16 %v1794
    %v1903 = vunpack.c.l.b16 %v1795
    %v1904 = vunpack.c.h.b16 %v1795
    %v1905 = vunpack.c.l.b16 %v1796
    %v1906 = vunpack.c.l.b16 %v1797
    %v1907 = vunpack.c.h.b16 %v1797
    %v1908 = vunpack.c.l.b16 %v1798
    %v1909 = vunpack.c.l.b16 %v1799
    %v1910 = vunpack.c.h.b16 %v1799
    %v1911 = vunpack.c.l.b16 %v1800
    %v1912 = vunpack.c.l.b16 %v1801
    %v1913 = vunpack.c.h.b16 %v1801
    %v1914 = vunpack.c.l.b16 %v1802
    %v1915 = vunpack.c.l.b16 %v1803
    %v1916 = vunpack.c.h.b16 %v1803
    %v1917 = vunpack.c.l.b16 %v1804
    %v1918 = vunpack.c.l.b16 %v1805
    %v1919 = vunpack.c.h.b16 %v1805
    %v1920 = vunpack.c.l.b16 %v1806
    %v1921 = vunpack.c.l.b16 %v1807
    %v1922 = vunpack.c.h.b16 %v1807
    %v1923 = vunpack.c.l.b16 %v1808
    %v1924 = vunpack.c.l.b16 %v1809
    %v1925 = vunpack.c.h.b16 %v1809
    %v1926 = vunpack.c.l.b16 %v1810
    %v1927 = vunpack.c.l.b16 %v1811
    %v1928 = vunpack.c.h.b16 %v1811
    %v1929 = vunpack.c.l.b16 %v1812
    %v1930 = vunpack.c.l.b16 %v1813
    %v1931 = vunpack.c.h.b16 %v1813
    %v1932 = vunpack.c.l.b16 %v1814
    %v1933 = vunpack.c.l.b16 %v1815
    %v1934 = vunpack.c.h.b16 %v1815
    %v1935 = vunpack.c.l.b16 %v1816
    %v1936 = vunpack.c.l.b16 %v1817
    %v1937 = vunpack.c.h.b16 %v1817
    %v1938 = vunpack.c.l.b16 %v1818
    %v1939 = vunpack.c.l.b16 %v1819
    %v1940 = vunpack.c.h.b16 %v1819
    %v1941 = vunpack.c.l.b16 %v1820
    %v1942 = vunpack.c.l.b16 %v1821
    %v1943 = vunpack.c.h.b16 %v1821
    %v1944 = vunpack.c.l.b16 %v1822
    %v1945 = vunpack.c.l.b16 %v1823
    %v1946 = vunpack.c.h.b16 %v1823
    %v1947 = vunpack.c.l.b16 %v1824
    %v1948 = vunpack.c.l.b16 %v1825
    %v1949 = vunpack.c.h.b16 %v1825
    %v1950 = vunpack.c.l.b16 %v1826
    %v1951 = vunpack.c.l.b16 %v1827
    %v1952 = vunpack.c.h.b16 %v1827
    %v1953 = vunpack.c.l.b16 %v1828
    %v1954 = vunpack.c.l.b16 %v1829
    %v1955 = vunpack.c.h.b16 %v1829
    %v1956 = vunpack.c.l.b16 %v1830
    %v1957 = vunpack.c.l.b16 %v1831
    %v1958 = vunpack.c.h.b16 %v1831
    %v1959 = vunpack.c.l.b16 %v1832
    %v1960 = vpack.c.b16 %v1903, %v1900
    %v1961 = vpack.c.b16 %v1904, %v1901
    %v1962 = vpack.c.b16 %v1905, %v1902
    %v1963 = vpack.c.b16 %v1909, %v1906
    %v1964 = vpack.c.b16 %v1910, %v1907
    %v1965 = vpack.c.b16 %v1911, %v1908
    %v1966 = vpack.c.b16 %v1915, %v1912
    %v1967 = vpack.c.b16 %v1916, %v1913
    %v1968 = vpack.c.b16 %v1917, %v1914
    %v1969 = vpack.c.b16 %v1921, %v1918
    %v1970 = vpack.c.b16 %v1922, %v1919
    %v1971 = vpack.c.b16 %v1923, %v1920
    %v1972 = vpack.c.b16 %v1927, %v1924
    %v1973 = vpack.c.b16 %v1928, %v1925
    %v1974 = vpack.c.b16 %v1929, %v1926
    %v1975 = vpack.c.b16 %v1933, %v1930
    %v1976 = vpack.c.b16 %v1934, %v1931
    %v1977 = vpack.c.b16 %v1935, %v1932
    %v1978 = vpack.c.b16 %v1939, %v1936
    %v1979 = vpack.c.b16 %v1940, %v1937
    %v1980 = vpack.c.b16 %v1941, %v1938
    %v1981 = vpack.c.b16 %v1945, %v1942
    %v1982 = vpack.c.b16 %v1946, %v1943
    %v1983 = vpack.c.b16 %v1947, %v1944
    %v1984 = vpack.c.b16 %v1951, %v1948
    %v1985 = vpack.c.b16 %v1952, %v1949
    %v1986 = vpack.c.b16 %v1953, %v1950
    %v1987 = vpack.c.b16 %v1957, %v1954
    %v1988 = vpack.c.b16 %v1958, %v1955
    %v1989 = vpack.c.b16 %v1959, %v1956
    %v2021 = vsel %vm1298, %v1852, 0
    %v2024 = vsel %vm1298, %v1854, 0
    %v2027 = vsel %vm1298, %v1856, 0
    %2029 = vmatpush.bf16.msra.mxu0 %v1981
    %2030 = vmatpush.bf16.msra.mxu0 %v1978
    %2031 = vmatpush.bf16.msra.mxu0 %v1975
    %2032 = vmatpush.bf16.msra.mxu0 %v1972
    %2033 = vmatpush.bf16.msra.mxu0 %v1969
    %2034 = vmatpush.bf16.msra.mxu0 %v1966
    %2035 = vmatpush.bf16.msra.mxu0 %v1963
    %2036 = vmatpush.bf16.msra.mxu0 %v1960
    %2037 = vmatmul.bf16.gmra.mxu0 %v1851
    %v2038 = vpop.f32.mrf.mxu0
    %v2039 = vadd.f32 0.0, %v2038
    %v2040 = vpop.f32.mrf.mxu0
    %v2041 = vadd.f32 0.0, %v2040
    %2042 = vmatmul.bf16.gmra.mxu0 %v1853
    %v2043 = vpop.f32.mrf.mxu0
    %v2044 = vadd.f32 0.0, %v2043
    %v2045 = vpop.f32.mrf.mxu0
    %v2046 = vadd.f32 0.0, %v2045
    %2047 = vmatmul.bf16.gmra.mxu0 %v1855
    %v2048 = vpop.f32.mrf.mxu0
    %v2049 = vadd.f32 0.0, %v2048
    %v2050 = vpop.f32.mrf.mxu0
    %v2051 = vadd.f32 0.0, %v2050
    %2052 = vdwg.mxu0
    %2053 = vmatpush.bf16.msra.mxu0 0
    %2054 = vmatpush.bf16.msra.mxu0 0
    %2055 = vmatpush.bf16.msra.mxu0 0
    %2056 = vmatpush.bf16.msra.mxu0 0
    %2057 = vmatpush.bf16.msra.mxu0 0
    %2058 = vmatpush.bf16.msra.mxu0 0
    %2059 = vmatpush.bf16.msra.mxu0 %v1987
    %2060 = vmatpush.bf16.msra.mxu0 %v1984
    %2061 = vmatmul.bf16.gmra.mxu0 %v2021
    %v2062 = vpop.f32.mrf.mxu0
    %v2063 = vadd.f32 %v2039, %v2062
    %v2064 = vpop.f32.mrf.mxu0
    %v2065 = vadd.f32 %v2041, %v2064
    %2066 = vmatmul.bf16.gmra.mxu0 %v2024
    %v2067 = vpop.f32.mrf.mxu0
    %v2068 = vadd.f32 %v2044, %v2067
    %v2069 = vpop.f32.mrf.mxu0
    %v2070 = vadd.f32 %v2046, %v2069
    %2071 = vmatmul.bf16.gmra.mxu0 %v2027
    %v2072 = vpop.f32.mrf.mxu0
    %v2073 = vadd.f32 %v2049, %v2072
    %v2074 = vpop.f32.mrf.mxu0
    %v2075 = vadd.f32 %v2051, %v2074
    %2076 = vdwg.mxu0
    %2077 = vmatpush.bf16.msra.mxu0 %v1982
    %2078 = vmatpush.bf16.msra.mxu0 %v1979
    %2079 = vmatpush.bf16.msra.mxu0 %v1976
    %2080 = vmatpush.bf16.msra.mxu0 %v1973
    %2081 = vmatpush.bf16.msra.mxu0 %v1970
    %2082 = vmatpush.bf16.msra.mxu0 %v1967
    %2083 = vmatpush.bf16.msra.mxu0 %v1964
    %2084 = vmatpush.bf16.msra.mxu0 %v1961
    %2085 = vmatmul.bf16.gmra.mxu0 %v1851
    %v2086 = vpop.f32.mrf.mxu0
    %v2087 = vadd.f32 0.0, %v2086
    %v2088 = vpop.f32.mrf.mxu0
    %v2089 = vadd.f32 0.0, %v2088
    %2090 = vmatmul.bf16.gmra.mxu0 %v1853
    %v2091 = vpop.f32.mrf.mxu0
    %v2092 = vadd.f32 0.0, %v2091
    %v2093 = vpop.f32.mrf.mxu0
    %v2094 = vadd.f32 0.0, %v2093
    %2095 = vmatmul.bf16.gmra.mxu0 %v1855
    %v2096 = vpop.f32.mrf.mxu0
    %v2097 = vadd.f32 0.0, %v2096
    %v2098 = vpop.f32.mrf.mxu0
    %v2099 = vadd.f32 0.0, %v2098
    %2100 = vdwg.mxu0
    %2101 = vmatpush.bf16.msra.mxu0 0
    %2102 = vmatpush.bf16.msra.mxu0 0
    %2103 = vmatpush.bf16.msra.mxu0 0
    %2104 = vmatpush.bf16.msra.mxu0 0
    %2105 = vmatpush.bf16.msra.mxu0 0
    %2106 = vmatpush.bf16.msra.mxu0 0
    %2107 = vmatpush.bf16.msra.mxu0 %v1988
    %2108 = vmatpush.bf16.msra.mxu0 %v1985
    %2109 = vmatmul.bf16.gmra.mxu0 %v2021
    %v2110 = vpop.f32.mrf.mxu0
    %v2111 = vadd.f32 %v2087, %v2110
    %v2112 = vpop.f32.mrf.mxu0
    %v2113 = vadd.f32 %v2089, %v2112
    %2114 = vmatmul.bf16.gmra.mxu0 %v2024
    %v2115 = vpop.f32.mrf.mxu0
    %v2116 = vadd.f32 %v2092, %v2115
    %v2117 = vpop.f32.mrf.mxu0
    %v2118 = vadd.f32 %v2094, %v2117
    %2119 = vmatmul.bf16.gmra.mxu0 %v2027
    %v2120 = vpop.f32.mrf.mxu0
    %v2121 = vadd.f32 %v2097, %v2120
    %v2122 = vpop.f32.mrf.mxu0
    %v2123 = vadd.f32 %v2099, %v2122
    %2124 = vdwg.mxu0
    %2125 = vmatpush.bf16.msra.mxu0 %v1983
    %2126 = vmatpush.bf16.msra.mxu0 %v1980
    %2127 = vmatpush.bf16.msra.mxu0 %v1977
    %2128 = vmatpush.bf16.msra.mxu0 %v1974
    %2129 = vmatpush.bf16.msra.mxu0 %v1971
    %2130 = vmatpush.bf16.msra.mxu0 %v1968
    %2131 = vmatpush.bf16.msra.mxu0 %v1965
    %2132 = vmatpush.bf16.msra.mxu0 %v1962
    %2133 = vmatmul.bf16.gmra.mxu0 %v1851
    %v2134 = vpop.f32.mrf.mxu0
    %v2135 = vadd.f32 0.0, %v2134
    %v2136 = vpop.f32.mrf.mxu0
    %v2137 = vadd.f32 0.0, %v2136
    %2138 = vmatmul.bf16.gmra.mxu0 %v1853
    %v2139 = vpop.f32.mrf.mxu0
    %v2140 = vadd.f32 0.0, %v2139
    %v2141 = vpop.f32.mrf.mxu0
    %v2142 = vadd.f32 0.0, %v2141
    %2143 = vmatmul.bf16.gmra.mxu0 %v1855
    %v2144 = vpop.f32.mrf.mxu0
    %v2145 = vadd.f32 0.0, %v2144
    %v2146 = vpop.f32.mrf.mxu0
    %v2147 = vadd.f32 0.0, %v2146
    %2148 = vdwg.mxu0
    %2149 = vmatpush.bf16.msra.mxu0 0
    %2150 = vmatpush.bf16.msra.mxu0 0
    %2151 = vmatpush.bf16.msra.mxu0 0
    %2152 = vmatpush.bf16.msra.mxu0 0
    %2153 = vmatpush.bf16.msra.mxu0 0
    %2154 = vmatpush.bf16.msra.mxu0 0
    %2155 = vmatpush.bf16.msra.mxu0 %v1989
    %2156 = vmatpush.bf16.msra.mxu0 %v1986
    %2157 = vmatmul.bf16.gmra.mxu0 %v2021
    %v2158 = vpop.f32.mrf.mxu0
    %v2159 = vadd.f32 %v2135, %v2158
    %v2160 = vpop.f32.mrf.mxu0
    %v2161 = vadd.f32 %v2137, %v2160
    %2162 = vmatmul.bf16.gmra.mxu0 %v2024
    %v2163 = vpop.f32.mrf.mxu0
    %v2164 = vadd.f32 %v2140, %v2163
    %v2165 = vpop.f32.mrf.mxu0
    %v2166 = vadd.f32 %v2142, %v2165
    %2167 = vmatmul.bf16.gmra.mxu0 %v2027
    %v2168 = vpop.f32.mrf.mxu0
    %v2169 = vadd.f32 %v2145, %v2168
    %v2170 = vpop.f32.mrf.mxu0
    %v2171 = vadd.f32 %v2147, %v2170
    %2172 = vdwg.mxu0
    %v2173 = vadd.f32 %v1682, %v2063
    %v2174 = vadd.f32 %v1730, %v2111
    %v2175 = vadd.f32 %v1778, %v2159
    %v2176 = vadd.f32 %v1684, %v2065
    %v2177 = vadd.f32 %v1732, %v2113
    %v2178 = vadd.f32 %v1780, %v2161
    %v2179 = vadd.f32 %v1687, %v2068
    %v2180 = vadd.f32 %v1735, %v2116
    %v2181 = vadd.f32 %v1783, %v2164
    %v2182 = vadd.f32 %v1689, %v2070
    %v2183 = vadd.f32 %v1737, %v2118
    %v2184 = vadd.f32 %v1785, %v2166
    %v2185 = vadd.f32 %v1692, %v2073
    %v2186 = vadd.f32 %v1740, %v2121
    %v2187 = vadd.f32 %v1788, %v2169
    %v2188 = vadd.f32 %v1694, %v2075
    %v2189 = vadd.f32 %v1742, %v2123
    %v2190 = vadd.f32 %v1790, %v2171
    %s2191 = scalar_lea.vmem [#allocation6], 720
    %v2192 = vld [vmem:[%s2191] sm:$0xff]
    %v2193 = vld [vmem:[%s2191 + $0x8] sm:$0xf]
    %v2194 = vld [vmem:[%s2191 + $0xc] sm:$0xff]
    %v2195 = vld [vmem:[%s2191 + $0x14] sm:$0xf]
    %v2196 = vld [vmem:[%s2191 + $0x18] sm:$0xff]
    %v2197 = vld [vmem:[%s2191 + $0x20] sm:$0xf]
    %v2198 = vld [vmem:[%s2191 + $0x24] sm:$0xff]
    %v2199 = vld [vmem:[%s2191 + $0x2c] sm:$0xf]
    %v2200 = vld [vmem:[%s2191 + $0x30] sm:$0xff]
    %v2201 = vld [vmem:[%s2191 + $0x38] sm:$0xf]
    %v2202 = vld [vmem:[%s2191 + $0x3c] sm:$0xff]
    %v2203 = vld [vmem:[%s2191 + $0x44] sm:$0xf]
    %v2204 = vld [vmem:[%s2191 + $0x48] sm:$0xff]
    %v2205 = vld [vmem:[%s2191 + $0x50] sm:$0xf]
    %v2206 = vld [vmem:[%s2191 + $0x54] sm:$0xff]
    %v2207 = vld [vmem:[%s2191 + $0x5c] sm:$0xf]
    %v2208 = vld [vmem:[%s2191 + $0x60] sm:$0xff]
    %v2209 = vld [vmem:[%s2191 + $0x68] sm:$0xf]
    %v2210 = vld [vmem:[%s2191 + $0x6c] sm:$0xff]
    %v2211 = vld [vmem:[%s2191 + $0x74] sm:$0xf]
    %v2212 = vld [vmem:[%s2191 + $0x78] sm:$0xff]
    %v2213 = vld [vmem:[%s2191 + $0x80] sm:$0xf]
    %v2214 = vld [vmem:[%s2191 + $0x84] sm:$0xff]
    %v2215 = vld [vmem:[%s2191 + $0x8c] sm:$0xf]
    %v2216 = vld [vmem:[%s2191 + $0x90] sm:$0xff]
    %v2217 = vld [vmem:[%s2191 + $0x98] sm:$0xf]
    %v2218 = vld [vmem:[%s2191 + $0x9c] sm:$0xff]
    %v2219 = vld [vmem:[%s2191 + $0xa4] sm:$0xf]
    %v2220 = vld [vmem:[%s2191 + $0xa8] sm:$0xff]
    %v2221 = vld [vmem:[%s2191 + $0xb0] sm:$0xf]
    %v2222 = vld [vmem:[%s2191 + $0xb4] sm:$0xff]
    %v2223 = vld [vmem:[%s2191 + $0xbc] sm:$0xf]
    %v2224 = vld [vmem:[%s2191 + $0xc0] sm:$0xff]
    %v2225 = vld [vmem:[%s2191 + $0xc8] sm:$0xf]
    %v2226 = vld [vmem:[%s2191 + $0xcc] sm:$0xff]
    %v2227 = vld [vmem:[%s2191 + $0xd4] sm:$0xf]
    %v2228 = vld [vmem:[%s2191 + $0xd8] sm:$0xff]
    %v2229 = vld [vmem:[%s2191 + $0xe0] sm:$0xf]
    %v2230 = vld [vmem:[%s2191 + $0xe4] sm:$0xff]
    %v2231 = vld [vmem:[%s2191 + $0xec] sm:$0xf]
    %v2238 = vunpack.c.l.b16 %v1018
    %v2239 = vunpack.c.h.b16 %v1018
    %v2240 = vunpack.c.l.b16 %v1019
    %v2241 = vunpack.c.h.b16 %v1019
    %v2242 = vunpack.c.l.b16 %v1020
    %v2243 = vunpack.c.h.b16 %v1020
    %v2244 = vunpack.c.l.b16 %v1021
    %v2245 = vunpack.c.h.b16 %v1021
    %v2246 = vunpack.c.l.b16 %v1022
    %v2247 = vunpack.c.h.b16 %v1022
    %v2248 = vunpack.c.l.b16 %v1023
    %v2249 = vunpack.c.h.b16 %v1023
    %v2250 = vpack.c.b16 %v2240, %v2238
    %v2251 = vpack.c.b16 %v2241, %v2239
    %v2252 = vpack.c.b16 %v2244, %v2242
    %v2253 = vpack.c.b16 %v2245, %v2243
    %v2254 = vpack.c.b16 %v2248, %v2246
    %v2255 = vpack.c.b16 %v2249, %v2247
    %v2299 = vunpack.c.l.b16 %v2192
    %v2300 = vunpack.c.h.b16 %v2192
    %v2301 = vunpack.c.l.b16 %v2193
    %v2302 = vunpack.c.l.b16 %v2194
    %v2303 = vunpack.c.h.b16 %v2194
    %v2304 = vunpack.c.l.b16 %v2195
    %v2305 = vunpack.c.l.b16 %v2196
    %v2306 = vunpack.c.h.b16 %v2196
    %v2307 = vunpack.c.l.b16 %v2197
    %v2308 = vunpack.c.l.b16 %v2198
    %v2309 = vunpack.c.h.b16 %v2198
    %v2310 = vunpack.c.l.b16 %v2199
    %v2311 = vunpack.c.l.b16 %v2200
    %v2312 = vunpack.c.h.b16 %v2200
    %v2313 = vunpack.c.l.b16 %v2201
    %v2314 = vunpack.c.l.b16 %v2202
    %v2315 = vunpack.c.h.b16 %v2202
    %v2316 = vunpack.c.l.b16 %v2203
    %v2317 = vunpack.c.l.b16 %v2204
    %v2318 = vunpack.c.h.b16 %v2204
    %v2319 = vunpack.c.l.b16 %v2205
    %v2320 = vunpack.c.l.b16 %v2206
    %v2321 = vunpack.c.h.b16 %v2206
    %v2322 = vunpack.c.l.b16 %v2207
    %v2323 = vunpack.c.l.b16 %v2208
    %v2324 = vunpack.c.h.b16 %v2208
    %v2325 = vunpack.c.l.b16 %v2209
    %v2326 = vunpack.c.l.b16 %v2210
    %v2327 = vunpack.c.h.b16 %v2210
    %v2328 = vunpack.c.l.b16 %v2211
    %v2329 = vunpack.c.l.b16 %v2212
    %v2330 = vunpack.c.h.b16 %v2212
    %v2331 = vunpack.c.l.b16 %v2213
    %v2332 = vunpack.c.l.b16 %v2214
    %v2333 = vunpack.c.h.b16 %v2214
    %v2334 = vunpack.c.l.b16 %v2215
    %v2335 = vunpack.c.l.b16 %v2216
    %v2336 = vunpack.c.h.b16 %v2216
    %v2337 = vunpack.c.l.b16 %v2217
    %v2338 = vunpack.c.l.b16 %v2218
    %v2339 = vunpack.c.h.b16 %v2218
    %v2340 = vunpack.c.l.b16 %v2219
    %v2341 = vunpack.c.l.b16 %v2220
    %v2342 = vunpack.c.h.b16 %v2220
    %v2343 = vunpack.c.l.b16 %v2221
    %v2344 = vunpack.c.l.b16 %v2222
    %v2345 = vunpack.c.h.b16 %v2222
    %v2346 = vunpack.c.l.b16 %v2223
    %v2347 = vunpack.c.l.b16 %v2224
    %v2348 = vunpack.c.h.b16 %v2224
    %v2349 = vunpack.c.l.b16 %v2225
    %v2350 = vunpack.c.l.b16 %v2226
    %v2351 = vunpack.c.h.b16 %v2226
    %v2352 = vunpack.c.l.b16 %v2227
    %v2353 = vunpack.c.l.b16 %v2228
    %v2354 = vunpack.c.h.b16 %v2228
    %v2355 = vunpack.c.l.b16 %v2229
    %v2356 = vunpack.c.l.b16 %v2230
    %v2357 = vunpack.c.h.b16 %v2230
    %v2358 = vunpack.c.l.b16 %v2231
    %v2359 = vpack.c.b16 %v2302, %v2299
    %v2360 = vpack.c.b16 %v2303, %v2300
    %v2361 = vpack.c.b16 %v2304, %v2301
    %v2362 = vpack.c.b16 %v2308, %v2305
    %v2363 = vpack.c.b16 %v2309, %v2306
    %v2364 = vpack.c.b16 %v2310, %v2307
    %v2365 = vpack.c.b16 %v2314, %v2311
    %v2366 = vpack.c.b16 %v2315, %v2312
    %v2367 = vpack.c.b16 %v2316, %v2313
    %v2368 = vpack.c.b16 %v2320, %v2317
    %v2369 = vpack.c.b16 %v2321, %v2318
    %v2370 = vpack.c.b16 %v2322, %v2319
    %v2371 = vpack.c.b16 %v2326, %v2323
    %v2372 = vpack.c.b16 %v2327, %v2324
    %v2373 = vpack.c.b16 %v2328, %v2325
    %v2374 = vpack.c.b16 %v2332, %v2329
    %v2375 = vpack.c.b16 %v2333, %v2330
    %v2376 = vpack.c.b16 %v2334, %v2331
    %v2377 = vpack.c.b16 %v2338, %v2335
    %v2378 = vpack.c.b16 %v2339, %v2336
    %v2379 = vpack.c.b16 %v2340, %v2337
    %v2380 = vpack.c.b16 %v2344, %v2341
    %v2381 = vpack.c.b16 %v2345, %v2342
    %v2382 = vpack.c.b16 %v2346, %v2343
    %v2383 = vpack.c.b16 %v2350, %v2347
    %v2384 = vpack.c.b16 %v2351, %v2348
    %v2385 = vpack.c.b16 %v2352, %v2349
    %v2386 = vpack.c.b16 %v2356, %v2353
    %v2387 = vpack.c.b16 %v2357, %v2354
    %v2388 = vpack.c.b16 %v2358, %v2355
    %v2420 = vsel %vm1298, %v2251, 0
    %v2423 = vsel %vm1298, %v2253, 0
    %v2426 = vsel %vm1298, %v2255, 0
    %2428 = vmatpush.bf16.msra.mxu0 %v2380
    %2429 = vmatpush.bf16.msra.mxu0 %v2377
    %2430 = vmatpush.bf16.msra.mxu0 %v2374
    %2431 = vmatpush.bf16.msra.mxu0 %v2371
    %2432 = vmatpush.bf16.msra.mxu0 %v2368
    %2433 = vmatpush.bf16.msra.mxu0 %v2365
    %2434 = vmatpush.bf16.msra.mxu0 %v2362
    %2435 = vmatpush.bf16.msra.mxu0 %v2359
    %2436 = vmatmul.bf16.gmra.mxu0 %v2250
    %v2437 = vpop.f32.mrf.mxu0
    %v2438 = vadd.f32 0.0, %v2437
    %v2439 = vpop.f32.mrf.mxu0
    %v2440 = vadd.f32 0.0, %v2439
    %2441 = vmatmul.bf16.gmra.mxu0 %v2252
    %v2442 = vpop.f32.mrf.mxu0
    %v2443 = vadd.f32 0.0, %v2442
    %v2444 = vpop.f32.mrf.mxu0
    %v2445 = vadd.f32 0.0, %v2444
    %2446 = vmatmul.bf16.gmra.mxu0 %v2254
    %v2447 = vpop.f32.mrf.mxu0
    %v2448 = vadd.f32 0.0, %v2447
    %v2449 = vpop.f32.mrf.mxu0
    %v2450 = vadd.f32 0.0, %v2449
    %2451 = vdwg.mxu0
    %2452 = vmatpush.bf16.msra.mxu0 0
    %2453 = vmatpush.bf16.msra.mxu0 0
    %2454 = vmatpush.bf16.msra.mxu0 0
    %2455 = vmatpush.bf16.msra.mxu0 0
    %2456 = vmatpush.bf16.msra.mxu0 0
    %2457 = vmatpush.bf16.msra.mxu0 0
    %2458 = vmatpush.bf16.msra.mxu0 %v2386
    %2459 = vmatpush.bf16.msra.mxu0 %v2383
    %2460 = vmatmul.bf16.gmra.mxu0 %v2420
    %v2461 = vpop.f32.mrf.mxu0
    %v2462 = vadd.f32 %v2438, %v2461
    %v2463 = vpop.f32.mrf.mxu0
    %v2464 = vadd.f32 %v2440, %v2463
    %2465 = vmatmul.bf16.gmra.mxu0 %v2423
    %v2466 = vpop.f32.mrf.mxu0
    %v2467 = vadd.f32 %v2443, %v2466
    %v2468 = vpop.f32.mrf.mxu0
    %v2469 = vadd.f32 %v2445, %v2468
    %2470 = vmatmul.bf16.gmra.mxu0 %v2426
    %v2471 = vpop.f32.mrf.mxu0
    %v2472 = vadd.f32 %v2448, %v2471
    %v2473 = vpop.f32.mrf.mxu0
    %v2474 = vadd.f32 %v2450, %v2473
    %2475 = vdwg.mxu0
    %2476 = vmatpush.bf16.msra.mxu0 %v2381
    %2477 = vmatpush.bf16.msra.mxu0 %v2378
    %2478 = vmatpush.bf16.msra.mxu0 %v2375
    %2479 = vmatpush.bf16.msra.mxu0 %v2372
    %2480 = vmatpush.bf16.msra.mxu0 %v2369
    %2481 = vmatpush.bf16.msra.mxu0 %v2366
    %2482 = vmatpush.bf16.msra.mxu0 %v2363
    %2483 = vmatpush.bf16.msra.mxu0 %v2360
    %2484 = vmatmul.bf16.gmra.mxu0 %v2250
    %v2485 = vpop.f32.mrf.mxu0
    %v2486 = vadd.f32 0.0, %v2485
    %v2487 = vpop.f32.mrf.mxu0
    %v2488 = vadd.f32 0.0, %v2487
    %2489 = vmatmul.bf16.gmra.mxu0 %v2252
    %v2490 = vpop.f32.mrf.mxu0
    %v2491 = vadd.f32 0.0, %v2490
    %v2492 = vpop.f32.mrf.mxu0
    %v2493 = vadd.f32 0.0, %v2492
    %2494 = vmatmul.bf16.gmra.mxu0 %v2254
    %v2495 = vpop.f32.mrf.mxu0
    %v2496 = vadd.f32 0.0, %v2495
    %v2497 = vpop.f32.mrf.mxu0
    %v2498 = vadd.f32 0.0, %v2497
    %2499 = vdwg.mxu0
    %2500 = vmatpush.bf16.msra.mxu0 0
    %2501 = vmatpush.bf16.msra.mxu0 0
    %2502 = vmatpush.bf16.msra.mxu0 0
    %2503 = vmatpush.bf16.msra.mxu0 0
    %2504 = vmatpush.bf16.msra.mxu0 0
    %2505 = vmatpush.bf16.msra.mxu0 0
    %2506 = vmatpush.bf16.msra.mxu0 %v2387
    %2507 = vmatpush.bf16.msra.mxu0 %v2384
    %2508 = vmatmul.bf16.gmra.mxu0 %v2420
    %v2509 = vpop.f32.mrf.mxu0
    %v2510 = vadd.f32 %v2486, %v2509
    %v2511 = vpop.f32.mrf.mxu0
    %v2512 = vadd.f32 %v2488, %v2511
    %2513 = vmatmul.bf16.gmra.mxu0 %v2423
    %v2514 = vpop.f32.mrf.mxu0
    %v2515 = vadd.f32 %v2491, %v2514
    %v2516 = vpop.f32.mrf.mxu0
    %v2517 = vadd.f32 %v2493, %v2516
    %2518 = vmatmul.bf16.gmra.mxu0 %v2426
    %v2519 = vpop.f32.mrf.mxu0
    %v2520 = vadd.f32 %v2496, %v2519
    %v2521 = vpop.f32.mrf.mxu0
    %v2522 = vadd.f32 %v2498, %v2521
    %2523 = vdwg.mxu0
    %2524 = vmatpush.bf16.msra.mxu0 %v2382
    %2525 = vmatpush.bf16.msra.mxu0 %v2379
    %2526 = vmatpush.bf16.msra.mxu0 %v2376
    %2527 = vmatpush.bf16.msra.mxu0 %v2373
    %2528 = vmatpush.bf16.msra.mxu0 %v2370
    %2529 = vmatpush.bf16.msra.mxu0 %v2367
    %2530 = vmatpush.bf16.msra.mxu0 %v2364
    %2531 = vmatpush.bf16.msra.mxu0 %v2361
    %2532 = vmatmul.bf16.gmra.mxu0 %v2250
    %v2533 = vpop.f32.mrf.mxu0
    %v2534 = vadd.f32 0.0, %v2533
    %v2535 = vpop.f32.mrf.mxu0
    %v2536 = vadd.f32 0.0, %v2535
    %2537 = vmatmul.bf16.gmra.mxu0 %v2252
    %v2538 = vpop.f32.mrf.mxu0
    %v2539 = vadd.f32 0.0, %v2538
    %v2540 = vpop.f32.mrf.mxu0
    %v2541 = vadd.f32 0.0, %v2540
    %2542 = vmatmul.bf16.gmra.mxu0 %v2254
    %v2543 = vpop.f32.mrf.mxu0
    %v2544 = vadd.f32 0.0, %v2543
    %v2545 = vpop.f32.mrf.mxu0
    %v2546 = vadd.f32 0.0, %v2545
    %2547 = vdwg.mxu0
    %2548 = vmatpush.bf16.msra.mxu0 0
    %2549 = vmatpush.bf16.msra.mxu0 0
    %2550 = vmatpush.bf16.msra.mxu0 0
    %2551 = vmatpush.bf16.msra.mxu0 0
    %2552 = vmatpush.bf16.msra.mxu0 0
    %2553 = vmatpush.bf16.msra.mxu0 0
    %2554 = vmatpush.bf16.msra.mxu0 %v2388
    %2555 = vmatpush.bf16.msra.mxu0 %v2385
    %2556 = vmatmul.bf16.gmra.mxu0 %v2420
    %v2557 = vpop.f32.mrf.mxu0
    %v2558 = vadd.f32 %v2534, %v2557
    %v2559 = vpop.f32.mrf.mxu0
    %v2560 = vadd.f32 %v2536, %v2559
    %2561 = vmatmul.bf16.gmra.mxu0 %v2423
    %v2562 = vpop.f32.mrf.mxu0
    %v2563 = vadd.f32 %v2539, %v2562
    %v2564 = vpop.f32.mrf.mxu0
    %v2565 = vadd.f32 %v2541, %v2564
    %2566 = vmatmul.bf16.gmra.mxu0 %v2426
    %v2567 = vpop.f32.mrf.mxu0
    %v2568 = vadd.f32 %v2544, %v2567
    %v2569 = vpop.f32.mrf.mxu0
    %v2570 = vadd.f32 %v2546, %v2569
    %2571 = vdwg.mxu0
    %v2572 = vadd.f32 %v2173, %v2462
    %v2573 = vadd.f32 %v2174, %v2510
    %v2574 = vadd.f32 %v2175, %v2558
    %v2575 = vadd.f32 %v2176, %v2464
    %v2576 = vadd.f32 %v2177, %v2512
    %v2577 = vadd.f32 %v2178, %v2560
    %v2578 = vadd.f32 %v2179, %v2467
    %v2579 = vadd.f32 %v2180, %v2515
    %v2580 = vadd.f32 %v2181, %v2563
    %v2581 = vadd.f32 %v2182, %v2469
    %v2582 = vadd.f32 %v2183, %v2517
    %v2583 = vadd.f32 %v2184, %v2565
    %v2584 = vadd.f32 %v2185, %v2472
    %v2585 = vadd.f32 %v2186, %v2520
    %v2586 = vadd.f32 %v2187, %v2568
    %v2587 = vadd.f32 %v2188, %v2474
    %v2588 = vadd.f32 %v2189, %v2522
    %v2589 = vadd.f32 %v2190, %v2570
    %s2590 = scalar_lea.vmem [#allocation6], 960
    %v2591 = vld [vmem:[%s2590] sm:$0xff]
    %v2592 = vld [vmem:[%s2590 + $0x8] sm:$0xf]
    %v2593 = vld [vmem:[%s2590 + $0xc] sm:$0xff]
    %v2594 = vld [vmem:[%s2590 + $0x14] sm:$0xf]
    %v2595 = vld [vmem:[%s2590 + $0x18] sm:$0xff]
    %v2596 = vld [vmem:[%s2590 + $0x20] sm:$0xf]
    %v2597 = vld [vmem:[%s2590 + $0x24] sm:$0xff]
    %v2598 = vld [vmem:[%s2590 + $0x2c] sm:$0xf]
    %v2599 = vld [vmem:[%s2590 + $0x30] sm:$0xff]
    %v2600 = vld [vmem:[%s2590 + $0x38] sm:$0xf]
    %v2601 = vld [vmem:[%s2590 + $0x3c] sm:$0xff]
    %v2602 = vld [vmem:[%s2590 + $0x44] sm:$0xf]
    %v2603 = vld [vmem:[%s2590 + $0x48] sm:$0xff]
    %v2604 = vld [vmem:[%s2590 + $0x50] sm:$0xf]
    %v2605 = vld [vmem:[%s2590 + $0x54] sm:$0xff]
    %v2606 = vld [vmem:[%s2590 + $0x5c] sm:$0xf]
    %v2607 = vld [vmem:[%s2590 + $0x60] sm:$0xff]
    %v2608 = vld [vmem:[%s2590 + $0x68] sm:$0xf]
    %v2609 = vld [vmem:[%s2590 + $0x6c] sm:$0xff]
    %v2610 = vld [vmem:[%s2590 + $0x74] sm:$0xf]
    %v2611 = vld [vmem:[%s2590 + $0x78] sm:$0xff]
    %v2612 = vld [vmem:[%s2590 + $0x80] sm:$0xf]
    %v2613 = vld [vmem:[%s2590 + $0x84] sm:$0xff]
    %v2614 = vld [vmem:[%s2590 + $0x8c] sm:$0xf]
    %v2615 = vld [vmem:[%s2590 + $0x90] sm:$0xff]
    %v2616 = vld [vmem:[%s2590 + $0x98] sm:$0xf]
    %v2617 = vld [vmem:[%s2590 + $0x9c] sm:$0xff]
    %v2618 = vld [vmem:[%s2590 + $0xa4] sm:$0xf]
    %v2619 = vld [vmem:[%s2590 + $0xa8] sm:$0xff]
    %v2620 = vld [vmem:[%s2590 + $0xb0] sm:$0xf]
    %v2621 = vld [vmem:[%s2590 + $0xb4] sm:$0xff]
    %v2622 = vld [vmem:[%s2590 + $0xbc] sm:$0xf]
    %v2623 = vld [vmem:[%s2590 + $0xc0] sm:$0xff]
    %v2624 = vld [vmem:[%s2590 + $0xc8] sm:$0xf]
    %v2625 = vld [vmem:[%s2590 + $0xcc] sm:$0xff]
    %v2626 = vld [vmem:[%s2590 + $0xd4] sm:$0xf]
    %v2627 = vld [vmem:[%s2590 + $0xd8] sm:$0xff]
    %v2628 = vld [vmem:[%s2590 + $0xe0] sm:$0xf]
    %v2629 = vld [vmem:[%s2590 + $0xe4] sm:$0xff]
    %v2630 = vld [vmem:[%s2590 + $0xec] sm:$0xf]
    %v2637 = vunpack.c.l.b16 %v1024
    %v2638 = vunpack.c.h.b16 %v1024
    %v2639 = vunpack.c.l.b16 %v1025
    %v2640 = vunpack.c.h.b16 %v1025
    %v2641 = vunpack.c.l.b16 %v1026
    %v2642 = vunpack.c.h.b16 %v1026
    %v2643 = vunpack.c.l.b16 %v1027
    %v2644 = vunpack.c.h.b16 %v1027
    %v2645 = vunpack.c.l.b16 %v1028
    %v2646 = vunpack.c.h.b16 %v1028
    %v2647 = vunpack.c.l.b16 %v1029
    %v2648 = vunpack.c.h.b16 %v1029
    %v2649 = vpack.c.b16 %v2639, %v2637
    %v2650 = vpack.c.b16 %v2640, %v2638
    %v2651 = vpack.c.b16 %v2643, %v2641
    %v2652 = vpack.c.b16 %v2644, %v2642
    %v2653 = vpack.c.b16 %v2647, %v2645
    %v2654 = vpack.c.b16 %v2648, %v2646
    %v2698 = vunpack.c.l.b16 %v2591
    %v2699 = vunpack.c.h.b16 %v2591
    %v2700 = vunpack.c.l.b16 %v2592
    %v2701 = vunpack.c.l.b16 %v2593
    %v2702 = vunpack.c.h.b16 %v2593
    %v2703 = vunpack.c.l.b16 %v2594
    %v2704 = vunpack.c.l.b16 %v2595
    %v2705 = vunpack.c.h.b16 %v2595
    %v2706 = vunpack.c.l.b16 %v2596
    %v2707 = vunpack.c.l.b16 %v2597
    %v2708 = vunpack.c.h.b16 %v2597
    %v2709 = vunpack.c.l.b16 %v2598
    %v2710 = vunpack.c.l.b16 %v2599
    %v2711 = vunpack.c.h.b16 %v2599
    %v2712 = vunpack.c.l.b16 %v2600
    %v2713 = vunpack.c.l.b16 %v2601
    %v2714 = vunpack.c.h.b16 %v2601
    %v2715 = vunpack.c.l.b16 %v2602
    %v2716 = vunpack.c.l.b16 %v2603
    %v2717 = vunpack.c.h.b16 %v2603
    %v2718 = vunpack.c.l.b16 %v2604
    %v2719 = vunpack.c.l.b16 %v2605
    %v2720 = vunpack.c.h.b16 %v2605
    %v2721 = vunpack.c.l.b16 %v2606
    %v2722 = vunpack.c.l.b16 %v2607
    %v2723 = vunpack.c.h.b16 %v2607
    %v2724 = vunpack.c.l.b16 %v2608
    %v2725 = vunpack.c.l.b16 %v2609
    %v2726 = vunpack.c.h.b16 %v2609
    %v2727 = vunpack.c.l.b16 %v2610
    %v2728 = vunpack.c.l.b16 %v2611
    %v2729 = vunpack.c.h.b16 %v2611
    %v2730 = vunpack.c.l.b16 %v2612
    %v2731 = vunpack.c.l.b16 %v2613
    %v2732 = vunpack.c.h.b16 %v2613
    %v2733 = vunpack.c.l.b16 %v2614
    %v2734 = vunpack.c.l.b16 %v2615
    %v2735 = vunpack.c.h.b16 %v2615
    %v2736 = vunpack.c.l.b16 %v2616
    %v2737 = vunpack.c.l.b16 %v2617
    %v2738 = vunpack.c.h.b16 %v2617
    %v2739 = vunpack.c.l.b16 %v2618
    %v2740 = vunpack.c.l.b16 %v2619
    %v2741 = vunpack.c.h.b16 %v2619
    %v2742 = vunpack.c.l.b16 %v2620
    %v2743 = vunpack.c.l.b16 %v2621
    %v2744 = vunpack.c.h.b16 %v2621
    %v2745 = vunpack.c.l.b16 %v2622
    %v2746 = vunpack.c.l.b16 %v2623
    %v2747 = vunpack.c.h.b16 %v2623
    %v2748 = vunpack.c.l.b16 %v2624
    %v2749 = vunpack.c.l.b16 %v2625
    %v2750 = vunpack.c.h.b16 %v2625
    %v2751 = vunpack.c.l.b16 %v2626
    %v2752 = vunpack.c.l.b16 %v2627
    %v2753 = vunpack.c.h.b16 %v2627
    %v2754 = vunpack.c.l.b16 %v2628
    %v2755 = vunpack.c.l.b16 %v2629
    %v2756 = vunpack.c.h.b16 %v2629
    %v2757 = vunpack.c.l.b16 %v2630
    %v2758 = vpack.c.b16 %v2701, %v2698
    %v2759 = vpack.c.b16 %v2702, %v2699
    %v2760 = vpack.c.b16 %v2703, %v2700
    %v2761 = vpack.c.b16 %v2707, %v2704
    %v2762 = vpack.c.b16 %v2708, %v2705
    %v2763 = vpack.c.b16 %v2709, %v2706
    %v2764 = vpack.c.b16 %v2713, %v2710
    %v2765 = vpack.c.b16 %v2714, %v2711
    %v2766 = vpack.c.b16 %v2715, %v2712
    %v2767 = vpack.c.b16 %v2719, %v2716
    %v2768 = vpack.c.b16 %v2720, %v2717
    %v2769 = vpack.c.b16 %v2721, %v2718
    %v2770 = vpack.c.b16 %v2725, %v2722
    %v2771 = vpack.c.b16 %v2726, %v2723
    %v2772 = vpack.c.b16 %v2727, %v2724
    %v2773 = vpack.c.b16 %v2731, %v2728
    %v2774 = vpack.c.b16 %v2732, %v2729
    %v2775 = vpack.c.b16 %v2733, %v2730
    %v2776 = vpack.c.b16 %v2737, %v2734
    %v2777 = vpack.c.b16 %v2738, %v2735
    %v2778 = vpack.c.b16 %v2739, %v2736
    %v2779 = vpack.c.b16 %v2743, %v2740
    %v2780 = vpack.c.b16 %v2744, %v2741
    %v2781 = vpack.c.b16 %v2745, %v2742
    %v2782 = vpack.c.b16 %v2749, %v2746
    %v2783 = vpack.c.b16 %v2750, %v2747
    %v2784 = vpack.c.b16 %v2751, %v2748
    %v2785 = vpack.c.b16 %v2755, %v2752
    %v2786 = vpack.c.b16 %v2756, %v2753
    %v2787 = vpack.c.b16 %v2757, %v2754
    %v2819 = vsel %vm1298, %v2650, 0
    %v2822 = vsel %vm1298, %v2652, 0
    %v2825 = vsel %vm1298, %v2654, 0
    %2827 = vmatpush.bf16.msra.mxu0 %v2779
    %2828 = vmatpush.bf16.msra.mxu0 %v2776
    %2829 = vmatpush.bf16.msra.mxu0 %v2773
    %2830 = vmatpush.bf16.msra.mxu0 %v2770
    %2831 = vmatpush.bf16.msra.mxu0 %v2767
    %2832 = vmatpush.bf16.msra.mxu0 %v2764
    %2833 = vmatpush.bf16.msra.mxu0 %v2761
    %2834 = vmatpush.bf16.msra.mxu0 %v2758
    %2835 = vmatmul.bf16.gmra.mxu0 %v2649
    %v2836 = vpop.f32.mrf.mxu0
    %v2837 = vadd.f32 0.0, %v2836
    %v2838 = vpop.f32.mrf.mxu0
    %v2839 = vadd.f32 0.0, %v2838
    %2840 = vmatmul.bf16.gmra.mxu0 %v2651
    %v2841 = vpop.f32.mrf.mxu0
    %v2842 = vadd.f32 0.0, %v2841
    %v2843 = vpop.f32.mrf.mxu0
    %v2844 = vadd.f32 0.0, %v2843
    %2845 = vmatmul.bf16.gmra.mxu0 %v2653
    %v2846 = vpop.f32.mrf.mxu0
    %v2847 = vadd.f32 0.0, %v2846
    %v2848 = vpop.f32.mrf.mxu0
    %v2849 = vadd.f32 0.0, %v2848
    %2850 = vdwg.mxu0
    %2851 = vmatpush.bf16.msra.mxu0 0
    %2852 = vmatpush.bf16.msra.mxu0 0
    %2853 = vmatpush.bf16.msra.mxu0 0
    %2854 = vmatpush.bf16.msra.mxu0 0
    %2855 = vmatpush.bf16.msra.mxu0 0
    %2856 = vmatpush.bf16.msra.mxu0 0
    %2857 = vmatpush.bf16.msra.mxu0 %v2785
    %2858 = vmatpush.bf16.msra.mxu0 %v2782
    %2859 = vmatmul.bf16.gmra.mxu0 %v2819
    %v2860 = vpop.f32.mrf.mxu0
    %v2861 = vadd.f32 %v2837, %v2860
    %v2862 = vpop.f32.mrf.mxu0
    %v2863 = vadd.f32 %v2839, %v2862
    %2864 = vmatmul.bf16.gmra.mxu0 %v2822
    %v2865 = vpop.f32.mrf.mxu0
    %v2866 = vadd.f32 %v2842, %v2865
    %v2867 = vpop.f32.mrf.mxu0
    %v2868 = vadd.f32 %v2844, %v2867
    %2869 = vmatmul.bf16.gmra.mxu0 %v2825
    %v2870 = vpop.f32.mrf.mxu0
    %v2871 = vadd.f32 %v2847, %v2870
    %v2872 = vpop.f32.mrf.mxu0
    %v2873 = vadd.f32 %v2849, %v2872
    %2874 = vdwg.mxu0
    %2875 = vmatpush.bf16.msra.mxu0 %v2780
    %2876 = vmatpush.bf16.msra.mxu0 %v2777
    %2877 = vmatpush.bf16.msra.mxu0 %v2774
    %2878 = vmatpush.bf16.msra.mxu0 %v2771
    %2879 = vmatpush.bf16.msra.mxu0 %v2768
    %2880 = vmatpush.bf16.msra.mxu0 %v2765
    %2881 = vmatpush.bf16.msra.mxu0 %v2762
    %2882 = vmatpush.bf16.msra.mxu0 %v2759
    %2883 = vmatmul.bf16.gmra.mxu0 %v2649
    %v2884 = vpop.f32.mrf.mxu0
    %v2885 = vadd.f32 0.0, %v2884
    %v2886 = vpop.f32.mrf.mxu0
    %v2887 = vadd.f32 0.0, %v2886
    %2888 = vmatmul.bf16.gmra.mxu0 %v2651
    %v2889 = vpop.f32.mrf.mxu0
    %v2890 = vadd.f32 0.0, %v2889
    %v2891 = vpop.f32.mrf.mxu0
    %v2892 = vadd.f32 0.0, %v2891
    %2893 = vmatmul.bf16.gmra.mxu0 %v2653
    %v2894 = vpop.f32.mrf.mxu0
    %v2895 = vadd.f32 0.0, %v2894
    %v2896 = vpop.f32.mrf.mxu0
    %v2897 = vadd.f32 0.0, %v2896
    %2898 = vdwg.mxu0
    %2899 = vmatpush.bf16.msra.mxu0 0
    %2900 = vmatpush.bf16.msra.mxu0 0
    %2901 = vmatpush.bf16.msra.mxu0 0
    %2902 = vmatpush.bf16.msra.mxu0 0
    %2903 = vmatpush.bf16.msra.mxu0 0
    %2904 = vmatpush.bf16.msra.mxu0 0
    %2905 = vmatpush.bf16.msra.mxu0 %v2786
    %2906 = vmatpush.bf16.msra.mxu0 %v2783
    %2907 = vmatmul.bf16.gmra.mxu0 %v2819
    %v2908 = vpop.f32.mrf.mxu0
    %v2909 = vadd.f32 %v2885, %v2908
    %v2910 = vpop.f32.mrf.mxu0
    %v2911 = vadd.f32 %v2887, %v2910
    %2912 = vmatmul.bf16.gmra.mxu0 %v2822
    %v2913 = vpop.f32.mrf.mxu0
    %v2914 = vadd.f32 %v2890, %v2913
    %v2915 = vpop.f32.mrf.mxu0
    %v2916 = vadd.f32 %v2892, %v2915
    %2917 = vmatmul.bf16.gmra.mxu0 %v2825
    %v2918 = vpop.f32.mrf.mxu0
    %v2919 = vadd.f32 %v2895, %v2918
    %v2920 = vpop.f32.mrf.mxu0
    %v2921 = vadd.f32 %v2897, %v2920
    %2922 = vdwg.mxu0
    %2923 = vmatpush.bf16.msra.mxu0 %v2781
    %2924 = vmatpush.bf16.msra.mxu0 %v2778
    %2925 = vmatpush.bf16.msra.mxu0 %v2775
    %2926 = vmatpush.bf16.msra.mxu0 %v2772
    %2927 = vmatpush.bf16.msra.mxu0 %v2769
    %2928 = vmatpush.bf16.msra.mxu0 %v2766
    %2929 = vmatpush.bf16.msra.mxu0 %v2763
    %2930 = vmatpush.bf16.msra.mxu0 %v2760
    %2931 = vmatmul.bf16.gmra.mxu0 %v2649
    %v2932 = vpop.f32.mrf.mxu0
    %v2933 = vadd.f32 0.0, %v2932
    %v2934 = vpop.f32.mrf.mxu0
    %v2935 = vadd.f32 0.0, %v2934
    %2936 = vmatmul.bf16.gmra.mxu0 %v2651
    %v2937 = vpop.f32.mrf.mxu0
    %v2938 = vadd.f32 0.0, %v2937
    %v2939 = vpop.f32.mrf.mxu0
    %v2940 = vadd.f32 0.0, %v2939
    %2941 = vmatmul.bf16.gmra.mxu0 %v2653
    %v2942 = vpop.f32.mrf.mxu0
    %v2943 = vadd.f32 0.0, %v2942
    %v2944 = vpop.f32.mrf.mxu0
    %v2945 = vadd.f32 0.0, %v2944
    %2946 = vdwg.mxu0
    %2947 = vmatpush.bf16.msra.mxu0 0
    %2948 = vmatpush.bf16.msra.mxu0 0
    %2949 = vmatpush.bf16.msra.mxu0 0
    %2950 = vmatpush.bf16.msra.mxu0 0
    %2951 = vmatpush.bf16.msra.mxu0 0
    %2952 = vmatpush.bf16.msra.mxu0 0
    %2953 = vmatpush.bf16.msra.mxu0 %v2787
    %2954 = vmatpush.bf16.msra.mxu0 %v2784
    %2955 = vmatmul.bf16.gmra.mxu0 %v2819
    %v2956 = vpop.f32.mrf.mxu0
    %v2957 = vadd.f32 %v2933, %v2956
    %v2958 = vpop.f32.mrf.mxu0
    %v2959 = vadd.f32 %v2935, %v2958
    %2960 = vmatmul.bf16.gmra.mxu0 %v2822
    %v2961 = vpop.f32.mrf.mxu0
    %v2962 = vadd.f32 %v2938, %v2961
    %v2963 = vpop.f32.mrf.mxu0
    %v2964 = vadd.f32 %v2940, %v2963
    %2965 = vmatmul.bf16.gmra.mxu0 %v2825
    %v2966 = vpop.f32.mrf.mxu0
    %v2967 = vadd.f32 %v2943, %v2966
    %v2968 = vpop.f32.mrf.mxu0
    %v2969 = vadd.f32 %v2945, %v2968
    %2970 = vdwg.mxu0
    %v2971 = vadd.f32 %v2572, %v2861
    %v2972 = vadd.f32 %v2573, %v2909
    %v2973 = vadd.f32 %v2574, %v2957
    %v2974 = vadd.f32 %v2575, %v2863
    %v2975 = vadd.f32 %v2576, %v2911
    %v2976 = vadd.f32 %v2577, %v2959
    %v2977 = vadd.f32 %v2578, %v2866
    %v2978 = vadd.f32 %v2579, %v2914
    %v2979 = vadd.f32 %v2580, %v2962
    %v2980 = vadd.f32 %v2581, %v2868
    %v2981 = vadd.f32 %v2582, %v2916
    %v2982 = vadd.f32 %v2583, %v2964
    %v2983 = vadd.f32 %v2584, %v2871
    %v2984 = vadd.f32 %v2585, %v2919
    %v2985 = vadd.f32 %v2586, %v2967
    %v2986 = vadd.f32 %v2587, %v2873
    %v2987 = vadd.f32 %v2588, %v2921
    %v2988 = vadd.f32 %v2589, %v2969
    %v2989 = vld [vmem:[%s3] sm:$0x7]
    %v2991 = vperm.slane %v2989, 0
    %v2992 = vperm.slane %v2989, 1
    %v2993 = vperm.slane %v2989, 2
    %v2997 = vadd.f32 %v2971, %v2991
    %v2998 = vadd.f32 %v2972, %v2992
    %v2999 = vadd.f32 %v2973, %v2993
    %v3000 = vadd.f32 %v2974, %v2991
    %v3001 = vadd.f32 %v2975, %v2992
    %v3002 = vadd.f32 %v2976, %v2993
    %v3003 = vadd.f32 %v2977, %v2991
    %v3004 = vadd.f32 %v2978, %v2992
    %v3005 = vadd.f32 %v2979, %v2993
    %v3006 = vadd.f32 %v2980, %v2991
    %v3007 = vadd.f32 %v2981, %v2992
    %v3008 = vadd.f32 %v2982, %v2993
    %v3009 = vadd.f32 %v2983, %v2991
    %v3010 = vadd.f32 %v2984, %v2992
    %v3011 = vadd.f32 %v2985, %v2993
    %v3012 = vadd.f32 %v2986, %v2991
    %v3013 = vadd.f32 %v2987, %v2992
    %v3014 = vadd.f32 %v2988, %v2993
    %v3015 = vmax.f32 %v2997, 0.0
    %v3016 = vmax.f32 %v2998, 0.0
    %v3017 = vmax.f32 %v2999, 0.0
    %v3018 = vmax.f32 %v3000, 0.0
    %v3019 = vmax.f32 %v3001, 0.0
    %v3020 = vmax.f32 %v3002, 0.0
    %v3021 = vmax.f32 %v3003, 0.0
    %v3022 = vmax.f32 %v3004, 0.0
    %v3023 = vmax.f32 %v3005, 0.0
    %v3024 = vmax.f32 %v3006, 0.0
    %v3025 = vmax.f32 %v3007, 0.0
    %v3026 = vmax.f32 %v3008, 0.0
    %v3027 = vmax.f32 %v3009, 0.0
    %v3028 = vmax.f32 %v3010, 0.0
    %v3029 = vmax.f32 %v3011, 0.0
    %v3030 = vmax.f32 %v3012, 0.0
    %v3031 = vmax.f32 %v3013, 0.0
    %v3032 = vmax.f32 %v3014, 0.0
    %v3033 = vpack.c.bf16 %v3018, %v3015
    %v3034 = vpack.c.bf16 %v3019, %v3016
    %v3035 = vpack.c.bf16 %v3020, %v3017
    %v3036 = vpack.c.bf16 %v3024, %v3021
    %v3037 = vpack.c.bf16 %v3025, %v3022
    %v3038 = vpack.c.bf16 %v3026, %v3023
    %v3039 = vpack.c.bf16 %v3030, %v3027
    %v3040 = vpack.c.bf16 %v3031, %v3028
    %v3041 = vpack.c.bf16 %v3032, %v3029
    %s3042 = smul.u32 4, 5
    %s3043 = smul.u32 %s3042, 36
    %s3044 = smul.u32 %s3043, 2
    %s3045 = sshll.u32 %s3044, 4
    %3046 = dma.done [#allocation5], %s3045
    %v3047 = vld [vmem:[%s4] sm:$0xf]
    %v3048 = vld [vmem:[%s4 + $0x4] sm:$0xf]
    %v3049 = vld [vmem:[%s4 + $0x8] sm:$0xf]
    %v3050 = vld [vmem:[%s4 + $0xc] sm:$0xf]
    %v3051 = vld [vmem:[%s4 + $0x10] sm:$0xf]
    %v3052 = vld [vmem:[%s4 + $0x14] sm:$0xf]
    %v3053 = vld [vmem:[%s4 + $0x18] sm:$0xf]
    %v3054 = vld [vmem:[%s4 + $0x1c] sm:$0xf]
    %v3055 = vld [vmem:[%s4 + $0x20] sm:$0xf]
    %v3056 = vld [vmem:[%s4 + $0x24] sm:$0xf]
    %v3067 = vunpack.c.l.b16 %v3047
    %v3068 = vunpack.c.l.b16 %v3048
    %v3069 = vunpack.c.l.b16 %v3049
    %v3070 = vunpack.c.l.b16 %v3050
    %v3071 = vunpack.c.l.b16 %v3051
    %v3072 = vunpack.c.l.b16 %v3052
    %v3073 = vunpack.c.l.b16 %v3053
    %v3074 = vunpack.c.l.b16 %v3054
    %v3075 = vunpack.c.l.b16 %v3055
    %v3076 = vunpack.c.l.b16 %v3056
    %v3077 = vpack.c.b16 %v3068, %v3067
    %v3078 = vpack.c.b16 %v3070, %v3069
    %v3079 = vpack.c.b16 %v3072, %v3071
    %v3080 = vpack.c.b16 %v3074, %v3073
    %v3081 = vpack.c.b16 %v3076, %v3075
    %vm3082 = vcmask 392192
    %v3084 = vsel %vm3082, %v3077, 0
    %v3087 = vsel %vm3082, %v3078, 0
    %v3090 = vsel %vm3082, %v3079, 0
    %v3093 = vsel %vm3082, %v3080, 0
    %v3096 = vsel %vm3082, %v3081, 0
    %3098 = vmatpush.bf16.msra.mxu0 0
    %3099 = vmatpush.bf16.msra.mxu0 0
    %3100 = vmatpush.bf16.msra.mxu0 0
    %3101 = vmatpush.bf16.msra.mxu0 0
    %3102 = vmatpush.bf16.msra.mxu0 0
    %3103 = vmatpush.bf16.msra.mxu0 %v3039
    %3104 = vmatpush.bf16.msra.mxu0 %v3036
    %3105 = vmatpush.bf16.msra.mxu0 %v3033
    %3106 = vmatmul.bf16.gmra.mxu0 %v3084
    %v3107 = vpop.f32.mrf.mxu0
    %v3108 = vadd.f32 0.0, %v3107
    %v3109 = vpop.f32.mrf.mxu0
    %v3110 = vadd.f32 0.0, %v3109
    %3111 = vmatmul.bf16.gmra.mxu0 %v3087
    %v3112 = vpop.f32.mrf.mxu0
    %v3113 = vadd.f32 0.0, %v3112
    %v3114 = vpop.f32.mrf.mxu0
    %v3115 = vadd.f32 0.0, %v3114
    %3116 = vmatmul.bf16.gmra.mxu0 %v3090
    %v3117 = vpop.f32.mrf.mxu0
    %v3118 = vadd.f32 0.0, %v3117
    %v3119 = vpop.f32.mrf.mxu0
    %v3120 = vadd.f32 0.0, %v3119
    %3121 = vmatmul.bf16.gmra.mxu0 %v3093
    %v3122 = vpop.f32.mrf.mxu0
    %v3123 = vadd.f32 0.0, %v3122
    %v3124 = vpop.f32.mrf.mxu0
    %v3125 = vadd.f32 0.0, %v3124
    %3126 = vmatmul.bf16.gmra.mxu0 %v3096
    %v3127 = vpop.f32.mrf.mxu0
    %v3128 = vadd.f32 0.0, %v3127
    %v3129 = vpop.f32.mrf.mxu0
    %v3130 = vadd.f32 0.0, %v3129
    %3131 = vdwg.mxu0
    %3132 = vmatpush.bf16.msra.mxu0 0
    %3133 = vmatpush.bf16.msra.mxu0 0
    %3134 = vmatpush.bf16.msra.mxu0 0
    %3135 = vmatpush.bf16.msra.mxu0 0
    %3136 = vmatpush.bf16.msra.mxu0 0
    %3137 = vmatpush.bf16.msra.mxu0 %v3040
    %3138 = vmatpush.bf16.msra.mxu0 %v3037
    %3139 = vmatpush.bf16.msra.mxu0 %v3034
    %3140 = vmatmul.bf16.gmra.mxu0 %v3084
    %v3141 = vpop.f32.mrf.mxu0
    %v3142 = vadd.f32 0.0, %v3141
    %v3143 = vpop.f32.mrf.mxu0
    %v3144 = vadd.f32 0.0, %v3143
    %3145 = vmatmul.bf16.gmra.mxu0 %v3087
    %v3146 = vpop.f32.mrf.mxu0
    %v3147 = vadd.f32 0.0, %v3146
    %v3148 = vpop.f32.mrf.mxu0
    %v3149 = vadd.f32 0.0, %v3148
    %3150 = vmatmul.bf16.gmra.mxu0 %v3090
    %v3151 = vpop.f32.mrf.mxu0
    %v3152 = vadd.f32 0.0, %v3151
    %v3153 = vpop.f32.mrf.mxu0
    %v3154 = vadd.f32 0.0, %v3153
    %3155 = vmatmul.bf16.gmra.mxu0 %v3093
    %v3156 = vpop.f32.mrf.mxu0
    %v3157 = vadd.f32 0.0, %v3156
    %v3158 = vpop.f32.mrf.mxu0
    %v3159 = vadd.f32 0.0, %v3158
    %3160 = vmatmul.bf16.gmra.mxu0 %v3096
    %v3161 = vpop.f32.mrf.mxu0
    %v3162 = vadd.f32 0.0, %v3161
    %v3163 = vpop.f32.mrf.mxu0
    %v3164 = vadd.f32 0.0, %v3163
    %3165 = vdwg.mxu0
    %3166 = vmatpush.bf16.msra.mxu0 0
    %3167 = vmatpush.bf16.msra.mxu0 0
    %3168 = vmatpush.bf16.msra.mxu0 0
    %3169 = vmatpush.bf16.msra.mxu0 0
    %3170 = vmatpush.bf16.msra.mxu0 0
    %3171 = vmatpush.bf16.msra.mxu0 %v3041
    %3172 = vmatpush.bf16.msra.mxu0 %v3038
    %3173 = vmatpush.bf16.msra.mxu0 %v3035
    %3174 = vmatmul.bf16.gmra.mxu0 %v3084
    %v3175 = vpop.f32.mrf.mxu0
    %v3176 = vadd.f32 0.0, %v3175
    %v3177 = vpop.f32.mrf.mxu0
    %v3178 = vadd.f32 0.0, %v3177
    %3179 = vmatmul.bf16.gmra.mxu0 %v3087
    %v3180 = vpop.f32.mrf.mxu0
    %v3181 = vadd.f32 0.0, %v3180
    %v3182 = vpop.f32.mrf.mxu0
    %v3183 = vadd.f32 0.0, %v3182
    %3184 = vmatmul.bf16.gmra.mxu0 %v3090
    %v3185 = vpop.f32.mrf.mxu0
    %v3186 = vadd.f32 0.0, %v3185
    %v3187 = vpop.f32.mrf.mxu0
    %v3188 = vadd.f32 0.0, %v3187
    %3189 = vmatmul.bf16.gmra.mxu0 %v3093
    %v3190 = vpop.f32.mrf.mxu0
    %v3191 = vadd.f32 0.0, %v3190
    %v3192 = vpop.f32.mrf.mxu0
    %v3193 = vadd.f32 0.0, %v3192
    %3194 = vmatmul.bf16.gmra.mxu0 %v3096
    %v3195 = vpop.f32.mrf.mxu0
    %v3196 = vadd.f32 0.0, %v3195
    %v3197 = vpop.f32.mrf.mxu0
    %v3198 = vadd.f32 0.0, %v3197
    %3199 = vdwg.mxu0
    %v3200 = vpack.c.bf16 %v3142, %v3108
    %v3201 = vpack.c.bf16 %v3176, %v3176
    %v3202 = vpack.c.bf16 %v3144, %v3110
    %v3203 = vpack.c.bf16 %v3178, %v3178
    %v3204 = vpack.c.bf16 %v3147, %v3113
    %v3205 = vpack.c.bf16 %v3181, %v3181
    %v3206 = vpack.c.bf16 %v3149, %v3115
    %v3207 = vpack.c.bf16 %v3183, %v3183
    %v3208 = vpack.c.bf16 %v3152, %v3118
    %v3209 = vpack.c.bf16 %v3186, %v3186
    %v3210 = vpack.c.bf16 %v3154, %v3120
    %v3211 = vpack.c.bf16 %v3188, %v3188
    %v3212 = vpack.c.bf16 %v3157, %v3123
    %v3213 = vpack.c.bf16 %v3191, %v3191
    %v3214 = vpack.c.bf16 %v3159, %v3125
    %v3215 = vpack.c.bf16 %v3193, %v3193
    %v3216 = vpack.c.bf16 %v3162, %v3128
    %v3217 = vpack.c.bf16 %v3196, %v3196
    %v3218 = vpack.c.bf16 %v3164, %v3130
    %v3219 = vpack.c.bf16 %v3198, %v3198
    %v3220 = vld [vmem:[#allocation2] sm:$0xff]
    %v3221 = vld [vmem:[#allocation2 + $0x8] sm:$0xff]
    %v3222 = vld [vmem:[#allocation2 + $0x10] sm:$0xff]
    %v3223 = vld [vmem:[#allocation2 + $0x18] sm:$0xff]
    %v3224 = vld [vmem:[#allocation2 + $0x20] sm:$0xff]
    %v3225 = vld [vmem:[#allocation2 + $0x28] sm:$0xff]
    %v3226 = vld [vmem:[#allocation2 + $0x30] sm:$0xff]
    %v3227 = vld [vmem:[#allocation2 + $0x38] sm:$0xff]
    %v3228 = vld [vmem:[#allocation2 + $0x40] sm:$0xff]
    %v3229 = vld [vmem:[#allocation2 + $0x48] sm:$0xff]
    %v3230 = vld [vmem:[#allocation2 + $0x50] sm:$0xff]
    %v3231 = vld [vmem:[#allocation2 + $0x58] sm:$0xff]
    %v3232 = vld [vmem:[#allocation2 + $0x60] sm:$0xff]
    %v3233 = vld [vmem:[#allocation2 + $0x68] sm:$0xff]
    %v3234 = vld [vmem:[#allocation2 + $0x70] sm:$0xff]
    %v3235 = vld [vmem:[#allocation2 + $0x78] sm:$0xff]
    %v3236 = vld [vmem:[#allocation2 + $0x80] sm:$0xff]
    %v3237 = vld [vmem:[#allocation2 + $0x88] sm:$0xff]
    %v3238 = vld [vmem:[#allocation2 + $0x90] sm:$0xff]
    %v3239 = vld [vmem:[#allocation2 + $0x98] sm:$0xff]
    %v3240 = vld [vmem:[#allocation2 + $0xa0] sm:$0xff]
    %v3241 = vld [vmem:[#allocation2 + $0xa8] sm:$0xff]
    %v3242 = vld [vmem:[#allocation2 + $0xb0] sm:$0xff]
    %v3243 = vld [vmem:[#allocation2 + $0xb8] sm:$0xff]
    %v3244 = vld [vmem:[#allocation2 + $0xc0] sm:$0xff]
    %v3245 = vld [vmem:[#allocation2 + $0xc8] sm:$0xff]
    %v3246 = vld [vmem:[#allocation2 + $0xd0] sm:$0xff]
    %v3247 = vld [vmem:[#allocation2 + $0xd8] sm:$0xff]
    %v3248 = vld [vmem:[#allocation2 + $0xe0] sm:$0xff]
    %v3249 = vld [vmem:[#allocation2 + $0xe8] sm:$0xff]
    %v3250 = vld [vmem:[#allocation2 + $0xf0] sm:$0xff]
    %v3251 = vld [vmem:[#allocation2 + $0xf8] sm:$0xff]
    %v3252 = vld [vmem:[#allocation2 + $0x100] sm:$0xff]
    %v3253 = vld [vmem:[#allocation2 + $0x108] sm:$0xff]
    %v3254 = vld [vmem:[#allocation2 + $0x110] sm:$0xff]
    %v3255 = vld [vmem:[#allocation2 + $0x118] sm:$0xff]
    %s3256 = scalar_lea.vmem [#allocation2], 288
    %v3257 = vld [vmem:[%s3256] sm:$0xff]
    %v3258 = vld [vmem:[%s3256 + $0x8] sm:$0xff]
    %v3259 = vld [vmem:[%s3256 + $0x10] sm:$0xff]
    %v3260 = vld [vmem:[%s3256 + $0x18] sm:$0xff]
    %v3261 = vld [vmem:[%s3256 + $0x20] sm:$0xff]
    %v3262 = vld [vmem:[%s3256 + $0x28] sm:$0xff]
    %v3263 = vld [vmem:[%s3256 + $0x30] sm:$0xff]
    %v3264 = vld [vmem:[%s3256 + $0x38] sm:$0xff]
    %v3265 = vld [vmem:[%s3256 + $0x40] sm:$0xff]
    %v3266 = vld [vmem:[%s3256 + $0x48] sm:$0xff]
    %v3267 = vld [vmem:[%s3256 + $0x50] sm:$0xff]
    %v3268 = vld [vmem:[%s3256 + $0x58] sm:$0xff]
    %v3269 = vld [vmem:[%s3256 + $0x60] sm:$0xff]
    %v3270 = vld [vmem:[%s3256 + $0x68] sm:$0xff]
    %v3271 = vld [vmem:[%s3256 + $0x70] sm:$0xff]
    %v3272 = vld [vmem:[%s3256 + $0x78] sm:$0xff]
    %v3273 = vld [vmem:[%s3256 + $0x80] sm:$0xff]
    %v3274 = vld [vmem:[%s3256 + $0x88] sm:$0xff]
    %v3275 = vld [vmem:[%s3256 + $0x90] sm:$0xff]
    %v3276 = vld [vmem:[%s3256 + $0x98] sm:$0xff]
    %v3277 = vld [vmem:[%s3256 + $0xa0] sm:$0xff]
    %v3278 = vld [vmem:[%s3256 + $0xa8] sm:$0xff]
    %v3279 = vld [vmem:[%s3256 + $0xb0] sm:$0xff]
    %v3280 = vld [vmem:[%s3256 + $0xb8] sm:$0xff]
    %v3281 = vld [vmem:[%s3256 + $0xc0] sm:$0xff]
    %v3282 = vld [vmem:[%s3256 + $0xc8] sm:$0xff]
    %v3283 = vld [vmem:[%s3256 + $0xd0] sm:$0xff]
    %v3284 = vld [vmem:[%s3256 + $0xd8] sm:$0xff]
    %v3285 = vld [vmem:[%s3256 + $0xe0] sm:$0xff]
    %v3286 = vld [vmem:[%s3256 + $0xe8] sm:$0xff]
    %v3287 = vld [vmem:[%s3256 + $0xf0] sm:$0xff]
    %v3288 = vld [vmem:[%s3256 + $0xf8] sm:$0xff]
    %v3289 = vld [vmem:[%s3256 + $0x100] sm:$0xff]
    %v3290 = vld [vmem:[%s3256 + $0x108] sm:$0xff]
    %v3291 = vld [vmem:[%s3256 + $0x110] sm:$0xff]
    %v3292 = vld [vmem:[%s3256 + $0x118] sm:$0xff]
    %v3297 = vunpack.c.l.b16 %v3204
    %v3298 = vunpack.c.h.b16 %v3204
    %v3299 = vunpack.c.l.b16 %v3205
    %v3300 = vunpack.c.l.b16 %v3206
    %v3301 = vunpack.c.h.b16 %v3206
    %v3302 = vunpack.c.l.b16 %v3207
    %v3303 = vpack.c.b16 %v3300, %v3297
    %v3304 = vpack.c.b16 %v3301, %v3298
    %v3305 = vpack.c.b16 %v3302, %v3299
    %v3344 = vunpack.c.l.b16 %v3257
    %v3345 = vunpack.c.h.b16 %v3257
    %v3346 = vunpack.c.l.b16 %v3258
    %v3347 = vunpack.c.h.b16 %v3258
    %v3348 = vunpack.c.l.b16 %v3259
    %v3349 = vunpack.c.h.b16 %v3259
    %v3350 = vunpack.c.l.b16 %v3260
    %v3351 = vunpack.c.h.b16 %v3260
    %v3352 = vunpack.c.l.b16 %v3261
    %v3353 = vunpack.c.h.b16 %v3261
    %v3354 = vunpack.c.l.b16 %v3262
    %v3355 = vunpack.c.h.b16 %v3262
    %v3356 = vunpack.c.l.b16 %v3263
    %v3357 = vunpack.c.h.b16 %v3263
    %v3358 = vunpack.c.l.b16 %v3264
    %v3359 = vunpack.c.h.b16 %v3264
    %v3360 = vunpack.c.l.b16 %v3265
    %v3361 = vunpack.c.h.b16 %v3265
    %v3362 = vunpack.c.l.b16 %v3266
    %v3363 = vunpack.c.h.b16 %v3266
    %v3364 = vunpack.c.l.b16 %v3267
    %v3365 = vunpack.c.h.b16 %v3267
    %v3366 = vunpack.c.l.b16 %v3268
    %v3367 = vunpack.c.h.b16 %v3268
    %v3368 = vunpack.c.l.b16 %v3269
    %v3369 = vunpack.c.h.b16 %v3269
    %v3370 = vunpack.c.l.b16 %v3270
    %v3371 = vunpack.c.h.b16 %v3270
    %v3372 = vunpack.c.l.b16 %v3271
    %v3373 = vunpack.c.h.b16 %v3271
    %v3374 = vunpack.c.l.b16 %v3272
    %v3375 = vunpack.c.h.b16 %v3272
    %v3376 = vunpack.c.l.b16 %v3273
    %v3377 = vunpack.c.h.b16 %v3273
    %v3378 = vunpack.c.l.b16 %v3274
    %v3379 = vunpack.c.h.b16 %v3274
    %v3380 = vunpack.c.l.b16 %v3275
    %v3381 = vunpack.c.h.b16 %v3275
    %v3382 = vunpack.c.l.b16 %v3276
    %v3383 = vunpack.c.h.b16 %v3276
    %v3384 = vunpack.c.l.b16 %v3277
    %v3385 = vunpack.c.h.b16 %v3277
    %v3386 = vunpack.c.l.b16 %v3278
    %v3387 = vunpack.c.h.b16 %v3278
    %v3388 = vunpack.c.l.b16 %v3279
    %v3389 = vunpack.c.h.b16 %v3279
    %v3390 = vunpack.c.l.b16 %v3280
    %v3391 = vunpack.c.h.b16 %v3280
    %v3392 = vunpack.c.l.b16 %v3281
    %v3393 = vunpack.c.h.b16 %v3281
    %v3394 = vunpack.c.l.b16 %v3282
    %v3395 = vunpack.c.h.b16 %v3282
    %v3396 = vunpack.c.l.b16 %v3283
    %v3397 = vunpack.c.h.b16 %v3283
    %v3398 = vunpack.c.l.b16 %v3284
    %v3399 = vunpack.c.h.b16 %v3284
    %v3400 = vunpack.c.l.b16 %v3285
    %v3401 = vunpack.c.h.b16 %v3285
    %v3402 = vunpack.c.l.b16 %v3286
    %v3403 = vunpack.c.h.b16 %v3286
    %v3404 = vunpack.c.l.b16 %v3287
    %v3405 = vunpack.c.h.b16 %v3287
    %v3406 = vunpack.c.l.b16 %v3288
    %v3407 = vunpack.c.h.b16 %v3288
    %v3408 = vunpack.c.l.b16 %v3289
    %v3409 = vunpack.c.h.b16 %v3289
    %v3410 = vunpack.c.l.b16 %v3290
    %v3411 = vunpack.c.h.b16 %v3290
    %v3412 = vunpack.c.l.b16 %v3291
    %v3413 = vunpack.c.h.b16 %v3291
    %v3414 = vunpack.c.l.b16 %v3292
    %v3415 = vunpack.c.h.b16 %v3292
    %v3416 = vpack.c.b16 %v3346, %v3344
    %v3417 = vpack.c.b16 %v3347, %v3345
    %v3418 = vpack.c.b16 %v3350, %v3348
    %v3419 = vpack.c.b16 %v3351, %v3349
    %v3420 = vpack.c.b16 %v3354, %v3352
    %v3421 = vpack.c.b16 %v3355, %v3353
    %v3422 = vpack.c.b16 %v3358, %v3356
    %v3423 = vpack.c.b16 %v3359, %v3357
    %v3424 = vpack.c.b16 %v3362, %v3360
    %v3425 = vpack.c.b16 %v3363, %v3361
    %v3426 = vpack.c.b16 %v3366, %v3364
    %v3427 = vpack.c.b16 %v3367, %v3365
    %v3428 = vpack.c.b16 %v3370, %v3368
    %v3429 = vpack.c.b16 %v3371, %v3369
    %v3430 = vpack.c.b16 %v3374, %v3372
    %v3431 = vpack.c.b16 %v3375, %v3373
    %v3432 = vpack.c.b16 %v3378, %v3376
    %v3433 = vpack.c.b16 %v3379, %v3377
    %v3434 = vpack.c.b16 %v3382, %v3380
    %v3435 = vpack.c.b16 %v3383, %v3381
    %v3436 = vpack.c.b16 %v3386, %v3384
    %v3437 = vpack.c.b16 %v3387, %v3385
    %v3438 = vpack.c.b16 %v3390, %v3388
    %v3439 = vpack.c.b16 %v3391, %v3389
    %v3440 = vpack.c.b16 %v3394, %v3392
    %v3441 = vpack.c.b16 %v3395, %v3393
    %v3442 = vpack.c.b16 %v3398, %v3396
    %v3443 = vpack.c.b16 %v3399, %v3397
    %v3444 = vpack.c.b16 %v3402, %v3400
    %v3445 = vpack.c.b16 %v3403, %v3401
    %v3446 = vpack.c.b16 %v3406, %v3404
    %v3447 = vpack.c.b16 %v3407, %v3405
    %v3448 = vpack.c.b16 %v3410, %v3408
    %v3449 = vpack.c.b16 %v3411, %v3409
    %v3450 = vpack.c.b16 %v3414, %v3412
    %v3451 = vpack.c.b16 %v3415, %v3413
    %v3489 = vsel %vm1298, %v3305, 0
    %3491 = vmatpush.bf16.msra.mxu0 %v3430
    %3492 = vmatpush.bf16.msra.mxu0 %v3428
    %3493 = vmatpush.bf16.msra.mxu0 %v3426
    %3494 = vmatpush.bf16.msra.mxu0 %v3424
    %3495 = vmatpush.bf16.msra.mxu0 %v3422
    %3496 = vmatpush.bf16.msra.mxu0 %v3420
    %3497 = vmatpush.bf16.msra.mxu0 %v3418
    %3498 = vmatpush.bf16.msra.mxu0 %v3416
    %3499 = vmatmul.bf16.gmra.mxu0 %v3303
    %v3500 = vpop.f32.mrf.mxu0
    %v3501 = vadd.f32 0.0, %v3500
    %v3502 = vpop.f32.mrf.mxu0
    %v3503 = vadd.f32 0.0, %v3502
    %3504 = vdwg.mxu0
    %3505 = vmatpush.bf16.msra.mxu0 %v3446
    %3506 = vmatpush.bf16.msra.mxu0 %v3444
    %3507 = vmatpush.bf16.msra.mxu0 %v3442
    %3508 = vmatpush.bf16.msra.mxu0 %v3440
    %3509 = vmatpush.bf16.msra.mxu0 %v3438
    %3510 = vmatpush.bf16.msra.mxu0 %v3436
    %3511 = vmatpush.bf16.msra.mxu0 %v3434
    %3512 = vmatpush.bf16.msra.mxu0 %v3432
    %3513 = vmatmul.bf16.gmra.mxu0 %v3304
    %v3514 = vpop.f32.mrf.mxu0
    %v3515 = vadd.f32 %v3501, %v3514
    %v3516 = vpop.f32.mrf.mxu0
    %v3517 = vadd.f32 %v3503, %v3516
    %3518 = vdwg.mxu0
    %3519 = vmatpush.bf16.msra.mxu0 0
    %3520 = vmatpush.bf16.msra.mxu0 0
    %3521 = vmatpush.bf16.msra.mxu0 0
    %3522 = vmatpush.bf16.msra.mxu0 0
    %3523 = vmatpush.bf16.msra.mxu0 0
    %3524 = vmatpush.bf16.msra.mxu0 0
    %3525 = vmatpush.bf16.msra.mxu0 %v3450
    %3526 = vmatpush.bf16.msra.mxu0 %v3448
    %3527 = vmatmul.bf16.gmra.mxu0 %v3489
    %v3528 = vpop.f32.mrf.mxu0
    %v3529 = vadd.f32 %v3515, %v3528
    %v3530 = vpop.f32.mrf.mxu0
    %v3531 = vadd.f32 %v3517, %v3530
    %3532 = vdwg.mxu0
    %3533 = vmatpush.bf16.msra.mxu0 %v3431
    %3534 = vmatpush.bf16.msra.mxu0 %v3429
    %3535 = vmatpush.bf16.msra.mxu0 %v3427
    %3536 = vmatpush.bf16.msra.mxu0 %v3425
    %3537 = vmatpush.bf16.msra.mxu0 %v3423
    %3538 = vmatpush.bf16.msra.mxu0 %v3421
    %3539 = vmatpush.bf16.msra.mxu0 %v3419
    %3540 = vmatpush.bf16.msra.mxu0 %v3417
    %3541 = vmatmul.bf16.gmra.mxu0 %v3303
    %v3542 = vpop.f32.mrf.mxu0
    %v3543 = vadd.f32 0.0, %v3542
    %v3544 = vpop.f32.mrf.mxu0
    %v3545 = vadd.f32 0.0, %v3544
    %3546 = vdwg.mxu0
    %3547 = vmatpush.bf16.msra.mxu0 %v3447
    %3548 = vmatpush.bf16.msra.mxu0 %v3445
    %3549 = vmatpush.bf16.msra.mxu0 %v3443
    %3550 = vmatpush.bf16.msra.mxu0 %v3441
    %3551 = vmatpush.bf16.msra.mxu0 %v3439
    %3552 = vmatpush.bf16.msra.mxu0 %v3437
    %3553 = vmatpush.bf16.msra.mxu0 %v3435
    %3554 = vmatpush.bf16.msra.mxu0 %v3433
    %3555 = vmatmul.bf16.gmra.mxu0 %v3304
    %v3556 = vpop.f32.mrf.mxu0
    %v3557 = vadd.f32 %v3543, %v3556
    %v3558 = vpop.f32.mrf.mxu0
    %v3559 = vadd.f32 %v3545, %v3558
    %3560 = vdwg.mxu0
    %3561 = vmatpush.bf16.msra.mxu0 0
    %3562 = vmatpush.bf16.msra.mxu0 0
    %3563 = vmatpush.bf16.msra.mxu0 0
    %3564 = vmatpush.bf16.msra.mxu0 0
    %3565 = vmatpush.bf16.msra.mxu0 0
    %3566 = vmatpush.bf16.msra.mxu0 0
    %3567 = vmatpush.bf16.msra.mxu0 %v3451
    %3568 = vmatpush.bf16.msra.mxu0 %v3449
    %3569 = vmatmul.bf16.gmra.mxu0 %v3489
    %v3570 = vpop.f32.mrf.mxu0
    %v3571 = vadd.f32 %v3557, %v3570
    %v3572 = vpop.f32.mrf.mxu0
    %v3573 = vadd.f32 %v3559, %v3572
    %3574 = vdwg.mxu0
    %v3579 = vunpack.c.l.b16 %v3200
    %v3580 = vunpack.c.h.b16 %v3200
    %v3581 = vunpack.c.l.b16 %v3201
    %v3582 = vunpack.c.l.b16 %v3202
    %v3583 = vunpack.c.h.b16 %v3202
    %v3584 = vunpack.c.l.b16 %v3203
    %v3585 = vpack.c.b16 %v3582, %v3579
    %v3586 = vpack.c.b16 %v3583, %v3580
    %v3587 = vpack.c.b16 %v3584, %v3581
    %v3626 = vunpack.c.l.b16 %v3220
    %v3627 = vunpack.c.h.b16 %v3220
    %v3628 = vunpack.c.l.b16 %v3221
    %v3629 = vunpack.c.h.b16 %v3221
    %v3630 = vunpack.c.l.b16 %v3222
    %v3631 = vunpack.c.h.b16 %v3222
    %v3632 = vunpack.c.l.b16 %v3223
    %v3633 = vunpack.c.h.b16 %v3223
    %v3634 = vunpack.c.l.b16 %v3224
    %v3635 = vunpack.c.h.b16 %v3224
    %v3636 = vunpack.c.l.b16 %v3225
    %v3637 = vunpack.c.h.b16 %v3225
    %v3638 = vunpack.c.l.b16 %v3226
    %v3639 = vunpack.c.h.b16 %v3226
    %v3640 = vunpack.c.l.b16 %v3227
    %v3641 = vunpack.c.h.b16 %v3227
    %v3642 = vunpack.c.l.b16 %v3228
    %v3643 = vunpack.c.h.b16 %v3228
    %v3644 = vunpack.c.l.b16 %v3229
    %v3645 = vunpack.c.h.b16 %v3229
    %v3646 = vunpack.c.l.b16 %v3230
    %v3647 = vunpack.c.h.b16 %v3230
    %v3648 = vunpack.c.l.b16 %v3231
    %v3649 = vunpack.c.h.b16 %v3231
    %v3650 = vunpack.c.l.b16 %v3232
    %v3651 = vunpack.c.h.b16 %v3232
    %v3652 = vunpack.c.l.b16 %v3233
    %v3653 = vunpack.c.h.b16 %v3233
    %v3654 = vunpack.c.l.b16 %v3234
    %v3655 = vunpack.c.h.b16 %v3234
    %v3656 = vunpack.c.l.b16 %v3235
    %v3657 = vunpack.c.h.b16 %v3235
    %v3658 = vunpack.c.l.b16 %v3236
    %v3659 = vunpack.c.h.b16 %v3236
    %v3660 = vunpack.c.l.b16 %v3237
    %v3661 = vunpack.c.h.b16 %v3237
    %v3662 = vunpack.c.l.b16 %v3238
    %v3663 = vunpack.c.h.b16 %v3238
    %v3664 = vunpack.c.l.b16 %v3239
    %v3665 = vunpack.c.h.b16 %v3239
    %v3666 = vunpack.c.l.b16 %v3240
    %v3667 = vunpack.c.h.b16 %v3240
    %v3668 = vunpack.c.l.b16 %v3241
    %v3669 = vunpack.c.h.b16 %v3241
    %v3670 = vunpack.c.l.b16 %v3242
    %v3671 = vunpack.c.h.b16 %v3242
    %v3672 = vunpack.c.l.b16 %v3243
    %v3673 = vunpack.c.h.b16 %v3243
    %v3674 = vunpack.c.l.b16 %v3244
    %v3675 = vunpack.c.h.b16 %v3244
    %v3676 = vunpack.c.l.b16 %v3245
    %v3677 = vunpack.c.h.b16 %v3245
    %v3678 = vunpack.c.l.b16 %v3246
    %v3679 = vunpack.c.h.b16 %v3246
    %v3680 = vunpack.c.l.b16 %v3247
    %v3681 = vunpack.c.h.b16 %v3247
    %v3682 = vunpack.c.l.b16 %v3248
    %v3683 = vunpack.c.h.b16 %v3248
    %v3684 = vunpack.c.l.b16 %v3249
    %v3685 = vunpack.c.h.b16 %v3249
    %v3686 = vunpack.c.l.b16 %v3250
    %v3687 = vunpack.c.h.b16 %v3250
    %v3688 = vunpack.c.l.b16 %v3251
    %v3689 = vunpack.c.h.b16 %v3251
    %v3690 = vunpack.c.l.b16 %v3252
    %v3691 = vunpack.c.h.b16 %v3252
    %v3692 = vunpack.c.l.b16 %v3253
    %v3693 = vunpack.c.h.b16 %v3253
    %v3694 = vunpack.c.l.b16 %v3254
    %v3695 = vunpack.c.h.b16 %v3254
    %v3696 = vunpack.c.l.b16 %v3255
    %v3697 = vunpack.c.h.b16 %v3255
    %v3698 = vpack.c.b16 %v3628, %v3626
    %v3699 = vpack.c.b16 %v3629, %v3627
    %v3700 = vpack.c.b16 %v3632, %v3630
    %v3701 = vpack.c.b16 %v3633, %v3631
    %v3702 = vpack.c.b16 %v3636, %v3634
    %v3703 = vpack.c.b16 %v3637, %v3635
    %v3704 = vpack.c.b16 %v3640, %v3638
    %v3705 = vpack.c.b16 %v3641, %v3639
    %v3706 = vpack.c.b16 %v3644, %v3642
    %v3707 = vpack.c.b16 %v3645, %v3643
    %v3708 = vpack.c.b16 %v3648, %v3646
    %v3709 = vpack.c.b16 %v3649, %v3647
    %v3710 = vpack.c.b16 %v3652, %v3650
    %v3711 = vpack.c.b16 %v3653, %v3651
    %v3712 = vpack.c.b16 %v3656, %v3654
    %v3713 = vpack.c.b16 %v3657, %v3655
    %v3714 = vpack.c.b16 %v3660, %v3658
    %v3715 = vpack.c.b16 %v3661, %v3659
    %v3716 = vpack.c.b16 %v3664, %v3662
    %v3717 = vpack.c.b16 %v3665, %v3663
    %v3718 = vpack.c.b16 %v3668, %v3666
    %v3719 = vpack.c.b16 %v3669, %v3667
    %v3720 = vpack.c.b16 %v3672, %v3670
    %v3721 = vpack.c.b16 %v3673, %v3671
    %v3722 = vpack.c.b16 %v3676, %v3674
    %v3723 = vpack.c.b16 %v3677, %v3675
    %v3724 = vpack.c.b16 %v3680, %v3678
    %v3725 = vpack.c.b16 %v3681, %v3679
    %v3726 = vpack.c.b16 %v3684, %v3682
    %v3727 = vpack.c.b16 %v3685, %v3683
    %v3728 = vpack.c.b16 %v3688, %v3686
    %v3729 = vpack.c.b16 %v3689, %v3687
    %v3730 = vpack.c.b16 %v3692, %v3690
    %v3731 = vpack.c.b16 %v3693, %v3691
    %v3732 = vpack.c.b16 %v3696, %v3694
    %v3733 = vpack.c.b16 %v3697, %v3695
    %v3771 = vsel %vm1298, %v3587, 0
    %3773 = vmatpush.bf16.msra.mxu0 %v3712
    %3774 = vmatpush.bf16.msra.mxu0 %v3710
    %3775 = vmatpush.bf16.msra.mxu0 %v3708
    %3776 = vmatpush.bf16.msra.mxu0 %v3706
    %3777 = vmatpush.bf16.msra.mxu0 %v3704
    %3778 = vmatpush.bf16.msra.mxu0 %v3702
    %3779 = vmatpush.bf16.msra.mxu0 %v3700
    %3780 = vmatpush.bf16.msra.mxu0 %v3698
    %3781 = vmatmul.bf16.gmra.mxu0 %v3585
    %v3782 = vpop.f32.mrf.mxu0
    %v3783 = vadd.f32 %v3529, %v3782
    %v3784 = vpop.f32.mrf.mxu0
    %v3785 = vadd.f32 %v3531, %v3784
    %3786 = vdwg.mxu0
    %3787 = vmatpush.bf16.msra.mxu0 %v3728
    %3788 = vmatpush.bf16.msra.mxu0 %v3726
    %3789 = vmatpush.bf16.msra.mxu0 %v3724
    %3790 = vmatpush.bf16.msra.mxu0 %v3722
    %3791 = vmatpush.bf16.msra.mxu0 %v3720
    %3792 = vmatpush.bf16.msra.mxu0 %v3718
    %3793 = vmatpush.bf16.msra.mxu0 %v3716
    %3794 = vmatpush.bf16.msra.mxu0 %v3714
    %3795 = vmatmul.bf16.gmra.mxu0 %v3586
    %v3796 = vpop.f32.mrf.mxu0
    %v3797 = vadd.f32 %v3783, %v3796
    %v3798 = vpop.f32.mrf.mxu0
    %v3799 = vadd.f32 %v3785, %v3798
    %3800 = vdwg.mxu0
    %3801 = vmatpush.bf16.msra.mxu0 0
    %3802 = vmatpush.bf16.msra.mxu0 0
    %3803 = vmatpush.bf16.msra.mxu0 0
    %3804 = vmatpush.bf16.msra.mxu0 0
    %3805 = vmatpush.bf16.msra.mxu0 0
    %3806 = vmatpush.bf16.msra.mxu0 0
    %3807 = vmatpush.bf16.msra.mxu0 %v3732
    %3808 = vmatpush.bf16.msra.mxu0 %v3730
    %3809 = vmatmul.bf16.gmra.mxu0 %v3771
    %v3810 = vpop.f32.mrf.mxu0
    %v3811 = vadd.f32 %v3797, %v3810
    %v3812 = vpop.f32.mrf.mxu0
    %v3813 = vadd.f32 %v3799, %v3812
    %3814 = vdwg.mxu0
    %3815 = vmatpush.bf16.msra.mxu0 %v3713
    %3816 = vmatpush.bf16.msra.mxu0 %v3711
    %3817 = vmatpush.bf16.msra.mxu0 %v3709
    %3818 = vmatpush.bf16.msra.mxu0 %v3707
    %3819 = vmatpush.bf16.msra.mxu0 %v3705
    %3820 = vmatpush.bf16.msra.mxu0 %v3703
    %3821 = vmatpush.bf16.msra.mxu0 %v3701
    %3822 = vmatpush.bf16.msra.mxu0 %v3699
    %3823 = vmatmul.bf16.gmra.mxu0 %v3585
    %v3824 = vpop.f32.mrf.mxu0
    %v3825 = vadd.f32 %v3571, %v3824
    %v3826 = vpop.f32.mrf.mxu0
    %v3827 = vadd.f32 %v3573, %v3826
    %3828 = vdwg.mxu0
    %3829 = vmatpush.bf16.msra.mxu0 %v3729
    %3830 = vmatpush.bf16.msra.mxu0 %v3727
    %3831 = vmatpush.bf16.msra.mxu0 %v3725
    %3832 = vmatpush.bf16.msra.mxu0 %v3723
    %3833 = vmatpush.bf16.msra.mxu0 %v3721
    %3834 = vmatpush.bf16.msra.mxu0 %v3719
    %3835 = vmatpush.bf16.msra.mxu0 %v3717
    %3836 = vmatpush.bf16.msra.mxu0 %v3715
    %3837 = vmatmul.bf16.gmra.mxu0 %v3586
    %v3838 = vpop.f32.mrf.mxu0
    %v3839 = vadd.f32 %v3825, %v3838
    %v3840 = vpop.f32.mrf.mxu0
    %v3841 = vadd.f32 %v3827, %v3840
    %3842 = vdwg.mxu0
    %3843 = vmatpush.bf16.msra.mxu0 0
    %3844 = vmatpush.bf16.msra.mxu0 0
    %3845 = vmatpush.bf16.msra.mxu0 0
    %3846 = vmatpush.bf16.msra.mxu0 0
    %3847 = vmatpush.bf16.msra.mxu0 0
    %3848 = vmatpush.bf16.msra.mxu0 0
    %3849 = vmatpush.bf16.msra.mxu0 %v3733
    %3850 = vmatpush.bf16.msra.mxu0 %v3731
    %3851 = vmatmul.bf16.gmra.mxu0 %v3771
    %v3852 = vpop.f32.mrf.mxu0
    %v3853 = vadd.f32 %v3839, %v3852
    %v3854 = vpop.f32.mrf.mxu0
    %v3855 = vadd.f32 %v3841, %v3854
    %3856 = vdwg.mxu0
    %s3857 = scalar_lea.vmem [#allocation2], 576
    %v3858 = vld [vmem:[%s3857] sm:$0xff]
    %v3859 = vld [vmem:[%s3857 + $0x8] sm:$0xff]
    %v3860 = vld [vmem:[%s3857 + $0x10] sm:$0xff]
    %v3861 = vld [vmem:[%s3857 + $0x18] sm:$0xff]
    %v3862 = vld [vmem:[%s3857 + $0x20] sm:$0xff]
    %v3863 = vld [vmem:[%s3857 + $0x28] sm:$0xff]
    %v3864 = vld [vmem:[%s3857 + $0x30] sm:$0xff]
    %v3865 = vld [vmem:[%s3857 + $0x38] sm:$0xff]
    %v3866 = vld [vmem:[%s3857 + $0x40] sm:$0xff]
    %v3867 = vld [vmem:[%s3857 + $0x48] sm:$0xff]
    %v3868 = vld [vmem:[%s3857 + $0x50] sm:$0xff]
    %v3869 = vld [vmem:[%s3857 + $0x58] sm:$0xff]
    %v3870 = vld [vmem:[%s3857 + $0x60] sm:$0xff]
    %v3871 = vld [vmem:[%s3857 + $0x68] sm:$0xff]
    %v3872 = vld [vmem:[%s3857 + $0x70] sm:$0xff]
    %v3873 = vld [vmem:[%s3857 + $0x78] sm:$0xff]
    %v3874 = vld [vmem:[%s3857 + $0x80] sm:$0xff]
    %v3875 = vld [vmem:[%s3857 + $0x88] sm:$0xff]
    %v3876 = vld [vmem:[%s3857 + $0x90] sm:$0xff]
    %v3877 = vld [vmem:[%s3857 + $0x98] sm:$0xff]
    %v3878 = vld [vmem:[%s3857 + $0xa0] sm:$0xff]
    %v3879 = vld [vmem:[%s3857 + $0xa8] sm:$0xff]
    %v3880 = vld [vmem:[%s3857 + $0xb0] sm:$0xff]
    %v3881 = vld [vmem:[%s3857 + $0xb8] sm:$0xff]
    %v3882 = vld [vmem:[%s3857 + $0xc0] sm:$0xff]
    %v3883 = vld [vmem:[%s3857 + $0xc8] sm:$0xff]
    %v3884 = vld [vmem:[%s3857 + $0xd0] sm:$0xff]
    %v3885 = vld [vmem:[%s3857 + $0xd8] sm:$0xff]
    %v3886 = vld [vmem:[%s3857 + $0xe0] sm:$0xff]
    %v3887 = vld [vmem:[%s3857 + $0xe8] sm:$0xff]
    %v3888 = vld [vmem:[%s3857 + $0xf0] sm:$0xff]
    %v3889 = vld [vmem:[%s3857 + $0xf8] sm:$0xff]
    %v3890 = vld [vmem:[%s3857 + $0x100] sm:$0xff]
    %v3891 = vld [vmem:[%s3857 + $0x108] sm:$0xff]
    %v3892 = vld [vmem:[%s3857 + $0x110] sm:$0xff]
    %v3893 = vld [vmem:[%s3857 + $0x118] sm:$0xff]
    %v3898 = vunpack.c.l.b16 %v3208
    %v3899 = vunpack.c.h.b16 %v3208
    %v3900 = vunpack.c.l.b16 %v3209
    %v3901 = vunpack.c.l.b16 %v3210
    %v3902 = vunpack.c.h.b16 %v3210
    %v3903 = vunpack.c.l.b16 %v3211
    %v3904 = vpack.c.b16 %v3901, %v3898
    %v3905 = vpack.c.b16 %v3902, %v3899
    %v3906 = vpack.c.b16 %v3903, %v3900
    %v3945 = vunpack.c.l.b16 %v3858
    %v3946 = vunpack.c.h.b16 %v3858
    %v3947 = vunpack.c.l.b16 %v3859
    %v3948 = vunpack.c.h.b16 %v3859
    %v3949 = vunpack.c.l.b16 %v3860
    %v3950 = vunpack.c.h.b16 %v3860
    %v3951 = vunpack.c.l.b16 %v3861
    %v3952 = vunpack.c.h.b16 %v3861
    %v3953 = vunpack.c.l.b16 %v3862
    %v3954 = vunpack.c.h.b16 %v3862
    %v3955 = vunpack.c.l.b16 %v3863
    %v3956 = vunpack.c.h.b16 %v3863
    %v3957 = vunpack.c.l.b16 %v3864
    %v3958 = vunpack.c.h.b16 %v3864
    %v3959 = vunpack.c.l.b16 %v3865
    %v3960 = vunpack.c.h.b16 %v3865
    %v3961 = vunpack.c.l.b16 %v3866
    %v3962 = vunpack.c.h.b16 %v3866
    %v3963 = vunpack.c.l.b16 %v3867
    %v3964 = vunpack.c.h.b16 %v3867
    %v3965 = vunpack.c.l.b16 %v3868
    %v3966 = vunpack.c.h.b16 %v3868
    %v3967 = vunpack.c.l.b16 %v3869
    %v3968 = vunpack.c.h.b16 %v3869
    %v3969 = vunpack.c.l.b16 %v3870
    %v3970 = vunpack.c.h.b16 %v3870
    %v3971 = vunpack.c.l.b16 %v3871
    %v3972 = vunpack.c.h.b16 %v3871
    %v3973 = vunpack.c.l.b16 %v3872
    %v3974 = vunpack.c.h.b16 %v3872
    %v3975 = vunpack.c.l.b16 %v3873
    %v3976 = vunpack.c.h.b16 %v3873
    %v3977 = vunpack.c.l.b16 %v3874
    %v3978 = vunpack.c.h.b16 %v3874
    %v3979 = vunpack.c.l.b16 %v3875
    %v3980 = vunpack.c.h.b16 %v3875
    %v3981 = vunpack.c.l.b16 %v3876
    %v3982 = vunpack.c.h.b16 %v3876
    %v3983 = vunpack.c.l.b16 %v3877
    %v3984 = vunpack.c.h.b16 %v3877
    %v3985 = vunpack.c.l.b16 %v3878
    %v3986 = vunpack.c.h.b16 %v3878
    %v3987 = vunpack.c.l.b16 %v3879
    %v3988 = vunpack.c.h.b16 %v3879
    %v3989 = vunpack.c.l.b16 %v3880
    %v3990 = vunpack.c.h.b16 %v3880
    %v3991 = vunpack.c.l.b16 %v3881
    %v3992 = vunpack.c.h.b16 %v3881
    %v3993 = vunpack.c.l.b16 %v3882
    %v3994 = vunpack.c.h.b16 %v3882
    %v3995 = vunpack.c.l.b16 %v3883
    %v3996 = vunpack.c.h.b16 %v3883
    %v3997 = vunpack.c.l.b16 %v3884
    %v3998 = vunpack.c.h.b16 %v3884
    %v3999 = vunpack.c.l.b16 %v3885
    %v4000 = vunpack.c.h.b16 %v3885
    %v4001 = vunpack.c.l.b16 %v3886
    %v4002 = vunpack.c.h.b16 %v3886
    %v4003 = vunpack.c.l.b16 %v3887
    %v4004 = vunpack.c.h.b16 %v3887
    %v4005 = vunpack.c.l.b16 %v3888
    %v4006 = vunpack.c.h.b16 %v3888
    %v4007 = vunpack.c.l.b16 %v3889
    %v4008 = vunpack.c.h.b16 %v3889
    %v4009 = vunpack.c.l.b16 %v3890
    %v4010 = vunpack.c.h.b16 %v3890
    %v4011 = vunpack.c.l.b16 %v3891
    %v4012 = vunpack.c.h.b16 %v3891
    %v4013 = vunpack.c.l.b16 %v3892
    %v4014 = vunpack.c.h.b16 %v3892
    %v4015 = vunpack.c.l.b16 %v3893
    %v4016 = vunpack.c.h.b16 %v3893
    %v4017 = vpack.c.b16 %v3947, %v3945
    %v4018 = vpack.c.b16 %v3948, %v3946
    %v4019 = vpack.c.b16 %v3951, %v3949
    %v4020 = vpack.c.b16 %v3952, %v3950
    %v4021 = vpack.c.b16 %v3955, %v3953
    %v4022 = vpack.c.b16 %v3956, %v3954
    %v4023 = vpack.c.b16 %v3959, %v3957
    %v4024 = vpack.c.b16 %v3960, %v3958
    %v4025 = vpack.c.b16 %v3963, %v3961
    %v4026 = vpack.c.b16 %v3964, %v3962
    %v4027 = vpack.c.b16 %v3967, %v3965
    %v4028 = vpack.c.b16 %v3968, %v3966
    %v4029 = vpack.c.b16 %v3971, %v3969
    %v4030 = vpack.c.b16 %v3972, %v3970
    %v4031 = vpack.c.b16 %v3975, %v3973
    %v4032 = vpack.c.b16 %v3976, %v3974
    %v4033 = vpack.c.b16 %v3979, %v3977
    %v4034 = vpack.c.b16 %v3980, %v3978
    %v4035 = vpack.c.b16 %v3983, %v3981
    %v4036 = vpack.c.b16 %v3984, %v3982
    %v4037 = vpack.c.b16 %v3987, %v3985
    %v4038 = vpack.c.b16 %v3988, %v3986
    %v4039 = vpack.c.b16 %v3991, %v3989
    %v4040 = vpack.c.b16 %v3992, %v3990
    %v4041 = vpack.c.b16 %v3995, %v3993
    %v4042 = vpack.c.b16 %v3996, %v3994
    %v4043 = vpack.c.b16 %v3999, %v3997
    %v4044 = vpack.c.b16 %v4000, %v3998
    %v4045 = vpack.c.b16 %v4003, %v4001
    %v4046 = vpack.c.b16 %v4004, %v4002
    %v4047 = vpack.c.b16 %v4007, %v4005
    %v4048 = vpack.c.b16 %v4008, %v4006
    %v4049 = vpack.c.b16 %v4011, %v4009
    %v4050 = vpack.c.b16 %v4012, %v4010
    %v4051 = vpack.c.b16 %v4015, %v4013
    %v4052 = vpack.c.b16 %v4016, %v4014
    %v4090 = vsel %vm1298, %v3906, 0
    %4092 = vmatpush.bf16.msra.mxu0 %v4031
    %4093 = vmatpush.bf16.msra.mxu0 %v4029
    %4094 = vmatpush.bf16.msra.mxu0 %v4027
    %4095 = vmatpush.bf16.msra.mxu0 %v4025
    %4096 = vmatpush.bf16.msra.mxu0 %v4023
    %4097 = vmatpush.bf16.msra.mxu0 %v4021
    %4098 = vmatpush.bf16.msra.mxu0 %v4019
    %4099 = vmatpush.bf16.msra.mxu0 %v4017
    %4100 = vmatmul.bf16.gmra.mxu0 %v3904
    %v4101 = vpop.f32.mrf.mxu0
    %v4102 = vadd.f32 0.0, %v4101
    %v4103 = vpop.f32.mrf.mxu0
    %v4104 = vadd.f32 0.0, %v4103
    %4105 = vdwg.mxu0
    %4106 = vmatpush.bf16.msra.mxu0 %v4047
    %4107 = vmatpush.bf16.msra.mxu0 %v4045
    %4108 = vmatpush.bf16.msra.mxu0 %v4043
    %4109 = vmatpush.bf16.msra.mxu0 %v4041
    %4110 = vmatpush.bf16.msra.mxu0 %v4039
    %4111 = vmatpush.bf16.msra.mxu0 %v4037
    %4112 = vmatpush.bf16.msra.mxu0 %v4035
    %4113 = vmatpush.bf16.msra.mxu0 %v4033
    %4114 = vmatmul.bf16.gmra.mxu0 %v3905
    %v4115 = vpop.f32.mrf.mxu0
    %v4116 = vadd.f32 %v4102, %v4115
    %v4117 = vpop.f32.mrf.mxu0
    %v4118 = vadd.f32 %v4104, %v4117
    %4119 = vdwg.mxu0
    %4120 = vmatpush.bf16.msra.mxu0 0
    %4121 = vmatpush.bf16.msra.mxu0 0
    %4122 = vmatpush.bf16.msra.mxu0 0
    %4123 = vmatpush.bf16.msra.mxu0 0
    %4124 = vmatpush.bf16.msra.mxu0 0
    %4125 = vmatpush.bf16.msra.mxu0 0
    %4126 = vmatpush.bf16.msra.mxu0 %v4051
    %4127 = vmatpush.bf16.msra.mxu0 %v4049
    %4128 = vmatmul.bf16.gmra.mxu0 %v4090
    %v4129 = vpop.f32.mrf.mxu0
    %v4130 = vadd.f32 %v4116, %v4129
    %v4131 = vpop.f32.mrf.mxu0
    %v4132 = vadd.f32 %v4118, %v4131
    %4133 = vdwg.mxu0
    %4134 = vmatpush.bf16.msra.mxu0 %v4032
    %4135 = vmatpush.bf16.msra.mxu0 %v4030
    %4136 = vmatpush.bf16.msra.mxu0 %v4028
    %4137 = vmatpush.bf16.msra.mxu0 %v4026
    %4138 = vmatpush.bf16.msra.mxu0 %v4024
    %4139 = vmatpush.bf16.msra.mxu0 %v4022
    %4140 = vmatpush.bf16.msra.mxu0 %v4020
    %4141 = vmatpush.bf16.msra.mxu0 %v4018
    %4142 = vmatmul.bf16.gmra.mxu0 %v3904
    %v4143 = vpop.f32.mrf.mxu0
    %v4144 = vadd.f32 0.0, %v4143
    %v4145 = vpop.f32.mrf.mxu0
    %v4146 = vadd.f32 0.0, %v4145
    %4147 = vdwg.mxu0
    %4148 = vmatpush.bf16.msra.mxu0 %v4048
    %4149 = vmatpush.bf16.msra.mxu0 %v4046
    %4150 = vmatpush.bf16.msra.mxu0 %v4044
    %4151 = vmatpush.bf16.msra.mxu0 %v4042
    %4152 = vmatpush.bf16.msra.mxu0 %v4040
    %4153 = vmatpush.bf16.msra.mxu0 %v4038
    %4154 = vmatpush.bf16.msra.mxu0 %v4036
    %4155 = vmatpush.bf16.msra.mxu0 %v4034
    %4156 = vmatmul.bf16.gmra.mxu0 %v3905
    %v4157 = vpop.f32.mrf.mxu0
    %v4158 = vadd.f32 %v4144, %v4157
    %v4159 = vpop.f32.mrf.mxu0
    %v4160 = vadd.f32 %v4146, %v4159
    %4161 = vdwg.mxu0
    %4162 = vmatpush.bf16.msra.mxu0 0
    %4163 = vmatpush.bf16.msra.mxu0 0
    %4164 = vmatpush.bf16.msra.mxu0 0
    %4165 = vmatpush.bf16.msra.mxu0 0
    %4166 = vmatpush.bf16.msra.mxu0 0
    %4167 = vmatpush.bf16.msra.mxu0 0
    %4168 = vmatpush.bf16.msra.mxu0 %v4052
    %4169 = vmatpush.bf16.msra.mxu0 %v4050
    %4170 = vmatmul.bf16.gmra.mxu0 %v4090
    %v4171 = vpop.f32.mrf.mxu0
    %v4172 = vadd.f32 %v4158, %v4171
    %v4173 = vpop.f32.mrf.mxu0
    %v4174 = vadd.f32 %v4160, %v4173
    %4175 = vdwg.mxu0
    %v4176 = vadd.f32 %v3811, %v4130
    %v4177 = vadd.f32 %v3853, %v4172
    %v4178 = vadd.f32 %v3813, %v4132
    %v4179 = vadd.f32 %v3855, %v4174
    %s4180 = scalar_lea.vmem [#allocation2], 864
    %v4181 = vld [vmem:[%s4180] sm:$0xff]
    %v4182 = vld [vmem:[%s4180 + $0x8] sm:$0xff]
    %v4183 = vld [vmem:[%s4180 + $0x10] sm:$0xff]
    %v4184 = vld [vmem:[%s4180 + $0x18] sm:$0xff]
    %v4185 = vld [vmem:[%s4180 + $0x20] sm:$0xff]
    %v4186 = vld [vmem:[%s4180 + $0x28] sm:$0xff]
    %v4187 = vld [vmem:[%s4180 + $0x30] sm:$0xff]
    %v4188 = vld [vmem:[%s4180 + $0x38] sm:$0xff]
    %v4189 = vld [vmem:[%s4180 + $0x40] sm:$0xff]
    %v4190 = vld [vmem:[%s4180 + $0x48] sm:$0xff]
    %v4191 = vld [vmem:[%s4180 + $0x50] sm:$0xff]
    %v4192 = vld [vmem:[%s4180 + $0x58] sm:$0xff]
    %v4193 = vld [vmem:[%s4180 + $0x60] sm:$0xff]
    %v4194 = vld [vmem:[%s4180 + $0x68] sm:$0xff]
    %v4195 = vld [vmem:[%s4180 + $0x70] sm:$0xff]
    %v4196 = vld [vmem:[%s4180 + $0x78] sm:$0xff]
    %v4197 = vld [vmem:[%s4180 + $0x80] sm:$0xff]
    %v4198 = vld [vmem:[%s4180 + $0x88] sm:$0xff]
    %v4199 = vld [vmem:[%s4180 + $0x90] sm:$0xff]
    %v4200 = vld [vmem:[%s4180 + $0x98] sm:$0xff]
    %v4201 = vld [vmem:[%s4180 + $0xa0] sm:$0xff]
    %v4202 = vld [vmem:[%s4180 + $0xa8] sm:$0xff]
    %v4203 = vld [vmem:[%s4180 + $0xb0] sm:$0xff]
    %v4204 = vld [vmem:[%s4180 + $0xb8] sm:$0xff]
    %v4205 = vld [vmem:[%s4180 + $0xc0] sm:$0xff]
    %v4206 = vld [vmem:[%s4180 + $0xc8] sm:$0xff]
    %v4207 = vld [vmem:[%s4180 + $0xd0] sm:$0xff]
    %v4208 = vld [vmem:[%s4180 + $0xd8] sm:$0xff]
    %v4209 = vld [vmem:[%s4180 + $0xe0] sm:$0xff]
    %v4210 = vld [vmem:[%s4180 + $0xe8] sm:$0xff]
    %v4211 = vld [vmem:[%s4180 + $0xf0] sm:$0xff]
    %v4212 = vld [vmem:[%s4180 + $0xf8] sm:$0xff]
    %v4213 = vld [vmem:[%s4180 + $0x100] sm:$0xff]
    %v4214 = vld [vmem:[%s4180 + $0x108] sm:$0xff]
    %v4215 = vld [vmem:[%s4180 + $0x110] sm:$0xff]
    %v4216 = vld [vmem:[%s4180 + $0x118] sm:$0xff]
    %v4221 = vunpack.c.l.b16 %v3212
    %v4222 = vunpack.c.h.b16 %v3212
    %v4223 = vunpack.c.l.b16 %v3213
    %v4224 = vunpack.c.l.b16 %v3214
    %v4225 = vunpack.c.h.b16 %v3214
    %v4226 = vunpack.c.l.b16 %v3215
    %v4227 = vpack.c.b16 %v4224, %v4221
    %v4228 = vpack.c.b16 %v4225, %v4222
    %v4229 = vpack.c.b16 %v4226, %v4223
    %v4268 = vunpack.c.l.b16 %v4181
    %v4269 = vunpack.c.h.b16 %v4181
    %v4270 = vunpack.c.l.b16 %v4182
    %v4271 = vunpack.c.h.b16 %v4182
    %v4272 = vunpack.c.l.b16 %v4183
    %v4273 = vunpack.c.h.b16 %v4183
    %v4274 = vunpack.c.l.b16 %v4184
    %v4275 = vunpack.c.h.b16 %v4184
    %v4276 = vunpack.c.l.b16 %v4185
    %v4277 = vunpack.c.h.b16 %v4185
    %v4278 = vunpack.c.l.b16 %v4186
    %v4279 = vunpack.c.h.b16 %v4186
    %v4280 = vunpack.c.l.b16 %v4187
    %v4281 = vunpack.c.h.b16 %v4187
    %v4282 = vunpack.c.l.b16 %v4188
    %v4283 = vunpack.c.h.b16 %v4188
    %v4284 = vunpack.c.l.b16 %v4189
    %v4285 = vunpack.c.h.b16 %v4189
    %v4286 = vunpack.c.l.b16 %v4190
    %v4287 = vunpack.c.h.b16 %v4190
    %v4288 = vunpack.c.l.b16 %v4191
    %v4289 = vunpack.c.h.b16 %v4191
    %v4290 = vunpack.c.l.b16 %v4192
    %v4291 = vunpack.c.h.b16 %v4192
    %v4292 = vunpack.c.l.b16 %v4193
    %v4293 = vunpack.c.h.b16 %v4193
    %v4294 = vunpack.c.l.b16 %v4194
    %v4295 = vunpack.c.h.b16 %v4194
    %v4296 = vunpack.c.l.b16 %v4195
    %v4297 = vunpack.c.h.b16 %v4195
    %v4298 = vunpack.c.l.b16 %v4196
    %v4299 = vunpack.c.h.b16 %v4196
    %v4300 = vunpack.c.l.b16 %v4197
    %v4301 = vunpack.c.h.b16 %v4197
    %v4302 = vunpack.c.l.b16 %v4198
    %v4303 = vunpack.c.h.b16 %v4198
    %v4304 = vunpack.c.l.b16 %v4199
    %v4305 = vunpack.c.h.b16 %v4199
    %v4306 = vunpack.c.l.b16 %v4200
    %v4307 = vunpack.c.h.b16 %v4200
    %v4308 = vunpack.c.l.b16 %v4201
    %v4309 = vunpack.c.h.b16 %v4201
    %v4310 = vunpack.c.l.b16 %v4202
    %v4311 = vunpack.c.h.b16 %v4202
    %v4312 = vunpack.c.l.b16 %v4203
    %v4313 = vunpack.c.h.b16 %v4203
    %v4314 = vunpack.c.l.b16 %v4204
    %v4315 = vunpack.c.h.b16 %v4204
    %v4316 = vunpack.c.l.b16 %v4205
    %v4317 = vunpack.c.h.b16 %v4205
    %v4318 = vunpack.c.l.b16 %v4206
    %v4319 = vunpack.c.h.b16 %v4206
    %v4320 = vunpack.c.l.b16 %v4207
    %v4321 = vunpack.c.h.b16 %v4207
    %v4322 = vunpack.c.l.b16 %v4208
    %v4323 = vunpack.c.h.b16 %v4208
    %v4324 = vunpack.c.l.b16 %v4209
    %v4325 = vunpack.c.h.b16 %v4209
    %v4326 = vunpack.c.l.b16 %v4210
    %v4327 = vunpack.c.h.b16 %v4210
    %v4328 = vunpack.c.l.b16 %v4211
    %v4329 = vunpack.c.h.b16 %v4211
    %v4330 = vunpack.c.l.b16 %v4212
    %v4331 = vunpack.c.h.b16 %v4212
    %v4332 = vunpack.c.l.b16 %v4213
    %v4333 = vunpack.c.h.b16 %v4213
    %v4334 = vunpack.c.l.b16 %v4214
    %v4335 = vunpack.c.h.b16 %v4214
    %v4336 = vunpack.c.l.b16 %v4215
    %v4337 = vunpack.c.h.b16 %v4215
    %v4338 = vunpack.c.l.b16 %v4216
    %v4339 = vunpack.c.h.b16 %v4216
    %v4340 = vpack.c.b16 %v4270, %v4268
    %v4341 = vpack.c.b16 %v4271, %v4269
    %v4342 = vpack.c.b16 %v4274, %v4272
    %v4343 = vpack.c.b16 %v4275, %v4273
    %v4344 = vpack.c.b16 %v4278, %v4276
    %v4345 = vpack.c.b16 %v4279, %v4277
    %v4346 = vpack.c.b16 %v4282, %v4280
    %v4347 = vpack.c.b16 %v4283, %v4281
    %v4348 = vpack.c.b16 %v4286, %v4284
    %v4349 = vpack.c.b16 %v4287, %v4285
    %v4350 = vpack.c.b16 %v4290, %v4288
    %v4351 = vpack.c.b16 %v4291, %v4289
    %v4352 = vpack.c.b16 %v4294, %v4292
    %v4353 = vpack.c.b16 %v4295, %v4293
    %v4354 = vpack.c.b16 %v4298, %v4296
    %v4355 = vpack.c.b16 %v4299, %v4297
    %v4356 = vpack.c.b16 %v4302, %v4300
    %v4357 = vpack.c.b16 %v4303, %v4301
    %v4358 = vpack.c.b16 %v4306, %v4304
    %v4359 = vpack.c.b16 %v4307, %v4305
    %v4360 = vpack.c.b16 %v4310, %v4308
    %v4361 = vpack.c.b16 %v4311, %v4309
    %v4362 = vpack.c.b16 %v4314, %v4312
    %v4363 = vpack.c.b16 %v4315, %v4313
    %v4364 = vpack.c.b16 %v4318, %v4316
    %v4365 = vpack.c.b16 %v4319, %v4317
    %v4366 = vpack.c.b16 %v4322, %v4320
    %v4367 = vpack.c.b16 %v4323, %v4321
    %v4368 = vpack.c.b16 %v4326, %v4324
    %v4369 = vpack.c.b16 %v4327, %v4325
    %v4370 = vpack.c.b16 %v4330, %v4328
    %v4371 = vpack.c.b16 %v4331, %v4329
    %v4372 = vpack.c.b16 %v4334, %v4332
    %v4373 = vpack.c.b16 %v4335, %v4333
    %v4374 = vpack.c.b16 %v4338, %v4336
    %v4375 = vpack.c.b16 %v4339, %v4337
    %v4413 = vsel %vm1298, %v4229, 0
    %4415 = vmatpush.bf16.msra.mxu0 %v4354
    %4416 = vmatpush.bf16.msra.mxu0 %v4352
    %4417 = vmatpush.bf16.msra.mxu0 %v4350
    %4418 = vmatpush.bf16.msra.mxu0 %v4348
    %4419 = vmatpush.bf16.msra.mxu0 %v4346
    %4420 = vmatpush.bf16.msra.mxu0 %v4344
    %4421 = vmatpush.bf16.msra.mxu0 %v4342
    %4422 = vmatpush.bf16.msra.mxu0 %v4340
    %4423 = vmatmul.bf16.gmra.mxu0 %v4227
    %v4424 = vpop.f32.mrf.mxu0
    %v4425 = vadd.f32 0.0, %v4424
    %v4426 = vpop.f32.mrf.mxu0
    %v4427 = vadd.f32 0.0, %v4426
    %4428 = vdwg.mxu0
    %4429 = vmatpush.bf16.msra.mxu0 %v4370
    %4430 = vmatpush.bf16.msra.mxu0 %v4368
    %4431 = vmatpush.bf16.msra.mxu0 %v4366
    %4432 = vmatpush.bf16.msra.mxu0 %v4364
    %4433 = vmatpush.bf16.msra.mxu0 %v4362
    %4434 = vmatpush.bf16.msra.mxu0 %v4360
    %4435 = vmatpush.bf16.msra.mxu0 %v4358
    %4436 = vmatpush.bf16.msra.mxu0 %v4356
    %4437 = vmatmul.bf16.gmra.mxu0 %v4228
    %v4438 = vpop.f32.mrf.mxu0
    %v4439 = vadd.f32 %v4425, %v4438
    %v4440 = vpop.f32.mrf.mxu0
    %v4441 = vadd.f32 %v4427, %v4440
    %4442 = vdwg.mxu0
    %4443 = vmatpush.bf16.msra.mxu0 0
    %4444 = vmatpush.bf16.msra.mxu0 0
    %4445 = vmatpush.bf16.msra.mxu0 0
    %4446 = vmatpush.bf16.msra.mxu0 0
    %4447 = vmatpush.bf16.msra.mxu0 0
    %4448 = vmatpush.bf16.msra.mxu0 0
    %4449 = vmatpush.bf16.msra.mxu0 %v4374
    %4450 = vmatpush.bf16.msra.mxu0 %v4372
    %4451 = vmatmul.bf16.gmra.mxu0 %v4413
    %v4452 = vpop.f32.mrf.mxu0
    %v4453 = vadd.f32 %v4439, %v4452
    %v4454 = vpop.f32.mrf.mxu0
    %v4455 = vadd.f32 %v4441, %v4454
    %4456 = vdwg.mxu0
    %4457 = vmatpush.bf16.msra.mxu0 %v4355
    %4458 = vmatpush.bf16.msra.mxu0 %v4353
    %4459 = vmatpush.bf16.msra.mxu0 %v4351
    %4460 = vmatpush.bf16.msra.mxu0 %v4349
    %4461 = vmatpush.bf16.msra.mxu0 %v4347
    %4462 = vmatpush.bf16.msra.mxu0 %v4345
    %4463 = vmatpush.bf16.msra.mxu0 %v4343
    %4464 = vmatpush.bf16.msra.mxu0 %v4341
    %4465 = vmatmul.bf16.gmra.mxu0 %v4227
    %v4466 = vpop.f32.mrf.mxu0
    %v4467 = vadd.f32 0.0, %v4466
    %v4468 = vpop.f32.mrf.mxu0
    %v4469 = vadd.f32 0.0, %v4468
    %4470 = vdwg.mxu0
    %4471 = vmatpush.bf16.msra.mxu0 %v4371
    %4472 = vmatpush.bf16.msra.mxu0 %v4369
    %4473 = vmatpush.bf16.msra.mxu0 %v4367
    %4474 = vmatpush.bf16.msra.mxu0 %v4365
    %4475 = vmatpush.bf16.msra.mxu0 %v4363
    %4476 = vmatpush.bf16.msra.mxu0 %v4361
    %4477 = vmatpush.bf16.msra.mxu0 %v4359
    %4478 = vmatpush.bf16.msra.mxu0 %v4357
    %4479 = vmatmul.bf16.gmra.mxu0 %v4228
    %v4480 = vpop.f32.mrf.mxu0
    %v4481 = vadd.f32 %v4467, %v4480
    %v4482 = vpop.f32.mrf.mxu0
    %v4483 = vadd.f32 %v4469, %v4482
    %4484 = vdwg.mxu0
    %4485 = vmatpush.bf16.msra.mxu0 0
    %4486 = vmatpush.bf16.msra.mxu0 0
    %4487 = vmatpush.bf16.msra.mxu0 0
    %4488 = vmatpush.bf16.msra.mxu0 0
    %4489 = vmatpush.bf16.msra.mxu0 0
    %4490 = vmatpush.bf16.msra.mxu0 0
    %4491 = vmatpush.bf16.msra.mxu0 %v4375
    %4492 = vmatpush.bf16.msra.mxu0 %v4373
    %4493 = vmatmul.bf16.gmra.mxu0 %v4413
    %v4494 = vpop.f32.mrf.mxu0
    %v4495 = vadd.f32 %v4481, %v4494
    %v4496 = vpop.f32.mrf.mxu0
    %v4497 = vadd.f32 %v4483, %v4496
    %4498 = vdwg.mxu0
    %v4499 = vadd.f32 %v4176, %v4453
    %v4500 = vadd.f32 %v4177, %v4495
    %v4501 = vadd.f32 %v4178, %v4455
    %v4502 = vadd.f32 %v4179, %v4497
    %s4503 = scalar_lea.vmem [#allocation2], 1152
    %v4504 = vld [vmem:[%s4503] sm:$0xff]
    %v4505 = vld [vmem:[%s4503 + $0x8] sm:$0xff]
    %v4506 = vld [vmem:[%s4503 + $0x10] sm:$0xff]
    %v4507 = vld [vmem:[%s4503 + $0x18] sm:$0xff]
    %v4508 = vld [vmem:[%s4503 + $0x20] sm:$0xff]
    %v4509 = vld [vmem:[%s4503 + $0x28] sm:$0xff]
    %v4510 = vld [vmem:[%s4503 + $0x30] sm:$0xff]
    %v4511 = vld [vmem:[%s4503 + $0x38] sm:$0xff]
    %v4512 = vld [vmem:[%s4503 + $0x40] sm:$0xff]
    %v4513 = vld [vmem:[%s4503 + $0x48] sm:$0xff]
    %v4514 = vld [vmem:[%s4503 + $0x50] sm:$0xff]
    %v4515 = vld [vmem:[%s4503 + $0x58] sm:$0xff]
    %v4516 = vld [vmem:[%s4503 + $0x60] sm:$0xff]
    %v4517 = vld [vmem:[%s4503 + $0x68] sm:$0xff]
    %v4518 = vld [vmem:[%s4503 + $0x70] sm:$0xff]
    %v4519 = vld [vmem:[%s4503 + $0x78] sm:$0xff]
    %v4520 = vld [vmem:[%s4503 + $0x80] sm:$0xff]
    %v4521 = vld [vmem:[%s4503 + $0x88] sm:$0xff]
    %v4522 = vld [vmem:[%s4503 + $0x90] sm:$0xff]
    %v4523 = vld [vmem:[%s4503 + $0x98] sm:$0xff]
    %v4524 = vld [vmem:[%s4503 + $0xa0] sm:$0xff]
    %v4525 = vld [vmem:[%s4503 + $0xa8] sm:$0xff]
    %v4526 = vld [vmem:[%s4503 + $0xb0] sm:$0xff]
    %v4527 = vld [vmem:[%s4503 + $0xb8] sm:$0xff]
    %v4528 = vld [vmem:[%s4503 + $0xc0] sm:$0xff]
    %v4529 = vld [vmem:[%s4503 + $0xc8] sm:$0xff]
    %v4530 = vld [vmem:[%s4503 + $0xd0] sm:$0xff]
    %v4531 = vld [vmem:[%s4503 + $0xd8] sm:$0xff]
    %v4532 = vld [vmem:[%s4503 + $0xe0] sm:$0xff]
    %v4533 = vld [vmem:[%s4503 + $0xe8] sm:$0xff]
    %v4534 = vld [vmem:[%s4503 + $0xf0] sm:$0xff]
    %v4535 = vld [vmem:[%s4503 + $0xf8] sm:$0xff]
    %v4536 = vld [vmem:[%s4503 + $0x100] sm:$0xff]
    %v4537 = vld [vmem:[%s4503 + $0x108] sm:$0xff]
    %v4538 = vld [vmem:[%s4503 + $0x110] sm:$0xff]
    %v4539 = vld [vmem:[%s4503 + $0x118] sm:$0xff]
    %v4544 = vunpack.c.l.b16 %v3216
    %v4545 = vunpack.c.h.b16 %v3216
    %v4546 = vunpack.c.l.b16 %v3217
    %v4547 = vunpack.c.l.b16 %v3218
    %v4548 = vunpack.c.h.b16 %v3218
    %v4549 = vunpack.c.l.b16 %v3219
    %v4550 = vpack.c.b16 %v4547, %v4544
    %v4551 = vpack.c.b16 %v4548, %v4545
    %v4552 = vpack.c.b16 %v4549, %v4546
    %v4591 = vunpack.c.l.b16 %v4504
    %v4592 = vunpack.c.h.b16 %v4504
    %v4593 = vunpack.c.l.b16 %v4505
    %v4594 = vunpack.c.h.b16 %v4505
    %v4595 = vunpack.c.l.b16 %v4506
    %v4596 = vunpack.c.h.b16 %v4506
    %v4597 = vunpack.c.l.b16 %v4507
    %v4598 = vunpack.c.h.b16 %v4507
    %v4599 = vunpack.c.l.b16 %v4508
    %v4600 = vunpack.c.h.b16 %v4508
    %v4601 = vunpack.c.l.b16 %v4509
    %v4602 = vunpack.c.h.b16 %v4509
    %v4603 = vunpack.c.l.b16 %v4510
    %v4604 = vunpack.c.h.b16 %v4510
    %v4605 = vunpack.c.l.b16 %v4511
    %v4606 = vunpack.c.h.b16 %v4511
    %v4607 = vunpack.c.l.b16 %v4512
    %v4608 = vunpack.c.h.b16 %v4512
    %v4609 = vunpack.c.l.b16 %v4513
    %v4610 = vunpack.c.h.b16 %v4513
    %v4611 = vunpack.c.l.b16 %v4514
    %v4612 = vunpack.c.h.b16 %v4514
    %v4613 = vunpack.c.l.b16 %v4515
    %v4614 = vunpack.c.h.b16 %v4515
    %v4615 = vunpack.c.l.b16 %v4516
    %v4616 = vunpack.c.h.b16 %v4516
    %v4617 = vunpack.c.l.b16 %v4517
    %v4618 = vunpack.c.h.b16 %v4517
    %v4619 = vunpack.c.l.b16 %v4518
    %v4620 = vunpack.c.h.b16 %v4518
    %v4621 = vunpack.c.l.b16 %v4519
    %v4622 = vunpack.c.h.b16 %v4519
    %v4623 = vunpack.c.l.b16 %v4520
    %v4624 = vunpack.c.h.b16 %v4520
    %v4625 = vunpack.c.l.b16 %v4521
    %v4626 = vunpack.c.h.b16 %v4521
    %v4627 = vunpack.c.l.b16 %v4522
    %v4628 = vunpack.c.h.b16 %v4522
    %v4629 = vunpack.c.l.b16 %v4523
    %v4630 = vunpack.c.h.b16 %v4523
    %v4631 = vunpack.c.l.b16 %v4524
    %v4632 = vunpack.c.h.b16 %v4524
    %v4633 = vunpack.c.l.b16 %v4525
    %v4634 = vunpack.c.h.b16 %v4525
    %v4635 = vunpack.c.l.b16 %v4526
    %v4636 = vunpack.c.h.b16 %v4526
    %v4637 = vunpack.c.l.b16 %v4527
    %v4638 = vunpack.c.h.b16 %v4527
    %v4639 = vunpack.c.l.b16 %v4528
    %v4640 = vunpack.c.h.b16 %v4528
    %v4641 = vunpack.c.l.b16 %v4529
    %v4642 = vunpack.c.h.b16 %v4529
    %v4643 = vunpack.c.l.b16 %v4530
    %v4644 = vunpack.c.h.b16 %v4530
    %v4645 = vunpack.c.l.b16 %v4531
    %v4646 = vunpack.c.h.b16 %v4531
    %v4647 = vunpack.c.l.b16 %v4532
    %v4648 = vunpack.c.h.b16 %v4532
    %v4649 = vunpack.c.l.b16 %v4533
    %v4650 = vunpack.c.h.b16 %v4533
    %v4651 = vunpack.c.l.b16 %v4534
    %v4652 = vunpack.c.h.b16 %v4534
    %v4653 = vunpack.c.l.b16 %v4535
    %v4654 = vunpack.c.h.b16 %v4535
    %v4655 = vunpack.c.l.b16 %v4536
    %v4656 = vunpack.c.h.b16 %v4536
    %v4657 = vunpack.c.l.b16 %v4537
    %v4658 = vunpack.c.h.b16 %v4537
    %v4659 = vunpack.c.l.b16 %v4538
    %v4660 = vunpack.c.h.b16 %v4538
    %v4661 = vunpack.c.l.b16 %v4539
    %v4662 = vunpack.c.h.b16 %v4539
    %v4663 = vpack.c.b16 %v4593, %v4591
    %v4664 = vpack.c.b16 %v4594, %v4592
    %v4665 = vpack.c.b16 %v4597, %v4595
    %v4666 = vpack.c.b16 %v4598, %v4596
    %v4667 = vpack.c.b16 %v4601, %v4599
    %v4668 = vpack.c.b16 %v4602, %v4600
    %v4669 = vpack.c.b16 %v4605, %v4603
    %v4670 = vpack.c.b16 %v4606, %v4604
    %v4671 = vpack.c.b16 %v4609, %v4607
    %v4672 = vpack.c.b16 %v4610, %v4608
    %v4673 = vpack.c.b16 %v4613, %v4611
    %v4674 = vpack.c.b16 %v4614, %v4612
    %v4675 = vpack.c.b16 %v4617, %v4615
    %v4676 = vpack.c.b16 %v4618, %v4616
    %v4677 = vpack.c.b16 %v4621, %v4619
    %v4678 = vpack.c.b16 %v4622, %v4620
    %v4679 = vpack.c.b16 %v4625, %v4623
    %v4680 = vpack.c.b16 %v4626, %v4624
    %v4681 = vpack.c.b16 %v4629, %v4627
    %v4682 = vpack.c.b16 %v4630, %v4628
    %v4683 = vpack.c.b16 %v4633, %v4631
    %v4684 = vpack.c.b16 %v4634, %v4632
    %v4685 = vpack.c.b16 %v4637, %v4635
    %v4686 = vpack.c.b16 %v4638, %v4636
    %v4687 = vpack.c.b16 %v4641, %v4639
    %v4688 = vpack.c.b16 %v4642, %v4640
    %v4689 = vpack.c.b16 %v4645, %v4643
    %v4690 = vpack.c.b16 %v4646, %v4644
    %v4691 = vpack.c.b16 %v4649, %v4647
    %v4692 = vpack.c.b16 %v4650, %v4648
    %v4693 = vpack.c.b16 %v4653, %v4651
    %v4694 = vpack.c.b16 %v4654, %v4652
    %v4695 = vpack.c.b16 %v4657, %v4655
    %v4696 = vpack.c.b16 %v4658, %v4656
    %v4697 = vpack.c.b16 %v4661, %v4659
    %v4698 = vpack.c.b16 %v4662, %v4660
    %v4736 = vsel %vm1298, %v4552, 0
    %4738 = vmatpush.bf16.msra.mxu0 %v4677
    %4739 = vmatpush.bf16.msra.mxu0 %v4675
    %4740 = vmatpush.bf16.msra.mxu0 %v4673
    %4741 = vmatpush.bf16.msra.mxu0 %v4671
    %4742 = vmatpush.bf16.msra.mxu0 %v4669
    %4743 = vmatpush.bf16.msra.mxu0 %v4667
    %4744 = vmatpush.bf16.msra.mxu0 %v4665
    %4745 = vmatpush.bf16.msra.mxu0 %v4663
    %4746 = vmatmul.bf16.gmra.mxu0 %v4550
    %v4747 = vpop.f32.mrf.mxu0
    %v4748 = vadd.f32 0.0, %v4747
    %v4749 = vpop.f32.mrf.mxu0
    %v4750 = vadd.f32 0.0, %v4749
    %4751 = vdwg.mxu0
    %4752 = vmatpush.bf16.msra.mxu0 %v4693
    %4753 = vmatpush.bf16.msra.mxu0 %v4691
    %4754 = vmatpush.bf16.msra.mxu0 %v4689
    %4755 = vmatpush.bf16.msra.mxu0 %v4687
    %4756 = vmatpush.bf16.msra.mxu0 %v4685
    %4757 = vmatpush.bf16.msra.mxu0 %v4683
    %4758 = vmatpush.bf16.msra.mxu0 %v4681
    %4759 = vmatpush.bf16.msra.mxu0 %v4679
    %4760 = vmatmul.bf16.gmra.mxu0 %v4551
    %v4761 = vpop.f32.mrf.mxu0
    %v4762 = vadd.f32 %v4748, %v4761
    %v4763 = vpop.f32.mrf.mxu0
    %v4764 = vadd.f32 %v4750, %v4763
    %4765 = vdwg.mxu0
    %4766 = vmatpush.bf16.msra.mxu0 0
    %4767 = vmatpush.bf16.msra.mxu0 0
    %4768 = vmatpush.bf16.msra.mxu0 0
    %4769 = vmatpush.bf16.msra.mxu0 0
    %4770 = vmatpush.bf16.msra.mxu0 0
    %4771 = vmatpush.bf16.msra.mxu0 0
    %4772 = vmatpush.bf16.msra.mxu0 %v4697
    %4773 = vmatpush.bf16.msra.mxu0 %v4695
    %4774 = vmatmul.bf16.gmra.mxu0 %v4736
    %v4775 = vpop.f32.mrf.mxu0
    %v4776 = vadd.f32 %v4762, %v4775
    %v4777 = vpop.f32.mrf.mxu0
    %v4778 = vadd.f32 %v4764, %v4777
    %4779 = vdwg.mxu0
    %4780 = vmatpush.bf16.msra.mxu0 %v4678
    %4781 = vmatpush.bf16.msra.mxu0 %v4676
    %4782 = vmatpush.bf16.msra.mxu0 %v4674
    %4783 = vmatpush.bf16.msra.mxu0 %v4672
    %4784 = vmatpush.bf16.msra.mxu0 %v4670
    %4785 = vmatpush.bf16.msra.mxu0 %v4668
    %4786 = vmatpush.bf16.msra.mxu0 %v4666
    %4787 = vmatpush.bf16.msra.mxu0 %v4664
    %4788 = vmatmul.bf16.gmra.mxu0 %v4550
    %v4789 = vpop.f32.mrf.mxu0
    %v4790 = vadd.f32 0.0, %v4789
    %v4791 = vpop.f32.mrf.mxu0
    %v4792 = vadd.f32 0.0, %v4791
    %4793 = vdwg.mxu0
    %4794 = vmatpush.bf16.msra.mxu0 %v4694
    %4795 = vmatpush.bf16.msra.mxu0 %v4692
    %4796 = vmatpush.bf16.msra.mxu0 %v4690
    %4797 = vmatpush.bf16.msra.mxu0 %v4688
    %4798 = vmatpush.bf16.msra.mxu0 %v4686
    %4799 = vmatpush.bf16.msra.mxu0 %v4684
    %4800 = vmatpush.bf16.msra.mxu0 %v4682
    %4801 = vmatpush.bf16.msra.mxu0 %v4680
    %4802 = vmatmul.bf16.gmra.mxu0 %v4551
    %v4803 = vpop.f32.mrf.mxu0
    %v4804 = vadd.f32 %v4790, %v4803
    %v4805 = vpop.f32.mrf.mxu0
    %v4806 = vadd.f32 %v4792, %v4805
    %4807 = vdwg.mxu0
    %4808 = vmatpush.bf16.msra.mxu0 0
    %4809 = vmatpush.bf16.msra.mxu0 0
    %4810 = vmatpush.bf16.msra.mxu0 0
    %4811 = vmatpush.bf16.msra.mxu0 0
    %4812 = vmatpush.bf16.msra.mxu0 0
    %4813 = vmatpush.bf16.msra.mxu0 0
    %4814 = vmatpush.bf16.msra.mxu0 %v4698
    %4815 = vmatpush.bf16.msra.mxu0 %v4696
    %4816 = vmatmul.bf16.gmra.mxu0 %v4736
    %v4817 = vpop.f32.mrf.mxu0
    %v4818 = vadd.f32 %v4804, %v4817
    %v4819 = vpop.f32.mrf.mxu0
    %v4820 = vadd.f32 %v4806, %v4819
    %4821 = vdwg.mxu0
    %v4822 = vadd.f32 %v4499, %v4776
    %v4823 = vadd.f32 %v4500, %v4818
    %v4824 = vadd.f32 %v4501, %v4778
    %v4825 = vadd.f32 %v4502, %v4820
    %v4826 = vld [vmem:[%s5] sm:$0x3]
    %v4828 = vperm.slane %v4826, 0
    %v4829 = vperm.slane %v4826, 1
    %v4832 = vadd.f32 %v4822, %v4828
    %v4833 = vadd.f32 %v4823, %v4829
    %v4834 = vadd.f32 %v4824, %v4828
    %v4835 = vadd.f32 %v4825, %v4829
    %v4836 = vmax.f32 %v4832, 0.0
    %v4837 = vmax.f32 %v4833, 0.0
    %v4838 = vmax.f32 %v4834, 0.0
    %v4839 = vmax.f32 %v4835, 0.0
    %v4840 = vpack.c.bf16 %v4838, %v4836
    %v4841 = vpack.c.bf16 %v4839, %v4837
    %s4842 = smul.u32 %s3042, 28
    %s4843 = smul.u32 %s4842, 1
    %s4844 = sshll.u32 %s4843, 4
    %4845 = dma.done %s431, %s4844
    %v4846 = vld [vmem:[%s6] sm:$0xf]
    %v4847 = vld [vmem:[%s6 + $0x4] sm:$0xf]
    %v4848 = vld [vmem:[%s6 + $0x8] sm:$0xf]
    %v4849 = vld [vmem:[%s6 + $0xc] sm:$0xf]
    %v4850 = vld [vmem:[%s6 + $0x10] sm:$0xf]
    %v4851 = vld [vmem:[%s6 + $0x14] sm:$0xf]
    %v4852 = vld [vmem:[%s6 + $0x18] sm:$0xf]
    %v4853 = vld [vmem:[%s6 + $0x1c] sm:$0xf]
    %v4854 = vld [vmem:[%s6 + $0x20] sm:$0xf]
    %v4855 = vld [vmem:[%s6 + $0x24] sm:$0xf]
    %v4866 = vunpack.c.l.b16 %v4846
    %v4867 = vunpack.c.l.b16 %v4847
    %v4868 = vunpack.c.l.b16 %v4848
    %v4869 = vunpack.c.l.b16 %v4849
    %v4870 = vunpack.c.l.b16 %v4850
    %v4871 = vunpack.c.l.b16 %v4851
    %v4872 = vunpack.c.l.b16 %v4852
    %v4873 = vunpack.c.l.b16 %v4853
    %v4874 = vunpack.c.l.b16 %v4854
    %v4875 = vunpack.c.l.b16 %v4855
    %v4876 = vpack.c.b16 %v4867, %v4866
    %v4877 = vpack.c.b16 %v4869, %v4868
    %v4878 = vpack.c.b16 %v4871, %v4870
    %v4879 = vpack.c.b16 %v4873, %v4872
    %v4880 = vpack.c.b16 %v4875, %v4874
    %vm4881 = vcmask 130048
    %v4883 = vsel %vm4881, %v4876, 0
    %v4886 = vsel %vm4881, %v4877, 0
    %v4889 = vsel %vm4881, %v4878, 0
    %v4892 = vsel %vm4881, %v4879, 0
    %v4895 = vsel %vm4881, %v4880, 0
    %4897 = vmatpush.bf16.msra.mxu0 0
    %4898 = vmatpush.bf16.msra.mxu0 0
    %4899 = vmatpush.bf16.msra.mxu0 0
    %4900 = vmatpush.bf16.msra.mxu0 0
    %4901 = vmatpush.bf16.msra.mxu0 0
    %4902 = vmatpush.bf16.msra.mxu0 0
    %4903 = vmatpush.bf16.msra.mxu0 0
    %4904 = vmatpush.bf16.msra.mxu0 %v4840
    %4905 = vmatmul.bf16.gmra.mxu0 %v4883
    %v4906 = vpop.f32.mrf.mxu0
    %v4907 = vadd.f32 0.0, %v4906
    %v4908 = vpop.f32.mrf.mxu0
    %v4909 = vadd.f32 0.0, %v4908
    %4910 = vmatmul.bf16.gmra.mxu0 %v4886
    %v4911 = vpop.f32.mrf.mxu0
    %v4912 = vadd.f32 0.0, %v4911
    %v4913 = vpop.f32.mrf.mxu0
    %v4914 = vadd.f32 0.0, %v4913
    %4915 = vmatmul.bf16.gmra.mxu0 %v4889
    %v4916 = vpop.f32.mrf.mxu0
    %v4917 = vadd.f32 0.0, %v4916
    %v4918 = vpop.f32.mrf.mxu0
    %v4919 = vadd.f32 0.0, %v4918
    %4920 = vmatmul.bf16.gmra.mxu0 %v4892
    %v4921 = vpop.f32.mrf.mxu0
    %v4922 = vadd.f32 0.0, %v4921
    %v4923 = vpop.f32.mrf.mxu0
    %v4924 = vadd.f32 0.0, %v4923
    %4925 = vmatmul.bf16.gmra.mxu0 %v4895
    %v4926 = vpop.f32.mrf.mxu0
    %v4927 = vadd.f32 0.0, %v4926
    %v4928 = vpop.f32.mrf.mxu0
    %v4929 = vadd.f32 0.0, %v4928
    %4930 = vdwg.mxu0
    %4931 = vmatpush.bf16.msra.mxu0 0
    %4932 = vmatpush.bf16.msra.mxu0 0
    %4933 = vmatpush.bf16.msra.mxu0 0
    %4934 = vmatpush.bf16.msra.mxu0 0
    %4935 = vmatpush.bf16.msra.mxu0 0
    %4936 = vmatpush.bf16.msra.mxu0 0
    %4937 = vmatpush.bf16.msra.mxu0 0
    %4938 = vmatpush.bf16.msra.mxu0 %v4841
    %4939 = vmatmul.bf16.gmra.mxu0 %v4883
    %v4940 = vpop.f32.mrf.mxu0
    %v4941 = vadd.f32 0.0, %v4940
    %v4942 = vpop.f32.mrf.mxu0
    %v4943 = vadd.f32 0.0, %v4942
    %4944 = vmatmul.bf16.gmra.mxu0 %v4886
    %v4945 = vpop.f32.mrf.mxu0
    %v4946 = vadd.f32 0.0, %v4945
    %v4947 = vpop.f32.mrf.mxu0
    %v4948 = vadd.f32 0.0, %v4947
    %4949 = vmatmul.bf16.gmra.mxu0 %v4889
    %v4950 = vpop.f32.mrf.mxu0
    %v4951 = vadd.f32 0.0, %v4950
    %v4952 = vpop.f32.mrf.mxu0
    %v4953 = vadd.f32 0.0, %v4952
    %4954 = vmatmul.bf16.gmra.mxu0 %v4892
    %v4955 = vpop.f32.mrf.mxu0
    %v4956 = vadd.f32 0.0, %v4955
    %v4957 = vpop.f32.mrf.mxu0
    %v4958 = vadd.f32 0.0, %v4957
    %4959 = vmatmul.bf16.gmra.mxu0 %v4895
    %v4960 = vpop.f32.mrf.mxu0
    %v4961 = vadd.f32 0.0, %v4960
    %v4962 = vpop.f32.mrf.mxu0
    %v4963 = vadd.f32 0.0, %v4962
    %4964 = vdwg.mxu0
    %v4965 = vpack.c.bf16 %v4941, %v4907
    %v4966 = vpack.c.bf16 %v4943, %v4909
    %v4967 = vpack.c.bf16 %v4946, %v4912
    %v4968 = vpack.c.bf16 %v4948, %v4914
    %v4969 = vpack.c.bf16 %v4951, %v4917
    %v4970 = vpack.c.bf16 %v4953, %v4919
    %v4971 = vpack.c.bf16 %v4956, %v4922
    %v4972 = vpack.c.bf16 %v4958, %v4924
    %v4973 = vpack.c.bf16 %v4961, %v4927
    %v4974 = vpack.c.bf16 %v4963, %v4929
    %v4975 = vld [vmem:[#allocation3] sm:$0xf]
    %v4976 = vld [vmem:[#allocation3 + $0x4] sm:$0xf]
    %v4977 = vld [vmem:[#allocation3 + $0x8] sm:$0xf]
    %v4978 = vld [vmem:[#allocation3 + $0xc] sm:$0xf]
    %v4979 = vld [vmem:[#allocation3 + $0x10] sm:$0xf]
    %v4980 = vld [vmem:[#allocation3 + $0x14] sm:$0xf]
    %v4981 = vld [vmem:[#allocation3 + $0x18] sm:$0xf]
    %v4982 = vld [vmem:[#allocation3 + $0x1c] sm:$0xf]
    %v4983 = vld [vmem:[#allocation3 + $0x20] sm:$0xf]
    %v4984 = vld [vmem:[#allocation3 + $0x24] sm:$0xf]
    %v4985 = vld [vmem:[#allocation3 + $0x28] sm:$0xf]
    %v4986 = vld [vmem:[#allocation3 + $0x2c] sm:$0xf]
    %v4987 = vld [vmem:[#allocation3 + $0x30] sm:$0xf]
    %v4988 = vld [vmem:[#allocation3 + $0x34] sm:$0xf]
    %v4989 = vld [vmem:[#allocation3 + $0x38] sm:$0xf]
    %v4990 = vld [vmem:[#allocation3 + $0x3c] sm:$0xf]
    %v4991 = vld [vmem:[#allocation3 + $0x40] sm:$0xf]
    %v4992 = vld [vmem:[#allocation3 + $0x44] sm:$0xf]
    %v4993 = vld [vmem:[#allocation3 + $0x48] sm:$0xf]
    %v4994 = vld [vmem:[#allocation3 + $0x4c] sm:$0xf]
    %v4995 = vld [vmem:[#allocation3 + $0x50] sm:$0xf]
    %v4996 = vld [vmem:[#allocation3 + $0x54] sm:$0xf]
    %v4997 = vld [vmem:[#allocation3 + $0x58] sm:$0xf]
    %v4998 = vld [vmem:[#allocation3 + $0x5c] sm:$0xf]
    %v4999 = vld [vmem:[#allocation3 + $0x60] sm:$0xf]
    %v5000 = vld [vmem:[#allocation3 + $0x64] sm:$0xf]
    %v5001 = vld [vmem:[#allocation3 + $0x68] sm:$0xf]
    %v5002 = vld [vmem:[#allocation3 + $0x6c] sm:$0xf]
    %s5003 = scalar_lea.vmem [#allocation3], 112
    %v5004 = vld [vmem:[%s5003] sm:$0xf]
    %v5005 = vld [vmem:[%s5003 + $0x4] sm:$0xf]
    %v5006 = vld [vmem:[%s5003 + $0x8] sm:$0xf]
    %v5007 = vld [vmem:[%s5003 + $0xc] sm:$0xf]
    %v5008 = vld [vmem:[%s5003 + $0x10] sm:$0xf]
    %v5009 = vld [vmem:[%s5003 + $0x14] sm:$0xf]
    %v5010 = vld [vmem:[%s5003 + $0x18] sm:$0xf]
    %v5011 = vld [vmem:[%s5003 + $0x1c] sm:$0xf]
    %v5012 = vld [vmem:[%s5003 + $0x20] sm:$0xf]
    %v5013 = vld [vmem:[%s5003 + $0x24] sm:$0xf]
    %v5014 = vld [vmem:[%s5003 + $0x28] sm:$0xf]
    %v5015 = vld [vmem:[%s5003 + $0x2c] sm:$0xf]
    %v5016 = vld [vmem:[%s5003 + $0x30] sm:$0xf]
    %v5017 = vld [vmem:[%s5003 + $0x34] sm:$0xf]
    %v5018 = vld [vmem:[%s5003 + $0x38] sm:$0xf]
    %v5019 = vld [vmem:[%s5003 + $0x3c] sm:$0xf]
    %v5020 = vld [vmem:[%s5003 + $0x40] sm:$0xf]
    %v5021 = vld [vmem:[%s5003 + $0x44] sm:$0xf]
    %v5022 = vld [vmem:[%s5003 + $0x48] sm:$0xf]
    %v5023 = vld [vmem:[%s5003 + $0x4c] sm:$0xf]
    %v5024 = vld [vmem:[%s5003 + $0x50] sm:$0xf]
    %v5025 = vld [vmem:[%s5003 + $0x54] sm:$0xf]
    %v5026 = vld [vmem:[%s5003 + $0x58] sm:$0xf]
    %v5027 = vld [vmem:[%s5003 + $0x5c] sm:$0xf]
    %v5028 = vld [vmem:[%s5003 + $0x60] sm:$0xf]
    %v5029 = vld [vmem:[%s5003 + $0x64] sm:$0xf]
    %v5030 = vld [vmem:[%s5003 + $0x68] sm:$0xf]
    %v5031 = vld [vmem:[%s5003 + $0x6c] sm:$0xf]
    %v5034 = vunpack.c.l.b16 %v4967
    %v5035 = vunpack.c.h.b16 %v4967
    %v5036 = vunpack.c.l.b16 %v4968
    %v5037 = vunpack.c.h.b16 %v4968
    %v5038 = vpack.c.b16 %v5036, %v5034
    %v5039 = vpack.c.b16 %v5037, %v5035
    %v5069 = vunpack.c.l.b16 %v5004
    %v5070 = vunpack.c.l.b16 %v5005
    %v5071 = vunpack.c.l.b16 %v5006
    %v5072 = vunpack.c.l.b16 %v5007
    %v5073 = vunpack.c.l.b16 %v5008
    %v5074 = vunpack.c.l.b16 %v5009
    %v5075 = vunpack.c.l.b16 %v5010
    %v5076 = vunpack.c.l.b16 %v5011
    %v5077 = vunpack.c.l.b16 %v5012
    %v5078 = vunpack.c.l.b16 %v5013
    %v5079 = vunpack.c.l.b16 %v5014
    %v5080 = vunpack.c.l.b16 %v5015
    %v5081 = vunpack.c.l.b16 %v5016
    %v5082 = vunpack.c.l.b16 %v5017
    %v5083 = vunpack.c.l.b16 %v5018
    %v5084 = vunpack.c.l.b16 %v5019
    %v5085 = vunpack.c.l.b16 %v5020
    %v5086 = vunpack.c.l.b16 %v5021
    %v5087 = vunpack.c.l.b16 %v5022
    %v5088 = vunpack.c.l.b16 %v5023
    %v5089 = vunpack.c.l.b16 %v5024
    %v5090 = vunpack.c.l.b16 %v5025
    %v5091 = vunpack.c.l.b16 %v5026
    %v5092 = vunpack.c.l.b16 %v5027
    %v5093 = vunpack.c.l.b16 %v5028
    %v5094 = vunpack.c.l.b16 %v5029
    %v5095 = vunpack.c.l.b16 %v5030
    %v5096 = vunpack.c.l.b16 %v5031
    %v5097 = vpack.c.b16 %v5070, %v5069
    %v5098 = vpack.c.b16 %v5072, %v5071
    %v5099 = vpack.c.b16 %v5074, %v5073
    %v5100 = vpack.c.b16 %v5076, %v5075
    %v5101 = vpack.c.b16 %v5078, %v5077
    %v5102 = vpack.c.b16 %v5080, %v5079
    %v5103 = vpack.c.b16 %v5082, %v5081
    %v5104 = vpack.c.b16 %v5084, %v5083
    %v5105 = vpack.c.b16 %v5086, %v5085
    %v5106 = vpack.c.b16 %v5088, %v5087
    %v5107 = vpack.c.b16 %v5090, %v5089
    %v5108 = vpack.c.b16 %v5092, %v5091
    %v5109 = vpack.c.b16 %v5094, %v5093
    %v5110 = vpack.c.b16 %v5096, %v5095
    %vm5125 = vcmask 785408
    %v5127 = vsel %vm5125, %v5039, 0
    %5129 = vmatpush.bf16.msra.mxu0 %v5104
    %5130 = vmatpush.bf16.msra.mxu0 %v5103
    %5131 = vmatpush.bf16.msra.mxu0 %v5102
    %5132 = vmatpush.bf16.msra.mxu0 %v5101
    %5133 = vmatpush.bf16.msra.mxu0 %v5100
    %5134 = vmatpush.bf16.msra.mxu0 %v5099
    %5135 = vmatpush.bf16.msra.mxu0 %v5098
    %5136 = vmatpush.bf16.msra.mxu0 %v5097
    %5137 = vmatmul.bf16.gmra.mxu0 %v5038
    %v5138 = vpop.f32.mrf.mxu0
    %v5139 = vadd.f32 0.0, %v5138
    %v5140 = vpop.f32.mrf.mxu0
    %v5141 = vadd.f32 0.0, %v5140
    %5142 = vdwg.mxu0
    %5143 = vmatpush.bf16.msra.mxu0 0
    %5144 = vmatpush.bf16.msra.mxu0 0
    %5145 = vmatpush.bf16.msra.mxu0 %v5110
    %5146 = vmatpush.bf16.msra.mxu0 %v5109
    %5147 = vmatpush.bf16.msra.mxu0 %v5108
    %5148 = vmatpush.bf16.msra.mxu0 %v5107
    %5149 = vmatpush.bf16.msra.mxu0 %v5106
    %5150 = vmatpush.bf16.msra.mxu0 %v5105
    %5151 = vmatmul.bf16.gmra.mxu0 %v5127
    %v5152 = vpop.f32.mrf.mxu0
    %v5153 = vadd.f32 %v5139, %v5152
    %v5154 = vpop.f32.mrf.mxu0
    %v5155 = vadd.f32 %v5141, %v5154
    %5156 = vdwg.mxu0
    %v5159 = vunpack.c.l.b16 %v4965
    %v5160 = vunpack.c.h.b16 %v4965
    %v5161 = vunpack.c.l.b16 %v4966
    %v5162 = vunpack.c.h.b16 %v4966
    %v5163 = vpack.c.b16 %v5161, %v5159
    %v5164 = vpack.c.b16 %v5162, %v5160
    %v5194 = vunpack.c.l.b16 %v4975
    %v5195 = vunpack.c.l.b16 %v4976
    %v5196 = vunpack.c.l.b16 %v4977
    %v5197 = vunpack.c.l.b16 %v4978
    %v5198 = vunpack.c.l.b16 %v4979
    %v5199 = vunpack.c.l.b16 %v4980
    %v5200 = vunpack.c.l.b16 %v4981
    %v5201 = vunpack.c.l.b16 %v4982
    %v5202 = vunpack.c.l.b16 %v4983
    %v5203 = vunpack.c.l.b16 %v4984
    %v5204 = vunpack.c.l.b16 %v4985
    %v5205 = vunpack.c.l.b16 %v4986
    %v5206 = vunpack.c.l.b16 %v4987
    %v5207 = vunpack.c.l.b16 %v4988
    %v5208 = vunpack.c.l.b16 %v4989
    %v5209 = vunpack.c.l.b16 %v4990
    %v5210 = vunpack.c.l.b16 %v4991
    %v5211 = vunpack.c.l.b16 %v4992
    %v5212 = vunpack.c.l.b16 %v4993
    %v5213 = vunpack.c.l.b16 %v4994
    %v5214 = vunpack.c.l.b16 %v4995
    %v5215 = vunpack.c.l.b16 %v4996
    %v5216 = vunpack.c.l.b16 %v4997
    %v5217 = vunpack.c.l.b16 %v4998
    %v5218 = vunpack.c.l.b16 %v4999
    %v5219 = vunpack.c.l.b16 %v5000
    %v5220 = vunpack.c.l.b16 %v5001
    %v5221 = vunpack.c.l.b16 %v5002
    %v5222 = vpack.c.b16 %v5195, %v5194
    %v5223 = vpack.c.b16 %v5197, %v5196
    %v5224 = vpack.c.b16 %v5199, %v5198
    %v5225 = vpack.c.b16 %v5201, %v5200
    %v5226 = vpack.c.b16 %v5203, %v5202
    %v5227 = vpack.c.b16 %v5205, %v5204
    %v5228 = vpack.c.b16 %v5207, %v5206
    %v5229 = vpack.c.b16 %v5209, %v5208
    %v5230 = vpack.c.b16 %v5211, %v5210
    %v5231 = vpack.c.b16 %v5213, %v5212
    %v5232 = vpack.c.b16 %v5215, %v5214
    %v5233 = vpack.c.b16 %v5217, %v5216
    %v5234 = vpack.c.b16 %v5219, %v5218
    %v5235 = vpack.c.b16 %v5221, %v5220
    %v5251 = vsel %vm5125, %v5164, 0
    %5253 = vmatpush.bf16.msra.mxu0 %v5229
    %5254 = vmatpush.bf16.msra.mxu0 %v5228
    %5255 = vmatpush.bf16.msra.mxu0 %v5227
    %5256 = vmatpush.bf16.msra.mxu0 %v5226
    %5257 = vmatpush.bf16.msra.mxu0 %v5225
    %5258 = vmatpush.bf16.msra.mxu0 %v5224
    %5259 = vmatpush.bf16.msra.mxu0 %v5223
    %5260 = vmatpush.bf16.msra.mxu0 %v5222
    %5261 = vmatmul.bf16.gmra.mxu0 %v5163
    %v5262 = vpop.f32.mrf.mxu0
    %v5263 = vadd.f32 %v5153, %v5262
    %v5264 = vpop.f32.mrf.mxu0
    %v5265 = vadd.f32 %v5155, %v5264
    %5266 = vdwg.mxu0
    %5267 = vmatpush.bf16.msra.mxu0 0
    %5268 = vmatpush.bf16.msra.mxu0 0
    %5269 = vmatpush.bf16.msra.mxu0 %v5235
    %5270 = vmatpush.bf16.msra.mxu0 %v5234
    %5271 = vmatpush.bf16.msra.mxu0 %v5233
    %5272 = vmatpush.bf16.msra.mxu0 %v5232
    %5273 = vmatpush.bf16.msra.mxu0 %v5231
    %5274 = vmatpush.bf16.msra.mxu0 %v5230
    %5275 = vmatmul.bf16.gmra.mxu0 %v5251
    %v5276 = vpop.f32.mrf.mxu0
    %v5277 = vadd.f32 %v5263, %v5276
    %v5278 = vpop.f32.mrf.mxu0
    %v5279 = vadd.f32 %v5265, %v5278
    %5280 = vdwg.mxu0
    %s5281 = scalar_lea.vmem [#allocation3], 224
    %v5282 = vld [vmem:[%s5281] sm:$0xf]
    %v5283 = vld [vmem:[%s5281 + $0x4] sm:$0xf]
    %v5284 = vld [vmem:[%s5281 + $0x8] sm:$0xf]
    %v5285 = vld [vmem:[%s5281 + $0xc] sm:$0xf]
    %v5286 = vld [vmem:[%s5281 + $0x10] sm:$0xf]
    %v5287 = vld [vmem:[%s5281 + $0x14] sm:$0xf]
    %v5288 = vld [vmem:[%s5281 + $0x18] sm:$0xf]
    %v5289 = vld [vmem:[%s5281 + $0x1c] sm:$0xf]
    %v5290 = vld [vmem:[%s5281 + $0x20] sm:$0xf]
    %v5291 = vld [vmem:[%s5281 + $0x24] sm:$0xf]
    %v5292 = vld [vmem:[%s5281 + $0x28] sm:$0xf]
    %v5293 = vld [vmem:[%s5281 + $0x2c] sm:$0xf]
    %v5294 = vld [vmem:[%s5281 + $0x30] sm:$0xf]
    %v5295 = vld [vmem:[%s5281 + $0x34] sm:$0xf]
    %v5296 = vld [vmem:[%s5281 + $0x38] sm:$0xf]
    %v5297 = vld [vmem:[%s5281 + $0x3c] sm:$0xf]
    %v5298 = vld [vmem:[%s5281 + $0x40] sm:$0xf]
    %v5299 = vld [vmem:[%s5281 + $0x44] sm:$0xf]
    %v5300 = vld [vmem:[%s5281 + $0x48] sm:$0xf]
    %v5301 = vld [vmem:[%s5281 + $0x4c] sm:$0xf]
    %v5302 = vld [vmem:[%s5281 + $0x50] sm:$0xf]
    %v5303 = vld [vmem:[%s5281 + $0x54] sm:$0xf]
    %v5304 = vld [vmem:[%s5281 + $0x58] sm:$0xf]
    %v5305 = vld [vmem:[%s5281 + $0x5c] sm:$0xf]
    %v5306 = vld [vmem:[%s5281 + $0x60] sm:$0xf]
    %v5307 = vld [vmem:[%s5281 + $0x64] sm:$0xf]
    %v5308 = vld [vmem:[%s5281 + $0x68] sm:$0xf]
    %v5309 = vld [vmem:[%s5281 + $0x6c] sm:$0xf]
    %v5312 = vunpack.c.l.b16 %v4969
    %v5313 = vunpack.c.h.b16 %v4969
    %v5314 = vunpack.c.l.b16 %v4970
    %v5315 = vunpack.c.h.b16 %v4970
    %v5316 = vpack.c.b16 %v5314, %v5312
    %v5317 = vpack.c.b16 %v5315, %v5313
    %v5347 = vunpack.c.l.b16 %v5282
    %v5348 = vunpack.c.l.b16 %v5283
    %v5349 = vunpack.c.l.b16 %v5284
    %v5350 = vunpack.c.l.b16 %v5285
    %v5351 = vunpack.c.l.b16 %v5286
    %v5352 = vunpack.c.l.b16 %v5287
    %v5353 = vunpack.c.l.b16 %v5288
    %v5354 = vunpack.c.l.b16 %v5289
    %v5355 = vunpack.c.l.b16 %v5290
    %v5356 = vunpack.c.l.b16 %v5291
    %v5357 = vunpack.c.l.b16 %v5292
    %v5358 = vunpack.c.l.b16 %v5293
    %v5359 = vunpack.c.l.b16 %v5294
    %v5360 = vunpack.c.l.b16 %v5295
    %v5361 = vunpack.c.l.b16 %v5296
    %v5362 = vunpack.c.l.b16 %v5297
    %v5363 = vunpack.c.l.b16 %v5298
    %v5364 = vunpack.c.l.b16 %v5299
    %v5365 = vunpack.c.l.b16 %v5300
    %v5366 = vunpack.c.l.b16 %v5301
    %v5367 = vunpack.c.l.b16 %v5302
    %v5368 = vunpack.c.l.b16 %v5303
    %v5369 = vunpack.c.l.b16 %v5304
    %v5370 = vunpack.c.l.b16 %v5305
    %v5371 = vunpack.c.l.b16 %v5306
    %v5372 = vunpack.c.l.b16 %v5307
    %v5373 = vunpack.c.l.b16 %v5308
    %v5374 = vunpack.c.l.b16 %v5309
    %v5375 = vpack.c.b16 %v5348, %v5347
    %v5376 = vpack.c.b16 %v5350, %v5349
    %v5377 = vpack.c.b16 %v5352, %v5351
    %v5378 = vpack.c.b16 %v5354, %v5353
    %v5379 = vpack.c.b16 %v5356, %v5355
    %v5380 = vpack.c.b16 %v5358, %v5357
    %v5381 = vpack.c.b16 %v5360, %v5359
    %v5382 = vpack.c.b16 %v5362, %v5361
    %v5383 = vpack.c.b16 %v5364, %v5363
    %v5384 = vpack.c.b16 %v5366, %v5365
    %v5385 = vpack.c.b16 %v5368, %v5367
    %v5386 = vpack.c.b16 %v5370, %v5369
    %v5387 = vpack.c.b16 %v5372, %v5371
    %v5388 = vpack.c.b16 %v5374, %v5373
    %v5404 = vsel %vm5125, %v5317, 0
    %5406 = vmatpush.bf16.msra.mxu0 %v5382
    %5407 = vmatpush.bf16.msra.mxu0 %v5381
    %5408 = vmatpush.bf16.msra.mxu0 %v5380
    %5409 = vmatpush.bf16.msra.mxu0 %v5379
    %5410 = vmatpush.bf16.msra.mxu0 %v5378
    %5411 = vmatpush.bf16.msra.mxu0 %v5377
    %5412 = vmatpush.bf16.msra.mxu0 %v5376
    %5413 = vmatpush.bf16.msra.mxu0 %v5375
    %5414 = vmatmul.bf16.gmra.mxu0 %v5316
    %v5415 = vpop.f32.mrf.mxu0
    %v5416 = vadd.f32 0.0, %v5415
    %v5417 = vpop.f32.mrf.mxu0
    %v5418 = vadd.f32 0.0, %v5417
    %5419 = vdwg.mxu0
    %5420 = vmatpush.bf16.msra.mxu0 0
    %5421 = vmatpush.bf16.msra.mxu0 0
    %5422 = vmatpush.bf16.msra.mxu0 %v5388
    %5423 = vmatpush.bf16.msra.mxu0 %v5387
    %5424 = vmatpush.bf16.msra.mxu0 %v5386
    %5425 = vmatpush.bf16.msra.mxu0 %v5385
    %5426 = vmatpush.bf16.msra.mxu0 %v5384
    %5427 = vmatpush.bf16.msra.mxu0 %v5383
    %5428 = vmatmul.bf16.gmra.mxu0 %v5404
    %v5429 = vpop.f32.mrf.mxu0
    %v5430 = vadd.f32 %v5416, %v5429
    %v5431 = vpop.f32.mrf.mxu0
    %v5432 = vadd.f32 %v5418, %v5431
    %5433 = vdwg.mxu0
    %v5434 = vadd.f32 %v5277, %v5430
    %v5435 = vadd.f32 %v5279, %v5432
    %s5436 = scalar_lea.vmem [#allocation3], 336
    %v5437 = vld [vmem:[%s5436] sm:$0xf]
    %v5438 = vld [vmem:[%s5436 + $0x4] sm:$0xf]
    %v5439 = vld [vmem:[%s5436 + $0x8] sm:$0xf]
    %v5440 = vld [vmem:[%s5436 + $0xc] sm:$0xf]
    %v5441 = vld [vmem:[%s5436 + $0x10] sm:$0xf]
    %v5442 = vld [vmem:[%s5436 + $0x14] sm:$0xf]
    %v5443 = vld [vmem:[%s5436 + $0x18] sm:$0xf]
    %v5444 = vld [vmem:[%s5436 + $0x1c] sm:$0xf]
    %v5445 = vld [vmem:[%s5436 + $0x20] sm:$0xf]
    %v5446 = vld [vmem:[%s5436 + $0x24] sm:$0xf]
    %v5447 = vld [vmem:[%s5436 + $0x28] sm:$0xf]
    %v5448 = vld [vmem:[%s5436 + $0x2c] sm:$0xf]
    %v5449 = vld [vmem:[%s5436 + $0x30] sm:$0xf]
    %v5450 = vld [vmem:[%s5436 + $0x34] sm:$0xf]
    %v5451 = vld [vmem:[%s5436 + $0x38] sm:$0xf]
    %v5452 = vld [vmem:[%s5436 + $0x3c] sm:$0xf]
    %v5453 = vld [vmem:[%s5436 + $0x40] sm:$0xf]
    %v5454 = vld [vmem:[%s5436 + $0x44] sm:$0xf]
    %v5455 = vld [vmem:[%s5436 + $0x48] sm:$0xf]
    %v5456 = vld [vmem:[%s5436 + $0x4c] sm:$0xf]
    %v5457 = vld [vmem:[%s5436 + $0x50] sm:$0xf]
    %v5458 = vld [vmem:[%s5436 + $0x54] sm:$0xf]
    %v5459 = vld [vmem:[%s5436 + $0x58] sm:$0xf]
    %v5460 = vld [vmem:[%s5436 + $0x5c] sm:$0xf]
    %v5461 = vld [vmem:[%s5436 + $0x60] sm:$0xf]
    %v5462 = vld [vmem:[%s5436 + $0x64] sm:$0xf]
    %v5463 = vld [vmem:[%s5436 + $0x68] sm:$0xf]
    %v5464 = vld [vmem:[%s5436 + $0x6c] sm:$0xf]
    %v5467 = vunpack.c.l.b16 %v4971
    %v5468 = vunpack.c.h.b16 %v4971
    %v5469 = vunpack.c.l.b16 %v4972
    %v5470 = vunpack.c.h.b16 %v4972
    %v5471 = vpack.c.b16 %v5469, %v5467
    %v5472 = vpack.c.b16 %v5470, %v5468
    %v5502 = vunpack.c.l.b16 %v5437
    %v5503 = vunpack.c.l.b16 %v5438
    %v5504 = vunpack.c.l.b16 %v5439
    %v5505 = vunpack.c.l.b16 %v5440
    %v5506 = vunpack.c.l.b16 %v5441
    %v5507 = vunpack.c.l.b16 %v5442
    %v5508 = vunpack.c.l.b16 %v5443
    %v5509 = vunpack.c.l.b16 %v5444
    %v5510 = vunpack.c.l.b16 %v5445
    %v5511 = vunpack.c.l.b16 %v5446
    %v5512 = vunpack.c.l.b16 %v5447
    %v5513 = vunpack.c.l.b16 %v5448
    %v5514 = vunpack.c.l.b16 %v5449
    %v5515 = vunpack.c.l.b16 %v5450
    %v5516 = vunpack.c.l.b16 %v5451
    %v5517 = vunpack.c.l.b16 %v5452
    %v5518 = vunpack.c.l.b16 %v5453
    %v5519 = vunpack.c.l.b16 %v5454
    %v5520 = vunpack.c.l.b16 %v5455
    %v5521 = vunpack.c.l.b16 %v5456
    %v5522 = vunpack.c.l.b16 %v5457
    %v5523 = vunpack.c.l.b16 %v5458
    %v5524 = vunpack.c.l.b16 %v5459
    %v5525 = vunpack.c.l.b16 %v5460
    %v5526 = vunpack.c.l.b16 %v5461
    %v5527 = vunpack.c.l.b16 %v5462
    %v5528 = vunpack.c.l.b16 %v5463
    %v5529 = vunpack.c.l.b16 %v5464
    %v5530 = vpack.c.b16 %v5503, %v5502
    %v5531 = vpack.c.b16 %v5505, %v5504
    %v5532 = vpack.c.b16 %v5507, %v5506
    %v5533 = vpack.c.b16 %v5509, %v5508
    %v5534 = vpack.c.b16 %v5511, %v5510
    %v5535 = vpack.c.b16 %v5513, %v5512
    %v5536 = vpack.c.b16 %v5515, %v5514
    %v5537 = vpack.c.b16 %v5517, %v5516
    %v5538 = vpack.c.b16 %v5519, %v5518
    %v5539 = vpack.c.b16 %v5521, %v5520
    %v5540 = vpack.c.b16 %v5523, %v5522
    %v5541 = vpack.c.b16 %v5525, %v5524
    %v5542 = vpack.c.b16 %v5527, %v5526
    %v5543 = vpack.c.b16 %v5529, %v5528
    %v5559 = vsel %vm5125, %v5472, 0
    %5561 = vmatpush.bf16.msra.mxu0 %v5537
    %5562 = vmatpush.bf16.msra.mxu0 %v5536
    %5563 = vmatpush.bf16.msra.mxu0 %v5535
    %5564 = vmatpush.bf16.msra.mxu0 %v5534
    %5565 = vmatpush.bf16.msra.mxu0 %v5533
    %5566 = vmatpush.bf16.msra.mxu0 %v5532
    %5567 = vmatpush.bf16.msra.mxu0 %v5531
    %5568 = vmatpush.bf16.msra.mxu0 %v5530
    %5569 = vmatmul.bf16.gmra.mxu0 %v5471
    %v5570 = vpop.f32.mrf.mxu0
    %v5571 = vadd.f32 0.0, %v5570
    %v5572 = vpop.f32.mrf.mxu0
    %v5573 = vadd.f32 0.0, %v5572
    %5574 = vdwg.mxu0
    %5575 = vmatpush.bf16.msra.mxu0 0
    %5576 = vmatpush.bf16.msra.mxu0 0
    %5577 = vmatpush.bf16.msra.mxu0 %v5543
    %5578 = vmatpush.bf16.msra.mxu0 %v5542
    %5579 = vmatpush.bf16.msra.mxu0 %v5541
    %5580 = vmatpush.bf16.msra.mxu0 %v5540
    %5581 = vmatpush.bf16.msra.mxu0 %v5539
    %5582 = vmatpush.bf16.msra.mxu0 %v5538
    %5583 = vmatmul.bf16.gmra.mxu0 %v5559
    %v5584 = vpop.f32.mrf.mxu0
    %v5585 = vadd.f32 %v5571, %v5584
    %v5586 = vpop.f32.mrf.mxu0
    %v5587 = vadd.f32 %v5573, %v5586
    %5588 = vdwg.mxu0
    %v5589 = vadd.f32 %v5434, %v5585
    %v5590 = vadd.f32 %v5435, %v5587
    %s5591 = scalar_lea.vmem [#allocation3], 448
    %v5592 = vld [vmem:[%s5591] sm:$0xf]
    %v5593 = vld [vmem:[%s5591 + $0x4] sm:$0xf]
    %v5594 = vld [vmem:[%s5591 + $0x8] sm:$0xf]
    %v5595 = vld [vmem:[%s5591 + $0xc] sm:$0xf]
    %v5596 = vld [vmem:[%s5591 + $0x10] sm:$0xf]
    %v5597 = vld [vmem:[%s5591 + $0x14] sm:$0xf]
    %v5598 = vld [vmem:[%s5591 + $0x18] sm:$0xf]
    %v5599 = vld [vmem:[%s5591 + $0x1c] sm:$0xf]
    %v5600 = vld [vmem:[%s5591 + $0x20] sm:$0xf]
    %v5601 = vld [vmem:[%s5591 + $0x24] sm:$0xf]
    %v5602 = vld [vmem:[%s5591 + $0x28] sm:$0xf]
    %v5603 = vld [vmem:[%s5591 + $0x2c] sm:$0xf]
    %v5604 = vld [vmem:[%s5591 + $0x30] sm:$0xf]
    %v5605 = vld [vmem:[%s5591 + $0x34] sm:$0xf]
    %v5606 = vld [vmem:[%s5591 + $0x38] sm:$0xf]
    %v5607 = vld [vmem:[%s5591 + $0x3c] sm:$0xf]
    %v5608 = vld [vmem:[%s5591 + $0x40] sm:$0xf]
    %v5609 = vld [vmem:[%s5591 + $0x44] sm:$0xf]
    %v5610 = vld [vmem:[%s5591 + $0x48] sm:$0xf]
    %v5611 = vld [vmem:[%s5591 + $0x4c] sm:$0xf]
    %v5612 = vld [vmem:[%s5591 + $0x50] sm:$0xf]
    %v5613 = vld [vmem:[%s5591 + $0x54] sm:$0xf]
    %v5614 = vld [vmem:[%s5591 + $0x58] sm:$0xf]
    %v5615 = vld [vmem:[%s5591 + $0x5c] sm:$0xf]
    %v5616 = vld [vmem:[%s5591 + $0x60] sm:$0xf]
    %v5617 = vld [vmem:[%s5591 + $0x64] sm:$0xf]
    %v5618 = vld [vmem:[%s5591 + $0x68] sm:$0xf]
    %v5619 = vld [vmem:[%s5591 + $0x6c] sm:$0xf]
    %v5622 = vunpack.c.l.b16 %v4973
    %v5623 = vunpack.c.h.b16 %v4973
    %v5624 = vunpack.c.l.b16 %v4974
    %v5625 = vunpack.c.h.b16 %v4974
    %v5626 = vpack.c.b16 %v5624, %v5622
    %v5627 = vpack.c.b16 %v5625, %v5623
    %v5657 = vunpack.c.l.b16 %v5592
    %v5658 = vunpack.c.l.b16 %v5593
    %v5659 = vunpack.c.l.b16 %v5594
    %v5660 = vunpack.c.l.b16 %v5595
    %v5661 = vunpack.c.l.b16 %v5596
    %v5662 = vunpack.c.l.b16 %v5597
    %v5663 = vunpack.c.l.b16 %v5598
    %v5664 = vunpack.c.l.b16 %v5599
    %v5665 = vunpack.c.l.b16 %v5600
    %v5666 = vunpack.c.l.b16 %v5601
    %v5667 = vunpack.c.l.b16 %v5602
    %v5668 = vunpack.c.l.b16 %v5603
    %v5669 = vunpack.c.l.b16 %v5604
    %v5670 = vunpack.c.l.b16 %v5605
    %v5671 = vunpack.c.l.b16 %v5606
    %v5672 = vunpack.c.l.b16 %v5607
    %v5673 = vunpack.c.l.b16 %v5608
    %v5674 = vunpack.c.l.b16 %v5609
    %v5675 = vunpack.c.l.b16 %v5610
    %v5676 = vunpack.c.l.b16 %v5611
    %v5677 = vunpack.c.l.b16 %v5612
    %v5678 = vunpack.c.l.b16 %v5613
    %v5679 = vunpack.c.l.b16 %v5614
    %v5680 = vunpack.c.l.b16 %v5615
    %v5681 = vunpack.c.l.b16 %v5616
    %v5682 = vunpack.c.l.b16 %v5617
    %v5683 = vunpack.c.l.b16 %v5618
    %v5684 = vunpack.c.l.b16 %v5619
    %v5685 = vpack.c.b16 %v5658, %v5657
    %v5686 = vpack.c.b16 %v5660, %v5659
    %v5687 = vpack.c.b16 %v5662, %v5661
    %v5688 = vpack.c.b16 %v5664, %v5663
    %v5689 = vpack.c.b16 %v5666, %v5665
    %v5690 = vpack.c.b16 %v5668, %v5667
    %v5691 = vpack.c.b16 %v5670, %v5669
    %v5692 = vpack.c.b16 %v5672, %v5671
    %v5693 = vpack.c.b16 %v5674, %v5673
    %v5694 = vpack.c.b16 %v5676, %v5675
    %v5695 = vpack.c.b16 %v5678, %v5677
    %v5696 = vpack.c.b16 %v5680, %v5679
    %v5697 = vpack.c.b16 %v5682, %v5681
    %v5698 = vpack.c.b16 %v5684, %v5683
    %v5714 = vsel %vm5125, %v5627, 0
    %5716 = vmatpush.bf16.msra.mxu0 %v5692
    %5717 = vmatpush.bf16.msra.mxu0 %v5691
    %5718 = vmatpush.bf16.msra.mxu0 %v5690
    %5719 = vmatpush.bf16.msra.mxu0 %v5689
    %5720 = vmatpush.bf16.msra.mxu0 %v5688
    %5721 = vmatpush.bf16.msra.mxu0 %v5687
    %5722 = vmatpush.bf16.msra.mxu0 %v5686
    %5723 = vmatpush.bf16.msra.mxu0 %v5685
    %5724 = vmatmul.bf16.gmra.mxu0 %v5626
    %v5725 = vpop.f32.mrf.mxu0
    %v5726 = vadd.f32 0.0, %v5725
    %v5727 = vpop.f32.mrf.mxu0
    %v5728 = vadd.f32 0.0, %v5727
    %5729 = vdwg.mxu0
    %5730 = vmatpush.bf16.msra.mxu0 0
    %5731 = vmatpush.bf16.msra.mxu0 0
    %5732 = vmatpush.bf16.msra.mxu0 %v5698
    %5733 = vmatpush.bf16.msra.mxu0 %v5697
    %5734 = vmatpush.bf16.msra.mxu0 %v5696
    %5735 = vmatpush.bf16.msra.mxu0 %v5695
    %5736 = vmatpush.bf16.msra.mxu0 %v5694
    %5737 = vmatpush.bf16.msra.mxu0 %v5693
    %5738 = vmatmul.bf16.gmra.mxu0 %v5714
    %v5739 = vpop.f32.mrf.mxu0
    %v5740 = vadd.f32 %v5726, %v5739
    %v5741 = vpop.f32.mrf.mxu0
    %v5742 = vadd.f32 %v5728, %v5741
    %5743 = vdwg.mxu0
    %v5744 = vadd.f32 %v5589, %v5740
    %v5745 = vadd.f32 %v5590, %v5742
    %v5746 = vld [vmem:[%s7] sm:$0x1]
    %v5748 = vperm.slane %v5746, 0
    %v5750 = vadd.f32 %v5744, %v5748
    %v5751 = vadd.f32 %v5745, %v5748
    %v5752 = vmax.f32 %v5750, 0.0
    %v5753 = vmax.f32 %v5751, 0.0
    %v5754 = vpack.c.bf16 %v5753, %v5752
    %s5755 = smul.u32 4, 2
    %s5756 = smul.u32 %s5755, 8
    %s5757 = smul.u32 %s5756, 1
    %s5758 = sshll.u32 %s5757, 4
    %5759 = dma.done %s588, %s5758
    %v5760 = vld [vmem:[%s9] sm:$0x1]
    %v5761 = vld [vmem:[%s8] sm:$0xf]
    %v5763 = vsel %vm4881, %v5761, 0
    %5765 = vmatpush.bf16.msra.mxu0 0
    %5766 = vmatpush.bf16.msra.mxu0 0
    %5767 = vmatpush.bf16.msra.mxu0 0
    %5768 = vmatpush.bf16.msra.mxu0 0
    %5769 = vmatpush.bf16.msra.mxu0 0
    %5770 = vmatpush.bf16.msra.mxu0 0
    %5771 = vmatpush.bf16.msra.mxu0 0
    %5772 = vmatpush.bf16.msra.mxu0 %v5754
    %5773 = vmatmul.bf16.gmra.mxu0 %v5763
    %v5774 = vpop.f32.mrf.mxu0
    %v5775 = vadd.f32 0.0, %v5774
    %v5776 = vpop.f32.mrf.mxu0
    %5777 = vdwg.mxu0
    %v5778 = vpack.c.bf16 %v5775, %v5775
    %v5779 = vld [vmem:[#allocation4] sm:$0xf]
    %v5780 = vld [vmem:[#allocation4 + $0x4] sm:$0xf]
    %v5781 = vld [vmem:[#allocation4 + $0x8] sm:$0xf]
    %v5782 = vld [vmem:[#allocation4 + $0xc] sm:$0xf]
    %v5783 = vld [vmem:[#allocation4 + $0x10] sm:$0xf]
    %v5784 = vld [vmem:[#allocation4 + $0x14] sm:$0xf]
    %v5785 = vld [vmem:[#allocation4 + $0x18] sm:$0xf]
    %v5786 = vld [vmem:[#allocation4 + $0x1c] sm:$0xf]
    %v5795 = vunpack.c.l.b16 %v5779
    %v5796 = vunpack.c.l.b16 %v5780
    %v5797 = vunpack.c.l.b16 %v5781
    %v5798 = vunpack.c.l.b16 %v5782
    %v5799 = vunpack.c.l.b16 %v5783
    %v5800 = vunpack.c.l.b16 %v5784
    %v5801 = vunpack.c.l.b16 %v5785
    %v5802 = vunpack.c.l.b16 %v5786
    %v5803 = vpack.c.b16 %v5796, %v5795
    %v5804 = vpack.c.b16 %v5798, %v5797
    %v5805 = vpack.c.b16 %v5800, %v5799
    %v5806 = vpack.c.b16 %v5802, %v5801
    %vm5811 = vcmask 523264
    %v5813 = vsel %vm5811, %v5778, 0
    %5815 = vmatpush.bf16.msra.mxu0 0
    %5816 = vmatpush.bf16.msra.mxu0 0
    %5817 = vmatpush.bf16.msra.mxu0 0
    %5818 = vmatpush.bf16.msra.mxu0 0
    %5819 = vmatpush.bf16.msra.mxu0 %v5806
    %5820 = vmatpush.bf16.msra.mxu0 %v5805
    %5821 = vmatpush.bf16.msra.mxu0 %v5804
    %5822 = vmatpush.bf16.msra.mxu0 %v5803
    %5823 = vmatmul.bf16.gmra.mxu0 %v5813
    %v5824 = vpop.f32.mrf.mxu0
    %v5825 = vadd.f32 0.0, %v5824
    %v5826 = vpop.f32.mrf.mxu0
    %5827 = vdwg.mxu0
    %v5829 = vperm.slane %v5760, 0
    %v5831 = vadd.f32 %v5829, %v5825
    %s5832 = scalar_lea.vmem %s8, 4
    %v5833 = vld [vmem:[%s5832] sm:$0xf]
    %v5835 = vsel %vm4881, %v5833, 0
    %5837 = vmatpush.bf16.msra.mxu0 0
    %5838 = vmatpush.bf16.msra.mxu0 0
    %5839 = vmatpush.bf16.msra.mxu0 0
    %5840 = vmatpush.bf16.msra.mxu0 0
    %5841 = vmatpush.bf16.msra.mxu0 0
    %5842 = vmatpush.bf16.msra.mxu0 0
    %5843 = vmatpush.bf16.msra.mxu0 0
    %5844 = vmatpush.bf16.msra.mxu0 %v5754
    %5845 = vmatmul.bf16.gmra.mxu0 %v5835
    %v5846 = vpop.f32.mrf.mxu0
    %v5847 = vadd.f32 0.0, %v5846
    %v5848 = vpop.f32.mrf.mxu0
    %5849 = vdwg.mxu0
    %v5850 = vpack.c.bf16 %v5847, %v5847
    %s5851 = scalar_lea.vmem [#allocation4], 32
    %v5852 = vld [vmem:[%s5851] sm:$0xf]
    %v5853 = vld [vmem:[%s5851 + $0x4] sm:$0xf]
    %v5854 = vld [vmem:[%s5851 + $0x8] sm:$0xf]
    %v5855 = vld [vmem:[%s5851 + $0xc] sm:$0xf]
    %v5856 = vld [vmem:[%s5851 + $0x10] sm:$0xf]
    %v5857 = vld [vmem:[%s5851 + $0x14] sm:$0xf]
    %v5858 = vld [vmem:[%s5851 + $0x18] sm:$0xf]
    %v5859 = vld [vmem:[%s5851 + $0x1c] sm:$0xf]
    %v5868 = vunpack.c.l.b16 %v5852
    %v5869 = vunpack.c.l.b16 %v5853
    %v5870 = vunpack.c.l.b16 %v5854
    %v5871 = vunpack.c.l.b16 %v5855
    %v5872 = vunpack.c.l.b16 %v5856
    %v5873 = vunpack.c.l.b16 %v5857
    %v5874 = vunpack.c.l.b16 %v5858
    %v5875 = vunpack.c.l.b16 %v5859
    %v5876 = vpack.c.b16 %v5869, %v5868
    %v5877 = vpack.c.b16 %v5871, %v5870
    %v5878 = vpack.c.b16 %v5873, %v5872
    %v5879 = vpack.c.b16 %v5875, %v5874
    %v5885 = vsel %vm5811, %v5850, 0
    %5887 = vmatpush.bf16.msra.mxu0 0
    %5888 = vmatpush.bf16.msra.mxu0 0
    %5889 = vmatpush.bf16.msra.mxu0 0
    %5890 = vmatpush.bf16.msra.mxu0 0
    %5891 = vmatpush.bf16.msra.mxu0 %v5879
    %5892 = vmatpush.bf16.msra.mxu0 %v5878
    %5893 = vmatpush.bf16.msra.mxu0 %v5877
    %5894 = vmatpush.bf16.msra.mxu0 %v5876
    %5895 = vmatmul.bf16.gmra.mxu0 %v5885
    %v5896 = vpop.f32.mrf.mxu0
    %v5897 = vadd.f32 0.0, %v5896
    %v5898 = vpop.f32.mrf.mxu0
    %5899 = vdwg.mxu0
    %v5900 = vadd.f32 %v5831, %v5897
    %5901 = vst [vmem:[%s13] sm:$0xff] %v5900
    // Predicated region
    $region103: #{forward.1} parent=1 // pred_check
      _
    $region104: #{forward.1} parent=1 // pred_check_branch
      %5903 = sbr.rel (0) target = $region106
    $region105: #{forward.1} parent=1 // pred_region
      _
    $region106: #{forward.1} parent=1 // pred_fallthru
      _
    // Predicated region
    $region107: #{forward.1} parent=1 // pred_check
      _
    $region108: #{forward.1} parent=1 // pred_check_branch
      %5905 = sbr.rel (0) target = $region110
    $region109: #{forward.1} parent=1 // pred_region
      _
    $region110: #{forward.1} parent=1 // pred_fallthru
      _
    %5906 = vsyncpa [#allocation7], 1
  %5907 = vsyncmov [#allocation5]
  %s5908 = vpop.sfrf %5907
  %p5909 = scmp.eq.s32.totalorder %s5908, 0
  %p5910 = pneg %p5909
  %5912 = shalt.err (%p5910)
  %s5913 = scalar_lea.sflag [#allocation5], 1
  %5914 = vsyncmov %s5913
  %s5915 = vpop.sfrf %5914
  %p5916 = scmp.eq.s32.totalorder %s5915, 0
  %p5917 = pneg %p5916
  %5919 = shalt.err (%p5917)
  %s5920 = scalar_lea.sflag [#allocation5], 2
  %5921 = vsyncmov %s5920
  %s5922 = vpop.sfrf %5921
  %p5923 = scmp.eq.s32.totalorder %s5922, 0
  %p5924 = pneg %p5923
  %5926 = shalt.err (%p5924)

</llo_original>
